<compile_context>
chip_gen: v7x
topology: tpu7x:2x2x1
jax: 0.10.0
libtpu: 0.0.40
codegen_flags: <defaults>
</compile_context>

<pallas_src>
import functools

import jax
import jax.numpy as jnp
from jax import lax
from jax.experimental import pallas as pl
from jax.experimental.pallas import tpu as pltpu

LANE = 128
SUBLANE_BF16 = 16          # bf16 packs 16 rows per sublane-pair
NEG_BIG = -1e30            # softmax padding logit (exp underflows to exactly 0 in f32)


def _round_up(n, m):
    return ((n + m - 1) // m) * m


def _cdiv(a, b):
    return -(-a // b)


def _device_kind():
    try:
        return jax.devices()[0].device_kind.lower()
    except Exception:
        return ""


def _use_bf16_activations(kind=None):
    kind = _device_kind() if kind is None else kind
    # v6e / v7x have bf16 EUP & VPU paths; v5e (and older) do not.
    return ("v6" in kind) or ("v7" in kind)


def _num_tensorcores(kind=None):
    kind = _device_kind() if kind is None else kind
    return 2 if (("v7" in kind) or ("v4" in kind) or ("v5p" in kind)) else 1


def _vmem_capacity_bytes():
    try:
        return int(pltpu.get_tpu_info().vmem_capacity_bytes)
    except Exception:
        return None


# --------------------------------------------------------------------------------------
# Kernel
# --------------------------------------------------------------------------------------
def _actor_resnet_kernel(x_ref, w0_ref, b0_ref, wblk_ref, bblk_ref, wo_ref, bo_ref,
                         out_ref, *, use_bf16_act):
    """Whole forward pass for one batch tile; all weights resident in VMEM.

    Weights and matmul operands are bf16, accumulation / residual add / softmax are f32.
    """
    bf16, f32 = jnp.bfloat16, jnp.float32
    n_layers = wblk_ref.shape[0]

    def act(pre_f32):
        if use_bf16_act:
            # v6e/v7x: bf16 EUP tanh (~2x transcendental throughput); result stays bf16
            # so the following matmul needs no cast.
            return jnp.tanh(pre_f32.astype(bf16))
        return jnp.tanh(pre_f32)  # v5e: f32 path (no bf16 EUP/VPU)

    # Initial dense layer (+ tanh). x arrives already bf16 from the wrapper.
    h = act(jnp.dot(x_ref[...], w0_ref[...], preferred_element_type=f32) + b0_ref[...])
    h = h.astype(f32)  # residual accumulator stays f32

    def block(h, wa, ba, wb, bb):
        z = act(jnp.dot(h.astype(bf16), wa, preferred_element_type=f32) + ba)
        z = act(jnp.dot(z.astype(bf16), wb, preferred_element_type=f32) + bb)
        return h + z.astype(f32)  # skip connection accumulated in f32

    if n_layers <= 8:
        # Small, trace-time-known depth: static unroll.
        for l in range(n_layers):
            h = block(h, wblk_ref[l, 0], bblk_ref[l, 0], wblk_ref[l, 1], bblk_ref[l, 1])
    else:
        # Deep configs: fori_loop bounds live ranges / instruction count.
        def body(l, h):
            return block(h, wblk_ref[l, 0], bblk_ref[l, 0], wblk_ref[l, 1], bblk_ref[l, 1])
        h = lax.fori_loop(0, n_layers, body, h)

    # Output dense layer + softmax over the padded, lane-dense last axis.
    # Padded output columns carry a -1e30 bias => exp == 0, so softmax over the real
    # columns is exact.
    logits = (jnp.dot(h.astype(bf16), wo_ref[...], preferred_element_type=f32)
              + bo_ref[...])
    m = jnp.max(logits, axis=-1, keepdims=True)
    e = jnp.exp(logits - m)
    d = jnp.sum(e, axis=-1, keepdims=True)
    r = pl.reciprocal(d, approx=True)
    r = r * (2.0 - d * r)                      # one Newton step -> ~f32-accurate 1/d
    out_ref[...] = (e * r).astype(out_ref.dtype)


# --------------------------------------------------------------------------------------
# One-time parameter preparation (pad to 128 lanes, cast weights to bf16)
# --------------------------------------------------------------------------------------
def prepare_params(params):
    """Call ONCE at init; reuse the result for every forward call."""
    w0, b0 = params["w0"], params["b0"]
    wblk, bblk = params["wblk"], params["bblk"]
    wo, bo = params["wo"], params["bo"]

    input_dim, layer_width = w0.shape
    output_dim = wo.shape[1]
    n_layers = wblk.shape[0]

    Dp = _round_up(input_dim, LANE)
    Wp = _round_up(layer_width, LANE)
    Op = _round_up(output_dim, LANE)

    bf16 = jnp.bfloat16
    prepared = {
        "w0": jnp.pad(w0, ((0, Dp - input_dim), (0, Wp - layer_width))).astype(bf16),
        "b0": jnp.pad(b0, ((0, 0), (0, Wp - layer_width))).astype(jnp.float32),
        "wblk": jnp.pad(
            wblk, ((0, 0), (0, 0), (0, Wp - layer_width), (0, Wp - layer_width))
        ).astype(bf16),
        "bblk": jnp.pad(
            bblk, ((0, 0), (0, 0), (0, 0), (0, Wp - layer_width))
        ).astype(jnp.float32),
        "wo": jnp.pad(wo, ((0, Wp - layer_width), (0, Op - output_dim))).astype(bf16),
        "bo": jnp.pad(
            bo.astype(jnp.float32), ((0, 0), (0, Op - output_dim)),
            constant_values=NEG_BIG),
        "dims": (input_dim, layer_width, n_layers, output_dim, Dp, Wp, Op),
    }
    for k, v in prepared.items():
        if k != "dims":
            jax.block_until_ready(v)  # materialize once, not on every forward
    return prepared


# --------------------------------------------------------------------------------------
# Forward wrapper
# --------------------------------------------------------------------------------------
def actor_resnet_forward(x, prepared, *, batch_tile=None):
    input_dim, layer_width, n_layers, output_dim, Dp, Wp, Op = prepared["dims"]
    B = x.shape[0]

    kind = _device_kind()
    n_cores = _num_tensorcores(kind)
    use_bf16_act = _use_bf16_activations(kind)

    # ---- generation-aware VMEM budget ---------------------------------------------
    weight_bytes = ((Dp * Wp + n_layers * 2 * Wp * Wp + Wp * Op) * 2     # bf16 weights
                    + (Wp + n_layers * 2 * Wp + Op) * 4)                 # f32 biases
    vmem_cap = _vmem_capacity_bytes()
    if vmem_cap is not None and vmem_cap >= (64 << 20):
        headroom = max(16 << 20, vmem_cap // 8)   # v7x: 64-16=48 MiB; v5e/v6e: 112 MiB
        usable = vmem_cap - headroom
        set_limit = True
    else:
        usable = 28 << 20                          # conservative default-scoped-VMEM guess
        set_limit = False

    if weight_bytes > usable - (4 << 20):
        # TODO(synk): stream wblk/bblk over an extra 'arbitrary' grid axis (indexed
        # BlockSpecs) instead of keeping all weights resident once they no longer fit.
        raise NotImplementedError("ActorResNet weights exceed all-resident VMEM budget")

    # ---- batch tiling: multiples of 16 rows, large tiles, even count on 2-TC chips --
    bytes_per_row = 2 * (Dp * 2 + Op * 4) + 3 * Wp * 4   # dbl-buffered io + live f32 acts
    avail_for_tiles = max(usable - 2 * weight_bytes, 4 << 20)
    max_tile = max(SUBLANE_BF16,
                   min(2048, (avail_for_tiles // bytes_per_row) // SUBLANE_BF16
                       * SUBLANE_BF16))

    B16 = _round_up(max(B, 1), SUBLANE_BF16)
    if batch_tile is not None:
        tb = max(SUBLANE_BF16, _round_up(batch_tile, SUBLANE_BF16))
        n_tiles = _cdiv(B16, tb)
        if n_cores > 1 and n_tiles > 1 and n_tiles % 2:
            n_tiles += 1
    elif n_cores == 1 and B16 <= max_tile:
        tb, n_tiles = B16, 1                     # single TC: one grid step, no overhead
    else:
        target_tiles = max(2, 2 * n_cores)       # even split across TensorCores
        tb = min(max_tile, max(SUBLANE_BF16, _round_up(_cdiv(B16, target_tiles),
                                                       SUBLANE_BF16)))
        n_tiles = _cdiv(B16, tb)
        if n_cores > 1 and n_tiles % 2:
            n_tiles += 1
    Bp = n_tiles * tb

    io_bytes = 2 * (tb * Dp * 2 + tb * Op * 4)
    act_bytes = 3 * tb * Wp * 4
    budget = 2 * weight_bytes + io_bytes + act_bytes + (8 << 20)
    vmem_limit = int(min(max(budget, 32 << 20), usable)) if set_limit else None

    # ---- pad + cast the activation tile only (weights were prepared once) ----------
    x_p = jnp.pad(x.astype(jnp.bfloat16), ((0, Bp - B), (0, Dp - input_dim)))

    # ---- BlockSpecs -----------------------------------------------------------------
    def const_spec(shape, single_buffer):
        idx = lambda i, _n=len(shape): (0,) * _n   # grid-invariant
        if single_buffer:
            return pl.BlockSpec(shape, idx, pipeline_mode=pl.Buffered(1))
        return pl.BlockSpec(shape, idx)

    def build(single_buffer_weights):
        grid_spec = pltpu.PrefetchScalarGridSpec(
            num_scalar_prefetch=0,
            grid=(n_tiles,),
            in_specs=[
                pl.BlockSpec((tb, Dp), lambda i: (i, 0)),                  # x tile (bf16)
                const_spec((Dp, Wp), single_buffer_weights),               # w0
                const_spec((1, Wp), single_buffer_weights),                # b0
                const_spec((n_layers, 2, Wp, Wp), single_buffer_weights),  # block weights
                const_spec((n_layers, 2, 1, Wp), single_buffer_weights),   # block biases
                const_spec((Wp, Op), single_buffer_weights),               # wo
                const_spec((1, Op), single_buffer_weights),                # bo (-1e30 pad)
            ],
            out_specs=pl.BlockSpec((tb, Op), lambda i: (i, 0)),            # lane-dense out
        )
        cp_kwargs = dict(dimension_semantics=("parallel",))
        if vmem_limit is not None:
            cp_kwargs["vmem_limit_bytes"] = vmem_limit
        return pl.pallas_call(
            functools.partial(_actor_resnet_kernel, use_bf16_act=use_bf16_act),
            out_shape=jax.ShapeDtypeStruct((Bp, Op), jnp.float32),
            grid_spec=grid_spec,
            compiler_params=pltpu.CompilerParams(**cp_kwargs),
        )

    args = (x_p, prepared["w0"], prepared["b0"], prepared["wblk"], prepared["bblk"],
            prepared["wo"], prepared["bo"])
    try:
        out_p = build(single_buffer_weights=True)(*args)
    except Exception:
        # Fallback if this jax build rejects pipeline_mode / Buffered(1).
        out_p = build(single_buffer_weights=False)(*args)

    return out_p[:B, :output_dim]


# --------------------------------------------------------------------------------------
# Synthetic init + reference
# --------------------------------------------------------------------------------------
def init_params(key, input_dim, layer_width, n_layers, output_dim):
    """Deterministic synthetic init (xavier-normal weights, small biases).
    Weights stored pre-transposed as (in, out), in f32 (padded/cast by prepare_params)."""
    def xavier(k, fan_in, fan_out):
        std = (2.0 / (fan_in + fan_out)) ** 0.5
        return std * jax.random.normal(k, (fan_in, fan_out), dtype=jnp.float32)

    keys = jax.random.split(key, 4 + 2 * n_layers)
    w0 = xavier(keys[0], input_dim, layer_width)
    b0 = 0.01 * jax.random.normal(keys[1], (1, layer_width), dtype=jnp.float32)
    wblk = jnp.stack([
        jnp.stack([xavier(keys[2 + 2 * l + j], layer_width, layer_width) for j in range(2)])
        for l in range(n_layers)
    ])                                                             # (n_layers, 2, W, W)
    bblk = 0.01 * jax.random.normal(keys[-2], (n_layers, 2, 1, layer_width),
                                    dtype=jnp.float32)
    wo = xavier(keys[-1], layer_width, output_dim)
    bo = jnp.zeros((1, output_dim), dtype=jnp.float32)
    return {"w0": w0, "b0": b0, "wblk": wblk, "bblk": bblk, "wo": wo, "bo": bo}


def reference_forward(x, params, use_bf16_act):
    """Pure-JAX reference mirroring the kernel numerics (bf16 operands, f32 accumulation,
    generation-gated bf16 tanh)."""
    bf16, f32 = jnp.bfloat16, jnp.float32

    def act(pre):
        return jnp.tanh(pre.astype(bf16)) if use_bf16_act else jnp.tanh(pre)

    h = act(jnp.dot(x.astype(bf16), params["w0"].astype(bf16),
                    preferred_element_type=f32) + params["b0"]).astype(f32)
    for l in range(params["wblk"].shape[0]):
        z = act(jnp.dot(h.astype(bf16), params["wblk"][l, 0].astype(bf16),
                        preferred_element_type=f32) + params["bblk"][l, 0])
        z = act(jnp.dot(z.astype(bf16), params["wblk"][l, 1].astype(bf16),
                        preferred_element_type=f32) + params["bblk"][l, 1])
        h = h + z.astype(f32)
    logits = (jnp.dot(h.astype(bf16), params["wo"].astype(bf16),
                      preferred_element_type=f32) + params["bo"])
    return jax.nn.softmax(logits, axis=-1)


if __name__ == "__main__":
    key = jax.random.PRNGKey(0)
    k_x, k_p = jax.random.split(key)

    # Small demo config consistent with ActorResNet(input_dim=4, layer_width=32,
    # n_layers=2, output_dim=4).
    batch, input_dim, layer_width, n_layers, output_dim = 256, 4, 32, 2, 4

    x = jax.random.normal(k_x, (batch, input_dim), dtype=jnp.float32)
    params = init_params(k_p, input_dim, layer_width, n_layers, output_dim)
    prepared = prepare_params(params)     # one-time padding + bf16 cast

    # Default tiling (single grid step on single-TC chips, even split on multi-TC) ...
    out_auto = jax.block_until_ready(actor_resnet_forward(x, prepared))
    # ... and an explicitly tiled run to exercise the pipelined multi-tile path.
    out_tiled = jax.block_until_ready(actor_resnet_forward(x, prepared, batch_tile=64))

    use_bf16_act = _use_bf16_activations()
    ref = reference_forward(x, params, use_bf16_act)
    tol = 2e-2 if use_bf16_act else 2e-3
    for out in (out_auto, out_tiled):
        assert out.shape == (batch, output_dim)
        err = float(jnp.max(jnp.abs(out - ref)))
        assert jnp.allclose(out, ref, atol=tol, rtol=tol), f"max abs err = {err}"
        assert jnp.allclose(jnp.sum(out, axis=-1), jnp.ones((batch,)), atol=1e-3)

    print("KERNEL_OK")
</pallas_src>

<mosaic_0001>
module attributes {stable_mosaic.version = 11 : i64} {
  func.func @_actor_resnet_kernel(%arg0: i32, %arg1: memref<256x128xbf16, #tpu.memory_space<vmem>>, %arg2: memref<128x128xbf16, #tpu.memory_space<vmem>>, %arg3: memref<1x128xf32, #tpu.memory_space<vmem>>, %arg4: memref<2x2x128x128xbf16, #tpu.memory_space<vmem>>, %arg5: memref<2x2x1x128xf32, #tpu.memory_space<vmem>>, %arg6: memref<128x128xbf16, #tpu.memory_space<vmem>>, %arg7: memref<1x128xf32, #tpu.memory_space<vmem>>, %arg8: memref<256x128xf32, #tpu.memory_space<vmem>>) attributes {dimension_semantics = [#tpu.dimension_semantics<parallel>], iteration_bounds = array<i64: 1>, scalar_prefetch = 0 : i64, scratch_operands = 0 : i64, tpu.core_type = #tpu.core_type<tc>, window_params = [{transform_indices = @transform_0, window_bounds = array<i64: 256, 128>}, {pipeline_mode = #tpu.pipeline_mode<synchronous>, transform_indices = @transform_1, window_bounds = array<i64: 128, 128>}, {pipeline_mode = #tpu.pipeline_mode<synchronous>, transform_indices = @transform_2, window_bounds = array<i64: 1, 128>}, {pipeline_mode = #tpu.pipeline_mode<synchronous>, transform_indices = @transform_3, window_bounds = array<i64: 2, 2, 128, 128>}, {pipeline_mode = #tpu.pipeline_mode<synchronous>, transform_indices = @transform_4, window_bounds = array<i64: 2, 2, 1, 128>}, {pipeline_mode = #tpu.pipeline_mode<synchronous>, transform_indices = @transform_5, window_bounds = array<i64: 128, 128>}, {pipeline_mode = #tpu.pipeline_mode<synchronous>, transform_indices = @transform_6, window_bounds = array<i64: 1, 128>}, {transform_indices = @transform_7, window_bounds = array<i64: 256, 128>}]} {
    %c0 = arith.constant 0 : index
    %c0_0 = arith.constant 0 : index
    %0 = vector.load %arg1[%c0, %c0_0] : memref<256x128xbf16, #tpu.memory_space<vmem>>, vector<256x128xbf16>
    %c0_1 = arith.constant 0 : index
    %c0_2 = arith.constant 0 : index
    %1 = vector.load %arg2[%c0_1, %c0_2] : memref<128x128xbf16, #tpu.memory_space<vmem>>, vector<128x128xbf16>
    %cst = arith.constant dense<0.000000e+00> : vector<256x128xf32>
    %2 = tpu.matmul %0, %1, %cst {dimension_numbers = #tpu.dot_dimension_numbers<[1], [0], [0], [1], [0, 0, 1, 1], [], []>} : vector<256x128xbf16>, vector<128x128xbf16>, vector<256x128xf32> -> vector<256x128xf32>
    %c0_3 = arith.constant 0 : index
    %c0_4 = arith.constant 0 : index
    %3 = vector.load %arg3[%c0_3, %c0_4] : memref<1x128xf32, #tpu.memory_space<vmem>>, vector<1x128xf32>
    %4 = vector.broadcast %3 : vector<1x128xf32> to vector<256x128xf32>
    %5 = arith.addf %2, %4 : vector<256x128xf32>
    %6 = math.tanh %5 : vector<256x128xf32>
    %c0_5 = arith.constant 0 : index
    %c0_6 = arith.constant 0 : index
    %c0_7 = arith.constant 0 : index
    %c0_8 = arith.constant 0 : index
    %7 = vector.load %arg4[%c0_5, %c0_6, %c0_7, %c0_8] : memref<2x2x128x128xbf16, #tpu.memory_space<vmem>>, vector<1x1x128x128xbf16>
    %8 = vector.shape_cast %7 : vector<1x1x128x128xbf16> to vector<128x128xbf16>
    %c0_9 = arith.constant 0 : index
    %c0_10 = arith.constant 0 : index
    %c0_11 = arith.constant 0 : index
    %c0_12 = arith.constant 0 : index
    %9 = vector.load %arg5[%c0_9, %c0_10, %c0_11, %c0_12] : memref<2x2x1x128xf32, #tpu.memory_space<vmem>>, vector<1x1x1x128xf32>
    %10 = vector.shape_cast %9 : vector<1x1x1x128xf32> to vector<1x128xf32>
    %c0_13 = arith.constant 0 : index
    %c1 = arith.constant 1 : index
    %c0_14 = arith.constant 0 : index
    %c0_15 = arith.constant 0 : index
    %11 = vector.load %arg4[%c0_13, %c1, %c0_14, %c0_15] : memref<2x2x128x128xbf16, #tpu.memory_space<vmem>>, vector<1x1x128x128xbf16>
    %12 = vector.shape_cast %11 : vector<1x1x128x128xbf16> to vector<128x128xbf16>
    %c0_16 = arith.constant 0 : index
    %c1_17 = arith.constant 1 : index
    %c0_18 = arith.constant 0 : index
    %c0_19 = arith.constant 0 : index
    %13 = vector.load %arg5[%c0_16, %c1_17, %c0_18, %c0_19] : memref<2x2x1x128xf32, #tpu.memory_space<vmem>>, vector<1x1x1x128xf32>
    %14 = vector.shape_cast %13 : vector<1x1x1x128xf32> to vector<1x128xf32>
    %15 = arith.truncf %6 : vector<256x128xf32> to vector<256x128xbf16>
    %cst_20 = arith.constant dense<0.000000e+00> : vector<256x128xf32>
    %16 = tpu.matmul %15, %8, %cst_20 {dimension_numbers = #tpu.dot_dimension_numbers<[1], [0], [0], [1], [0, 0, 1, 1], [], []>} : vector<256x128xbf16>, vector<128x128xbf16>, vector<256x128xf32> -> vector<256x128xf32>
    %17 = vector.broadcast %10 : vector<1x128xf32> to vector<256x128xf32>
    %18 = arith.addf %16, %17 : vector<256x128xf32>
    %19 = math.tanh %18 : vector<256x128xf32>
    %20 = arith.truncf %19 : vector<256x128xf32> to vector<256x128xbf16>
    %cst_21 = arith.constant dense<0.000000e+00> : vector<256x128xf32>
    %21 = tpu.matmul %20, %12, %cst_21 {dimension_numbers = #tpu.dot_dimension_numbers<[1], [0], [0], [1], [0, 0, 1, 1], [], []>} : vector<256x128xbf16>, vector<128x128xbf16>, vector<256x128xf32> -> vector<256x128xf32>
    %22 = vector.broadcast %14 : vector<1x128xf32> to vector<256x128xf32>
    %23 = arith.addf %21, %22 : vector<256x128xf32>
    %24 = math.tanh %23 : vector<256x128xf32>
    %25 = arith.addf %6, %24 : vector<256x128xf32>
    %c1_22 = arith.constant 1 : index
    %c0_23 = arith.constant 0 : index
    %c0_24 = arith.constant 0 : index
    %c0_25 = arith.constant 0 : index
    %26 = vector.load %arg4[%c1_22, %c0_23, %c0_24, %c0_25] : memref<2x2x128x128xbf16, #tpu.memory_space<vmem>>, vector<1x1x128x128xbf16>
    %27 = vector.shape_cast %26 : vector<1x1x128x128xbf16> to vector<128x128xbf16>
    %c1_26 = arith.constant 1 : index
    %c0_27 = arith.constant 0 : index
    %c0_28 = arith.constant 0 : index
    %c0_29 = arith.constant 0 : index
    %28 = vector.load %arg5[%c1_26, %c0_27, %c0_28, %c0_29] : memref<2x2x1x128xf32, #tpu.memory_space<vmem>>, vector<1x1x1x128xf32>
    %29 = vector.shape_cast %28 : vector<1x1x1x128xf32> to vector<1x128xf32>
    %c1_30 = arith.constant 1 : index
    %c1_31 = arith.constant 1 : index
    %c0_32 = arith.constant 0 : index
    %c0_33 = arith.constant 0 : index
    %30 = vector.load %arg4[%c1_30, %c1_31, %c0_32, %c0_33] : memref<2x2x128x128xbf16, #tpu.memory_space<vmem>>, vector<1x1x128x128xbf16>
    %31 = vector.shape_cast %30 : vector<1x1x128x128xbf16> to vector<128x128xbf16>
    %c1_34 = arith.constant 1 : index
    %c1_35 = arith.constant 1 : index
    %c0_36 = arith.constant 0 : index
    %c0_37 = arith.constant 0 : index
    %32 = vector.load %arg5[%c1_34, %c1_35, %c0_36, %c0_37] : memref<2x2x1x128xf32, #tpu.memory_space<vmem>>, vector<1x1x1x128xf32>
    %33 = vector.shape_cast %32 : vector<1x1x1x128xf32> to vector<1x128xf32>
    %34 = arith.truncf %25 : vector<256x128xf32> to vector<256x128xbf16>
    %cst_38 = arith.constant dense<0.000000e+00> : vector<256x128xf32>
    %35 = tpu.matmul %34, %27, %cst_38 {dimension_numbers = #tpu.dot_dimension_numbers<[1], [0], [0], [1], [0, 0, 1, 1], [], []>} : vector<256x128xbf16>, vector<128x128xbf16>, vector<256x128xf32> -> vector<256x128xf32>
    %36 = vector.broadcast %29 : vector<1x128xf32> to vector<256x128xf32>
    %37 = arith.addf %35, %36 : vector<256x128xf32>
    %38 = math.tanh %37 : vector<256x128xf32>
    %39 = arith.truncf %38 : vector<256x128xf32> to vector<256x128xbf16>
    %cst_39 = arith.constant dense<0.000000e+00> : vector<256x128xf32>
    %40 = tpu.matmul %39, %31, %cst_39 {dimension_numbers = #tpu.dot_dimension_numbers<[1], [0], [0], [1], [0, 0, 1, 1], [], []>} : vector<256x128xbf16>, vector<128x128xbf16>, vector<256x128xf32> -> vector<256x128xf32>
    %41 = vector.broadcast %33 : vector<1x128xf32> to vector<256x128xf32>
    %42 = arith.addf %40, %41 : vector<256x128xf32>
    %43 = math.tanh %42 : vector<256x128xf32>
    %44 = arith.addf %25, %43 : vector<256x128xf32>
    %45 = arith.truncf %44 : vector<256x128xf32> to vector<256x128xbf16>
    %c0_40 = arith.constant 0 : index
    %c0_41 = arith.constant 0 : index
    %46 = vector.load %arg6[%c0_40, %c0_41] : memref<128x128xbf16, #tpu.memory_space<vmem>>, vector<128x128xbf16>
    %cst_42 = arith.constant dense<0.000000e+00> : vector<256x128xf32>
    %47 = tpu.matmul %45, %46, %cst_42 {dimension_numbers = #tpu.dot_dimension_numbers<[1], [0], [0], [1], [0, 0, 1, 1], [], []>} : vector<256x128xbf16>, vector<128x128xbf16>, vector<256x128xf32> -> vector<256x128xf32>
    %c0_43 = arith.constant 0 : index
    %c0_44 = arith.constant 0 : index
    %48 = vector.load %arg7[%c0_43, %c0_44] : memref<1x128xf32, #tpu.memory_space<vmem>>, vector<1x128xf32>
    %49 = vector.broadcast %48 : vector<1x128xf32> to vector<256x128xf32>
    %50 = arith.addf %47, %49 : vector<256x128xf32>
    %cst_45 = arith.constant dense<0xFF800000> : vector<256xf32>
    %51 = vector.multi_reduction <maximumf>, %50, %cst_45 [1] : vector<256x128xf32> to vector<256xf32>
    %52 = vector.shape_cast %51 : vector<256xf32> to vector<256x1xf32>
    %53 = vector.broadcast %52 : vector<256x1xf32> to vector<256x128xf32>
    %54 = arith.subf %50, %53 : vector<256x128xf32>
    %55 = math.exp %54 : vector<256x128xf32>
    %cst_46 = arith.constant dense<0.000000e+00> : vector<256xf32>
    %56 = vector.multi_reduction <add>, %55, %cst_46 [1] : vector<256x128xf32> to vector<256xf32>
    %57 = vector.shape_cast %56 : vector<256xf32> to vector<256x1xf32>
    %58 = tpu.reciprocal %57 {approx = true} : vector<256x1xf32> -> vector<256x1xf32>
    %59 = arith.mulf %57, %58 : vector<256x1xf32>
    %cst_47 = arith.constant 2.000000e+00 : f32
    %60 = vector.broadcast %cst_47 : f32 to vector<256x1xf32>
    %61 = arith.subf %60, %59 : vector<256x1xf32>
    %62 = arith.mulf %58, %61 : vector<256x1xf32>
    %63 = vector.broadcast %62 : vector<256x1xf32> to vector<256x128xf32>
    %64 = arith.mulf %55, %63 : vector<256x128xf32>
    %c0_48 = arith.constant 0 : index
    %c0_49 = arith.constant 0 : index
    %65 = vector.load %arg8[%c0_48, %c0_49] : memref<256x128xf32, #tpu.memory_space<vmem>>, vector<256x128xf32>
    tpu.vector_store %arg8[%c0_48, %c0_49], %64 {strides = array<i32>} : memref<256x128xf32, #tpu.memory_space<vmem>>, vector<256x128xf32>,
    return
  }
  func.func @transform_0(%arg0: i32) -> (i32, i32) {
    %c0_i32 = arith.constant 0 : i32
    %c0_i32_0 = arith.constant 0 : i32
    return %arg0, %c0_i32 : i32, i32
  }
  func.func @transform_1(%arg0: i32) -> (i32, i32) {
    %c0_i32 = arith.constant 0 : i32
    %c0_i32_0 = arith.constant 0 : i32
    %c0_i32_1 = arith.constant 0 : i32
    return %c0_i32, %c0_i32_0 : i32, i32
  }
  func.func @transform_2(%arg0: i32) -> (i32, i32) {
    %c0_i32 = arith.constant 0 : i32
    %c0_i32_0 = arith.constant 0 : i32
    %c0_i32_1 = arith.constant 0 : i32
    return %c0_i32, %c0_i32_0 : i32, i32
  }
  func.func @transform_3(%arg0: i32) -> (i32, i32, i32, i32) {
    %c0_i32 = arith.constant 0 : i32
    %c0_i32_0 = arith.constant 0 : i32
    %c0_i32_1 = arith.constant 0 : i32
    %c0_i32_2 = arith.constant 0 : i32
    %c0_i32_3 = arith.constant 0 : i32
    return %c0_i32, %c0_i32_0, %c0_i32_1, %c0_i32_2 : i32, i32, i32, i32
  }
  func.func @transform_4(%arg0: i32) -> (i32, i32, i32, i32) {
    %c0_i32 = arith.constant 0 : i32
    %c0_i32_0 = arith.constant 0 : i32
    %c0_i32_1 = arith.constant 0 : i32
    %c0_i32_2 = arith.constant 0 : i32
    %c0_i32_3 = arith.constant 0 : i32
    return %c0_i32, %c0_i32_0, %c0_i32_1, %c0_i32_2 : i32, i32, i32, i32
  }
  func.func @transform_5(%arg0: i32) -> (i32, i32) {
    %c0_i32 = arith.constant 0 : i32
    %c0_i32_0 = arith.constant 0 : i32
    %c0_i32_1 = arith.constant 0 : i32
    return %c0_i32, %c0_i32_0 : i32, i32
  }
  func.func @transform_6(%arg0: i32) -> (i32, i32) {
    %c0_i32 = arith.constant 0 : i32
    %c0_i32_0 = arith.constant 0 : i32
    %c0_i32_1 = arith.constant 0 : i32
    return %c0_i32, %c0_i32_0 : i32, i32
  }
  func.func @transform_7(%arg0: i32) -> (i32, i32) {
    %c0_i32 = arith.constant 0 : i32
    %c0_i32_0 = arith.constant 0 : i32
    return %arg0, %c0_i32 : i32, i32
  }
}

module attributes {stable_mosaic.version = 11 : i64} {
  func.func @_actor_resnet_kernel(%arg0: i32, %arg1: memref<256x128xbf16, #tpu.memory_space<vmem>>, %arg2: memref<128x128xbf16, #tpu.memory_space<vmem>>, %arg3: memref<1x128xf32, #tpu.memory_space<vmem>>, %arg4: memref<2x2x128x128xbf16, #tpu.memory_space<vmem>>, %arg5: memref<2x2x1x128xf32, #tpu.memory_space<vmem>>, %arg6: memref<128x128xbf16, #tpu.memory_space<vmem>>, %arg7: memref<1x128xf32, #tpu.memory_space<vmem>>, %arg8: memref<256x128xf32, #tpu.memory_space<vmem>>) attributes {dimension_semantics = [#tpu.dimension_semantics<parallel>], iteration_bounds = array<i64: 1>, scalar_prefetch = 0 : i64, scratch_operands = 0 : i64, tpu.core_type = #tpu.core_type<tc>, window_params = [{transform_indices = @transform_0, window_bounds = array<i64: 256, 128>}, {pipeline_mode = #tpu.pipeline_mode<synchronous>, transform_indices = @transform_1, window_bounds = array<i64: 128, 128>}, {pipeline_mode = #tpu.pipeline_mode<synchronous>, transform_indices = @transform_2, window_bounds = array<i64: 1, 128>}, {pipeline_mode = #tpu.pipeline_mode<synchronous>, transform_indices = @transform_3, window_bounds = array<i64: 2, 2, 128, 128>}, {pipeline_mode = #tpu.pipeline_mode<synchronous>, transform_indices = @transform_4, window_bounds = array<i64: 2, 2, 1, 128>}, {pipeline_mode = #tpu.pipeline_mode<synchronous>, transform_indices = @transform_5, window_bounds = array<i64: 128, 128>}, {pipeline_mode = #tpu.pipeline_mode<synchronous>, transform_indices = @transform_6, window_bounds = array<i64: 1, 128>}, {transform_indices = @transform_7, window_bounds = array<i64: 256, 128>}]} {
    %c0 = arith.constant 0 : index
    %c0_0 = arith.constant 0 : index
    %0 = vector.load %arg1[%c0, %c0_0] : memref<256x128xbf16, #tpu.memory_space<vmem>>, vector<256x128xbf16>
    %c0_1 = arith.constant 0 : index
    %c0_2 = arith.constant 0 : index
    %1 = vector.load %arg2[%c0_1, %c0_2] : memref<128x128xbf16, #tpu.memory_space<vmem>>, vector<128x128xbf16>
    %cst = arith.constant dense<0.000000e+00> : vector<256x128xf32>
    %2 = tpu.matmul %0, %1, %cst {dimension_numbers = #tpu.dot_dimension_numbers<[1], [0], [0], [1], [0, 0, 1, 1], [], []>} : vector<256x128xbf16>, vector<128x128xbf16>, vector<256x128xf32> -> vector<256x128xf32>
    %c0_3 = arith.constant 0 : index
    %c0_4 = arith.constant 0 : index
    %3 = vector.load %arg3[%c0_3, %c0_4] : memref<1x128xf32, #tpu.memory_space<vmem>>, vector<1x128xf32>
    %4 = vector.broadcast %3 : vector<1x128xf32> to vector<256x128xf32>
    %5 = arith.addf %2, %4 : vector<256x128xf32>
    %6 = math.tanh %5 : vector<256x128xf32>
    %c0_5 = arith.constant 0 : index
    %c0_6 = arith.constant 0 : index
    %c0_7 = arith.constant 0 : index
    %c0_8 = arith.constant 0 : index
    %7 = vector.load %arg4[%c0_5, %c0_6, %c0_7, %c0_8] : memref<2x2x128x128xbf16, #tpu.memory_space<vmem>>, vector<1x1x128x128xbf16>
    %8 = vector.shape_cast %7 : vector<1x1x128x128xbf16> to vector<128x128xbf16>
    %c0_9 = arith.constant 0 : index
    %c0_10 = arith.constant 0 : index
    %c0_11 = arith.constant 0 : index
    %c0_12 = arith.constant 0 : index
    %9 = vector.load %arg5[%c0_9, %c0_10, %c0_11, %c0_12] : memref<2x2x1x128xf32, #tpu.memory_space<vmem>>, vector<1x1x1x128xf32>
    %10 = vector.shape_cast %9 : vector<1x1x1x128xf32> to vector<1x128xf32>
    %c0_13 = arith.constant 0 : index
    %c1 = arith.constant 1 : index
    %c0_14 = arith.constant 0 : index
    %c0_15 = arith.constant 0 : index
    %11 = vector.load %arg4[%c0_13, %c1, %c0_14, %c0_15] : memref<2x2x128x128xbf16, #tpu.memory_space<vmem>>, vector<1x1x128x128xbf16>
    %12 = vector.shape_cast %11 : vector<1x1x128x128xbf16> to vector<128x128xbf16>
    %c0_16 = arith.constant 0 : index
    %c1_17 = arith.constant 1 : index
    %c0_18 = arith.constant 0 : index
    %c0_19 = arith.constant 0 : index
    %13 = vector.load %arg5[%c0_16, %c1_17, %c0_18, %c0_19] : memref<2x2x1x128xf32, #tpu.memory_space<vmem>>, vector<1x1x1x128xf32>
    %14 = vector.shape_cast %13 : vector<1x1x1x128xf32> to vector<1x128xf32>
    %15 = arith.truncf %6 : vector<256x128xf32> to vector<256x128xbf16>
    %cst_20 = arith.constant dense<0.000000e+00> : vector<256x128xf32>
    %16 = tpu.matmul %15, %8, %cst_20 {dimension_numbers = #tpu.dot_dimension_numbers<[1], [0], [0], [1], [0, 0, 1, 1], [], []>} : vector<256x128xbf16>, vector<128x128xbf16>, vector<256x128xf32> -> vector<256x128xf32>
    %17 = vector.broadcast %10 : vector<1x128xf32> to vector<256x128xf32>
    %18 = arith.addf %16, %17 : vector<256x128xf32>
    %19 = math.tanh %18 : vector<256x128xf32>
    %20 = arith.truncf %19 : vector<256x128xf32> to vector<256x128xbf16>
    %cst_21 = arith.constant dense<0.000000e+00> : vector<256x128xf32>
    %21 = tpu.matmul %20, %12, %cst_21 {dimension_numbers = #tpu.dot_dimension_numbers<[1], [0], [0], [1], [0, 0, 1, 1], [], []>} : vector<256x128xbf16>, vector<128x128xbf16>, vector<256x128xf32> -> vector<256x128xf32>
    %22 = vector.broadcast %14 : vector<1x128xf32> to vector<256x128xf32>
    %23 = arith.addf %21, %22 : vector<256x128xf32>
    %24 = math.tanh %23 : vector<256x128xf32>
    %25 = arith.addf %6, %24 : vector<256x128xf32>
    %c1_22 = arith.constant 1 : index
    %c0_23 = arith.constant 0 : index
    %c0_24 = arith.constant 0 : index
    %c0_25 = arith.constant 0 : index
    %26 = vector.load %arg4[%c1_22, %c0_23, %c0_24, %c0_25] : memref<2x2x128x128xbf16, #tpu.memory_space<vmem>>, vector<1x1x128x128xbf16>
    %27 = vector.shape_cast %26 : vector<1x1x128x128xbf16> to vector<128x128xbf16>
    %c1_26 = arith.constant 1 : index
    %c0_27 = arith.constant 0 : index
    %c0_28 = arith.constant 0 : index
    %c0_29 = arith.constant 0 : index
    %28 = vector.load %arg5[%c1_26, %c0_27, %c0_28, %c0_29] : memref<2x2x1x128xf32, #tpu.memory_space<vmem>>, vector<1x1x1x128xf32>
    %29 = vector.shape_cast %28 : vector<1x1x1x128xf32> to vector<1x128xf32>
    %c1_30 = arith.constant 1 : index
    %c1_31 = arith.constant 1 : index
    %c0_32 = arith.constant 0 : index
    %c0_33 = arith.constant 0 : index
    %30 = vector.load %arg4[%c1_30, %c1_31, %c0_32, %c0_33] : memref<2x2x128x128xbf16, #tpu.memory_space<vmem>>, vector<1x1x128x128xbf16>
    %31 = vector.shape_cast %30 : vector<1x1x128x128xbf16> to vector<128x128xbf16>
    %c1_34 = arith.constant 1 : index
    %c1_35 = arith.constant 1 : index
    %c0_36 = arith.constant 0 : index
    %c0_37 = arith.constant 0 : index
    %32 = vector.load %arg5[%c1_34, %c1_35, %c0_36, %c0_37] : memref<2x2x1x128xf32, #tpu.memory_space<vmem>>, vector<1x1x1x128xf32>
    %33 = vector.shape_cast %32 : vector<1x1x1x128xf32> to vector<1x128xf32>
    %34 = arith.truncf %25 : vector<256x128xf32> to vector<256x128xbf16>
    %cst_38 = arith.constant dense<0.000000e+00> : vector<256x128xf32>
    %35 = tpu.matmul %34, %27, %cst_38 {dimension_numbers = #tpu.dot_dimension_numbers<[1], [0], [0], [1], [0, 0, 1, 1], [], []>} : vector<256x128xbf16>, vector<128x128xbf16>, vector<256x128xf32> -> vector<256x128xf32>
    %36 = vector.broadcast %29 : vector<1x128xf32> to vector<256x128xf32>
    %37 = arith.addf %35, %36 : vector<256x128xf32>
    %38 = math.tanh %37 : vector<256x128xf32>
    %39 = arith.truncf %38 : vector<256x128xf32> to vector<256x128xbf16>
    %cst_39 = arith.constant dense<0.000000e+00> : vector<256x128xf32>
    %40 = tpu.matmul %39, %31, %cst_39 {dimension_numbers = #tpu.dot_dimension_numbers<[1], [0], [0], [1], [0, 0, 1, 1], [], []>} : vector<256x128xbf16>, vector<128x128xbf16>, vector<256x128xf32> -> vector<256x128xf32>
    %41 = vector.broadcast %33 : vector<1x128xf32> to vector<256x128xf32>
    %42 = arith.addf %40, %41 : vector<256x128xf32>
    %43 = math.tanh %42 : vector<256x128xf32>
    %44 = arith.addf %25, %43 : vector<256x128xf32>
    %45 = arith.truncf %44 : vector<256x128xf32> to vector<256x128xbf16>
    %c0_40 = arith.constant 0 : index
    %c0_41 = arith.constant 0 : index
    %46 = vector.load %arg6[%c0_40, %c0_41] : memref<128x128xbf16, #tpu.memory_space<vmem>>, vector<128x128xbf16>
    %cst_42 = arith.constant dense<0.000000e+00> : vector<256x128xf32>
    %47 = tpu.matmul %45, %46, %cst_42 {dimension_numbers = #tpu.dot_dimension_numbers<[1], [0], [0], [1], [0, 0, 1, 1], [], []>} : vector<256x128xbf16>, vector<128x128xbf16>, vector<256x128xf32> -> vector<256x128xf32>
    %c0_43 = arith.constant 0 : index
    %c0_44 = arith.constant 0 : index
    %48 = vector.load %arg7[%c0_43, %c0_44] : memref<1x128xf32, #tpu.memory_space<vmem>>, vector<1x128xf32>
    %49 = vector.broadcast %48 : vector<1x128xf32> to vector<256x128xf32>
    %50 = arith.addf %47, %49 : vector<256x128xf32>
    %cst_45 = arith.constant dense<0xFF800000> : vector<256xf32>
    %51 = vector.multi_reduction <maximumf>, %50, %cst_45 [1] : vector<256x128xf32> to vector<256xf32>
    %52 = vector.shape_cast %51 : vector<256xf32> to vector<256x1xf32>
    %53 = vector.broadcast %52 : vector<256x1xf32> to vector<256x128xf32>
    %54 = arith.subf %50, %53 : vector<256x128xf32>
    %55 = math.exp %54 : vector<256x128xf32>
    %cst_46 = arith.constant dense<0.000000e+00> : vector<256xf32>
    %56 = vector.multi_reduction <add>, %55, %cst_46 [1] : vector<256x128xf32> to vector<256xf32>
    %57 = vector.shape_cast %56 : vector<256xf32> to vector<256x1xf32>
    %58 = tpu.reciprocal %57 {approx = true} : vector<256x1xf32> -> vector<256x1xf32>
    %59 = arith.mulf %57, %58 : vector<256x1xf32>
    %cst_47 = arith.constant 2.000000e+00 : f32
    %60 = vector.broadcast %cst_47 : f32 to vector<256x1xf32>
    %61 = arith.subf %60, %59 : vector<256x1xf32>
    %62 = arith.mulf %58, %61 : vector<256x1xf32>
    %63 = vector.broadcast %62 : vector<256x1xf32> to vector<256x128xf32>
    %64 = arith.mulf %55, %63 : vector<256x128xf32>
    %c0_48 = arith.constant 0 : index
    %c0_49 = arith.constant 0 : index
    %65 = vector.load %arg8[%c0_48, %c0_49] : memref<256x128xf32, #tpu.memory_space<vmem>>, vector<256x128xf32>
    tpu.vector_store %arg8[%c0_48, %c0_49], %64 {strides = array<i32>} : memref<256x128xf32, #tpu.memory_space<vmem>>, vector<256x128xf32>,
    return
  }
  func.func @transform_0(%arg0: i32) -> (i32, i32) {
    %c0_i32 = arith.constant 0 : i32
    %c0_i32_0 = arith.constant 0 : i32
    return %arg0, %c0_i32 : i32, i32
  }
  func.func @transform_1(%arg0: i32) -> (i32, i32) {
    %c0_i32 = arith.constant 0 : i32
    %c0_i32_0 = arith.constant 0 : i32
    %c0_i32_1 = arith.constant 0 : i32
    return %c0_i32, %c0_i32_0 : i32, i32
  }
  func.func @transform_2(%arg0: i32) -> (i32, i32) {
    %c0_i32 = arith.constant 0 : i32
    %c0_i32_0 = arith.constant 0 : i32
    %c0_i32_1 = arith.constant 0 : i32
    return %c0_i32, %c0_i32_0 : i32, i32
  }
  func.func @transform_3(%arg0: i32) -> (i32, i32, i32, i32) {
    %c0_i32 = arith.constant 0 : i32
    %c0_i32_0 = arith.constant 0 : i32
    %c0_i32_1 = arith.constant 0 : i32
    %c0_i32_2 = arith.constant 0 : i32
    %c0_i32_3 = arith.constant 0 : i32
    return %c0_i32, %c0_i32_0, %c0_i32_1, %c0_i32_2 : i32, i32, i32, i32
  }
  func.func @transform_4(%arg0: i32) -> (i32, i32, i32, i32) {
    %c0_i32 = arith.constant 0 : i32
    %c0_i32_0 = arith.constant 0 : i32
    %c0_i32_1 = arith.constant 0 : i32
    %c0_i32_2 = arith.constant 0 : i32
    %c0_i32_3 = arith.constant 0 : i32
    return %c0_i32, %c0_i32_0, %c0_i32_1, %c0_i32_2 : i32, i32, i32, i32
  }
  func.func @transform_5(%arg0: i32) -> (i32, i32) {
    %c0_i32 = arith.constant 0 : i32
    %c0_i32_0 = arith.constant 0 : i32
    %c0_i32_1 = arith.constant 0 : i32
    return %c0_i32, %c0_i32_0 : i32, i32
  }
  func.func @transform_6(%arg0: i32) -> (i32, i32) {
    %c0_i32 = arith.constant 0 : i32
    %c0_i32_0 = arith.constant 0 : i32
    %c0_i32_1 = arith.constant 0 : i32
    return %c0_i32, %c0_i32_0 : i32, i32
  }
  func.func @transform_7(%arg0: i32) -> (i32, i32) {
    %c0_i32 = arith.constant 0 : i32
    %c0_i32_0 = arith.constant 0 : i32
    return %arg0, %c0_i32 : i32, i32
  }
}

</mosaic_0001>

<llo_original>
// kernel: tpu_custom_call.1
$region0: #{tpu_custom_call.1}
  #allocation0 [shape = 'u32[]', space=smem, size = 0x4, offset = 0x4, fixed_abs, tag = 'smem constant byte address 0x4 - core index']
  #allocation1 [shape = 'u32[144,128]{1,0:T(1,128)}', space=vmem, size = 0x12000, scoped, tag = 'internal scratch']
  %s0 = inlined_call_operand.hbm [shape: bf16[256,128], index: 0, kind: input, shape index: {}]
  %s1 = inlined_call_operand.hbm [shape: bf16[128,128], index: 1, kind: input, shape index: {}]
  %s2 = inlined_call_operand.vmem [shape: f32[1,128], index: 2, kind: input, shape index: {}]
  %s3 = inlined_call_operand.hbm [shape: bf16[2,2,128,128], index: 3, kind: input, shape index: {}]
  %s4 = inlined_call_operand.vmem [shape: f32[2,2,1,128], index: 4, kind: input, shape index: {}]
  %s5 = inlined_call_operand.hbm [shape: bf16[128,128], index: 5, kind: input, shape index: {}]
  %s6 = inlined_call_operand.vmem [shape: f32[1,128], index: 6, kind: input, shape index: {}]
  %s7 = inlined_call_operand.hbm [shape: f32[256,128], index: 7, kind: output, shape index: {}]
  %s8 = sld [smem:[#allocation0]]
  $region54: #{tpu_custom_call.1} parent=0
    _
  %s10 = ssub.s32 1, %s8
  %s11 = scalar_select 0, %s10, %s8
  $region1: #{tpu_custom_call.1} parent=0
    #allocation2 [shape = 'u8[65536]{0}', space=vmem, size = 0x10000, scoped, tag = 'input window, operand 0, single buffered']
    #allocation3 [shape = 's32[1]{0}', space=sflag, size = 0x4, scoped, tag = 'scoped memory for tpu_custom_call.1']
    #allocation4 [shape = 's32[1]{0}', space=sflag, size = 0x4, scoped, tag = 'scoped memory for tpu_custom_call.1']
    #allocation5 [shape = 'u8[32768]{0}', space=vmem, size = 0x8000, scoped, tag = 'input window, operand 1, single buffered']
    #allocation6 [shape = 's32[1]{0}', space=sflag, size = 0x4, scoped, tag = 'scoped memory for tpu_custom_call.1']
    #allocation7 [shape = 'u8[131072]{0}', space=vmem, size = 0x20000, scoped, tag = 'input window, operand 3, single buffered']
    #allocation8 [shape = 'u8[32768]{0}', space=vmem, size = 0x8000, scoped, tag = 'input window, operand 5, single buffered']
    #allocation9 [shape = 's32[1]{0}', space=sflag, size = 0x4, scoped, tag = 'scoped memory for tpu_custom_call.1']
    #allocation10 [shape = 'u8[131072]{0}', space=vmem, size = 0x20000, scoped, tag = 'output window, operand 0, single buffered']
    %12 = vsyncpa [#allocation3], 0
    %13 = vsyncpa [#allocation6], 0
    %14 = vsyncpa [#allocation9], 0
    %15 = vsyncpa [#allocation4], 0
    // Predicated region
    $region2: #{tpu_custom_call.1} parent=1 // pred_check
      _
    $region3: #{tpu_custom_call.1} parent=1 // pred_check_branch
      %17 = sbr.rel (0) target = $region5
    $region4: #{tpu_custom_call.1} parent=1 // pred_region
      %s19 = ssub.s32 2048, 2048
      %20 = vsyncadd [#allocation3], %s19
      %s21 = sshll.u32 [#allocation2], 4
      %s22 = int_to_ptr.vmem [resolvable:$true] %s21
      %27 = dma.hbm_to_vmem [thread:$0]  %s0, 2048, %s22, [#allocation3], 64, 64, 4
    $region5: #{tpu_custom_call.1} parent=1 // pred_fallthru
      _
    // Predicated region
    $region6: #{tpu_custom_call.1} parent=1 // pred_check
      _
    $region7: #{tpu_custom_call.1} parent=1 // pred_check_branch
      %29 = sbr.rel (0) target = $region9
    $region8: #{tpu_custom_call.1} parent=1 // pred_region
      %s31 = ssub.s32 1024, 1024
      %32 = vsyncadd [#allocation6], %s31
      %s33 = sshll.u32 [#allocation5], 4
      %s34 = int_to_ptr.vmem [resolvable:$true] %s33
      %39 = dma.hbm_to_vmem [thread:$0]  %s1, 1024, %s34, [#allocation6], 64, 64, 4
    $region9: #{tpu_custom_call.1} parent=1 // pred_fallthru
      _
    // Predicated region
    $region10: #{tpu_custom_call.1} parent=1 // pred_check
      _
    $region11: #{tpu_custom_call.1} parent=1 // pred_check_branch
      %41 = sbr.rel (0) target = $region13
    $region12: #{tpu_custom_call.1} parent=1 // pred_region
      _
    $region13: #{tpu_custom_call.1} parent=1 // pred_fallthru
      _
    // Predicated region
    $region14: #{tpu_custom_call.1} parent=1 // pred_check
      _
    $region15: #{tpu_custom_call.1} parent=1 // pred_check_branch
      %43 = sbr.rel (0) target = $region17
    $region16: #{tpu_custom_call.1} parent=1 // pred_region
      %s45 = ssub.s32 4096, 4096
      %46 = vsyncadd [#allocation6], %s45
      %s47 = sshll.u32 [#allocation7], 4
      %s48 = int_to_ptr.vmem [resolvable:$true] %s47
      %53 = dma.hbm_to_vmem [thread:$0]  %s3, 4096, %s48, [#allocation6], 64, 64, 4
    $region17: #{tpu_custom_call.1} parent=1 // pred_fallthru
      _
    // Predicated region
    $region18: #{tpu_custom_call.1} parent=1 // pred_check
      _
    $region19: #{tpu_custom_call.1} parent=1 // pred_check_branch
      %55 = sbr.rel (0) target = $region21
    $region20: #{tpu_custom_call.1} parent=1 // pred_region
      _
    $region21: #{tpu_custom_call.1} parent=1 // pred_fallthru
      _
    // Predicated region
    $region22: #{tpu_custom_call.1} parent=1 // pred_check
      _
    $region23: #{tpu_custom_call.1} parent=1 // pred_check_branch
      %57 = sbr.rel (0) target = $region25
    $region24: #{tpu_custom_call.1} parent=1 // pred_region
      %s59 = ssub.s32 1024, 1024
      %60 = vsyncadd [#allocation9], %s59
      %s61 = sshll.u32 [#allocation8], 4
      %s62 = int_to_ptr.vmem [resolvable:$true] %s61
      %67 = dma.hbm_to_vmem [thread:$0]  %s5, 1024, %s62, [#allocation9], 64, 64, 4
    $region25: #{tpu_custom_call.1} parent=1 // pred_fallthru
      _
    // Predicated region
    $region26: #{tpu_custom_call.1} parent=1 // pred_check
      _
    $region27: #{tpu_custom_call.1} parent=1 // pred_check_branch
      %69 = sbr.rel (0) target = $region29
    $region28: #{tpu_custom_call.1} parent=1 // pred_region
      _
    $region29: #{tpu_custom_call.1} parent=1 // pred_fallthru
      _
    // Predicated region
    $region30: #{tpu_custom_call.1} parent=1 // pred_check
      _
    $region31: #{tpu_custom_call.1} parent=1 // pred_check_branch
      %71 = sbr.rel (0) target = $region33
    $region32: #{tpu_custom_call.1} parent=1 // pred_region
      %72 = dma.done [#allocation3], 2048
    $region33: #{tpu_custom_call.1} parent=1 // pred_fallthru
      _
    // Predicated region
    $region34: #{tpu_custom_call.1} parent=1 // pred_check
      _
    $region35: #{tpu_custom_call.1} parent=1 // pred_check_branch
      %74 = sbr.rel (0) target = $region37
    $region36: #{tpu_custom_call.1} parent=1 // pred_region
      %75 = dma.done [#allocation6], 1024
    $region37: #{tpu_custom_call.1} parent=1 // pred_fallthru
      _
    // Predicated region
    $region38: #{tpu_custom_call.1} parent=1 // pred_check
      _
    $region39: #{tpu_custom_call.1} parent=1 // pred_check_branch
      %77 = sbr.rel (0) target = $region41
    $region40: #{tpu_custom_call.1} parent=1 // pred_region
      %78 = dma.done [#allocation6], 4096
    $region41: #{tpu_custom_call.1} parent=1 // pred_fallthru
      _
    // Predicated region
    $region42: #{tpu_custom_call.1} parent=1 // pred_check
      _
    $region43: #{tpu_custom_call.1} parent=1 // pred_check_branch
      %80 = sbr.rel (0) target = $region45
    $region44: #{tpu_custom_call.1} parent=1 // pred_region
      %81 = dma.done [#allocation9], 1024
    $region45: #{tpu_custom_call.1} parent=1 // pred_fallthru
      _
    %v83 = vld [vmem:[#allocation2] sm:$0xf]
    %v84 = vld [vmem:[#allocation2 + $0x4] sm:$0xf]
    %v85 = vld [vmem:[#allocation2 + $0x8] sm:$0xf]
    %v86 = vld [vmem:[#allocation2 + $0xc] sm:$0xf]
    %v87 = vld [vmem:[#allocation2 + $0x10] sm:$0xf]
    %v88 = vld [vmem:[#allocation2 + $0x14] sm:$0xf]
    %v89 = vld [vmem:[#allocation2 + $0x18] sm:$0xf]
    %v90 = vld [vmem:[#allocation2 + $0x1c] sm:$0xf]
    %v91 = vld [vmem:[#allocation2 + $0x20] sm:$0xf]
    %v92 = vld [vmem:[#allocation2 + $0x24] sm:$0xf]
    %v93 = vld [vmem:[#allocation2 + $0x28] sm:$0xf]
    %v94 = vld [vmem:[#allocation2 + $0x2c] sm:$0xf]
    %v95 = vld [vmem:[#allocation2 + $0x30] sm:$0xf]
    %v96 = vld [vmem:[#allocation2 + $0x34] sm:$0xf]
    %v97 = vld [vmem:[#allocation2 + $0x38] sm:$0xf]
    %v98 = vld [vmem:[#allocation2 + $0x3c] sm:$0xf]
    %v99 = vld [vmem:[#allocation2 + $0x40] sm:$0xf]
    %v100 = vld [vmem:[#allocation2 + $0x44] sm:$0xf]
    %v101 = vld [vmem:[#allocation2 + $0x48] sm:$0xf]
    %v102 = vld [vmem:[#allocation2 + $0x4c] sm:$0xf]
    %v103 = vld [vmem:[#allocation2 + $0x50] sm:$0xf]
    %v104 = vld [vmem:[#allocation2 + $0x54] sm:$0xf]
    %v105 = vld [vmem:[#allocation2 + $0x58] sm:$0xf]
    %v106 = vld [vmem:[#allocation2 + $0x5c] sm:$0xf]
    %v107 = vld [vmem:[#allocation2 + $0x60] sm:$0xf]
    %v108 = vld [vmem:[#allocation2 + $0x64] sm:$0xf]
    %v109 = vld [vmem:[#allocation2 + $0x68] sm:$0xf]
    %v110 = vld [vmem:[#allocation2 + $0x6c] sm:$0xf]
    %v111 = vld [vmem:[#allocation2 + $0x70] sm:$0xf]
    %v112 = vld [vmem:[#allocation2 + $0x74] sm:$0xf]
    %v113 = vld [vmem:[#allocation2 + $0x78] sm:$0xf]
    %v114 = vld [vmem:[#allocation2 + $0x7c] sm:$0xf]
    %v115 = vld [vmem:[#allocation5] sm:$0xf]
    %v116 = vld [vmem:[#allocation5 + $0x4] sm:$0xf]
    %v117 = vld [vmem:[#allocation5 + $0x8] sm:$0xf]
    %v118 = vld [vmem:[#allocation5 + $0xc] sm:$0xf]
    %v119 = vld [vmem:[#allocation5 + $0x10] sm:$0xf]
    %v120 = vld [vmem:[#allocation5 + $0x14] sm:$0xf]
    %v121 = vld [vmem:[#allocation5 + $0x18] sm:$0xf]
    %v122 = vld [vmem:[#allocation5 + $0x1c] sm:$0xf]
    %v123 = vld [vmem:[#allocation5 + $0x20] sm:$0xf]
    %v124 = vld [vmem:[#allocation5 + $0x24] sm:$0xf]
    %v125 = vld [vmem:[#allocation5 + $0x28] sm:$0xf]
    %v126 = vld [vmem:[#allocation5 + $0x2c] sm:$0xf]
    %v127 = vld [vmem:[#allocation5 + $0x30] sm:$0xf]
    %v128 = vld [vmem:[#allocation5 + $0x34] sm:$0xf]
    %v129 = vld [vmem:[#allocation5 + $0x38] sm:$0xf]
    %v130 = vld [vmem:[#allocation5 + $0x3c] sm:$0xf]
    %v131 = vld [vmem:[%s2] sm:$0x1]
    %v133 = vlaneseq
    %v134 = vshrl.u32 %v133, 7
    %v135 = vsub.s32 0, %v134
    %v136 = vrot.slane %v131, %v135
    %v170 = vunpack.c.l.b16 %v83
    %v171 = vunpack.c.l.b16 %v84
    %v172 = vunpack.c.l.b16 %v85
    %v173 = vunpack.c.l.b16 %v86
    %v174 = vunpack.c.l.b16 %v87
    %v175 = vunpack.c.l.b16 %v88
    %v176 = vunpack.c.l.b16 %v89
    %v177 = vunpack.c.l.b16 %v90
    %v178 = vunpack.c.l.b16 %v91
    %v179 = vunpack.c.l.b16 %v92
    %v180 = vunpack.c.l.b16 %v93
    %v181 = vunpack.c.l.b16 %v94
    %v182 = vunpack.c.l.b16 %v95
    %v183 = vunpack.c.l.b16 %v96
    %v184 = vunpack.c.l.b16 %v97
    %v185 = vunpack.c.l.b16 %v98
    %v186 = vunpack.c.l.b16 %v99
    %v187 = vunpack.c.l.b16 %v100
    %v188 = vunpack.c.l.b16 %v101
    %v189 = vunpack.c.l.b16 %v102
    %v190 = vunpack.c.l.b16 %v103
    %v191 = vunpack.c.l.b16 %v104
    %v192 = vunpack.c.l.b16 %v105
    %v193 = vunpack.c.l.b16 %v106
    %v194 = vunpack.c.l.b16 %v107
    %v195 = vunpack.c.l.b16 %v108
    %v196 = vunpack.c.l.b16 %v109
    %v197 = vunpack.c.l.b16 %v110
    %v198 = vunpack.c.l.b16 %v111
    %v199 = vunpack.c.l.b16 %v112
    %v200 = vunpack.c.l.b16 %v113
    %v201 = vunpack.c.l.b16 %v114
    %v202 = vpack.c.b16 %v171, %v170
    %v203 = vpack.c.b16 %v173, %v172
    %v204 = vpack.c.b16 %v175, %v174
    %v205 = vpack.c.b16 %v177, %v176
    %v206 = vpack.c.b16 %v179, %v178
    %v207 = vpack.c.b16 %v181, %v180
    %v208 = vpack.c.b16 %v183, %v182
    %v209 = vpack.c.b16 %v185, %v184
    %v210 = vpack.c.b16 %v187, %v186
    %v211 = vpack.c.b16 %v189, %v188
    %v212 = vpack.c.b16 %v191, %v190
    %v213 = vpack.c.b16 %v193, %v192
    %v214 = vpack.c.b16 %v195, %v194
    %v215 = vpack.c.b16 %v197, %v196
    %v216 = vpack.c.b16 %v199, %v198
    %v217 = vpack.c.b16 %v201, %v200
    %v250 = vunpack.c.l.b16 %v115
    %v251 = vunpack.c.l.b16 %v116
    %v252 = vunpack.c.l.b16 %v117
    %v253 = vunpack.c.l.b16 %v118
    %v254 = vunpack.c.l.b16 %v119
    %v255 = vunpack.c.l.b16 %v120
    %v256 = vunpack.c.l.b16 %v121
    %v257 = vunpack.c.l.b16 %v122
    %v258 = vunpack.c.l.b16 %v123
    %v259 = vunpack.c.l.b16 %v124
    %v260 = vunpack.c.l.b16 %v125
    %v261 = vunpack.c.l.b16 %v126
    %v262 = vunpack.c.l.b16 %v127
    %v263 = vunpack.c.l.b16 %v128
    %v264 = vunpack.c.l.b16 %v129
    %v265 = vunpack.c.l.b16 %v130
    %v266 = vpack.c.b16 %v251, %v250
    %v267 = vpack.c.b16 %v253, %v252
    %v268 = vpack.c.b16 %v255, %v254
    %v269 = vpack.c.b16 %v257, %v256
    %v270 = vpack.c.b16 %v259, %v258
    %v271 = vpack.c.b16 %v261, %v260
    %v272 = vpack.c.b16 %v263, %v262
    %v273 = vpack.c.b16 %v265, %v264
    %282 = vmatprep.subr.bf16.mxu0 0
    %283 = vmatpush1.bf16.msra.mxu0 %v266
    %284 = vmatprep.subr.bf16.mxu0 0
    %285 = vmatpush1.bf16.msra.mxu0 %v267
    %286 = vmatprep.subr.bf16.mxu0 0
    %287 = vmatpush1.bf16.msra.mxu0 %v268
    %288 = vmatprep.subr.bf16.mxu0 0
    %289 = vmatpush1.bf16.msra.mxu0 %v269
    %290 = vmatprep.subr.bf16.mxu0 0
    %291 = vmatpush1.bf16.msra.mxu0 %v270
    %292 = vmatprep.subr.bf16.mxu0 0
    %293 = vmatpush1.bf16.msra.mxu0 %v271
    %294 = vmatprep.subr.bf16.mxu0 0
    %295 = vmatpush1.bf16.msra.mxu0 %v272
    %296 = vmatprep.subr.bf16.mxu0 0
    %297 = vmatpush1.bf16.msra.mxu0 %v273
    %298 = vmatprep.subr.bf16.mxu0 0
    %299 = vmatpush1.bf16.msra.mxu0 0
    %300 = vmatprep.subr.bf16.mxu0 0
    %301 = vmatpush1.bf16.msra.mxu0 0
    %302 = vmatprep.subr.bf16.mxu0 0
    %303 = vmatpush1.bf16.msra.mxu0 0
    %304 = vmatprep.subr.bf16.mxu0 0
    %305 = vmatpush1.bf16.msra.mxu0 0
    %306 = vmatprep.subr.bf16.mxu0 0
    %307 = vmatpush1.bf16.msra.mxu0 0
    %308 = vmatprep.subr.bf16.mxu0 0
    %309 = vmatpush1.bf16.msra.mxu0 0
    %310 = vmatprep.subr.bf16.mxu0 0
    %311 = vmatpush1.bf16.msra.mxu0 0
    %312 = vmatprep.subr.bf16.mxu0 0
    %313 = vmatpush1.bf16.msra.mxu0 0
    %314 = vmatprep.mubr.bf16.mxu0 0
    %315 = vmatmul.mubr.bf16.gmra.mrb[0].mxu0 %v202
    %v316 = vpop.f32.mrb[0].mxu0
    %v317 = vadd.f32 %v136, %v316
    %v318 = vpop.f32.mrb[0].mxu0
    %v319 = vpop.f32.mrb[0].mxu0
    %v320 = vadd.f32 %v136, %v319
    %v321 = vpop.f32.mrb[0].mxu0
    %322 = vmatprep.mubr.bf16.mxu0 0
    %323 = vmatmul.mubr.bf16.gmra.mrb[0].mxu0 %v203
    %v324 = vpop.f32.mrb[0].mxu0
    %v325 = vadd.f32 %v136, %v324
    %v326 = vpop.f32.mrb[0].mxu0
    %v327 = vpop.f32.mrb[0].mxu0
    %v328 = vadd.f32 %v136, %v327
    %v329 = vpop.f32.mrb[0].mxu0
    %330 = vmatprep.mubr.bf16.mxu0 0
    %331 = vmatmul.mubr.bf16.gmra.mrb[0].mxu0 %v204
    %v332 = vpop.f32.mrb[0].mxu0
    %v333 = vadd.f32 %v136, %v332
    %v334 = vpop.f32.mrb[0].mxu0
    %v335 = vpop.f32.mrb[0].mxu0
    %v336 = vadd.f32 %v136, %v335
    %v337 = vpop.f32.mrb[0].mxu0
    %338 = vmatprep.mubr.bf16.mxu0 0
    %339 = vmatmul.mubr.bf16.gmra.mrb[0].mxu0 %v205
    %v340 = vpop.f32.mrb[0].mxu0
    %v341 = vadd.f32 %v136, %v340
    %v342 = vpop.f32.mrb[0].mxu0
    %v343 = vpop.f32.mrb[0].mxu0
    %v344 = vadd.f32 %v136, %v343
    %v345 = vpop.f32.mrb[0].mxu0
    %346 = vmatprep.mubr.bf16.mxu0 0
    %347 = vmatmul.mubr.bf16.gmra.mrb[0].mxu0 %v206
    %v348 = vpop.f32.mrb[0].mxu0
    %v349 = vadd.f32 %v136, %v348
    %v350 = vpop.f32.mrb[0].mxu0
    %v351 = vpop.f32.mrb[0].mxu0
    %v352 = vadd.f32 %v136, %v351
    %v353 = vpop.f32.mrb[0].mxu0
    %354 = vmatprep.mubr.bf16.mxu0 0
    %355 = vmatmul.mubr.bf16.gmra.mrb[0].mxu0 %v207
    %v356 = vpop.f32.mrb[0].mxu0
    %v357 = vadd.f32 %v136, %v356
    %v358 = vpop.f32.mrb[0].mxu0
    %v359 = vpop.f32.mrb[0].mxu0
    %v360 = vadd.f32 %v136, %v359
    %v361 = vpop.f32.mrb[0].mxu0
    %362 = vmatprep.mubr.bf16.mxu0 0
    %363 = vmatmul.mubr.bf16.gmra.mrb[0].mxu0 %v208
    %v364 = vpop.f32.mrb[0].mxu0
    %v365 = vadd.f32 %v136, %v364
    %v366 = vpop.f32.mrb[0].mxu0
    %v367 = vpop.f32.mrb[0].mxu0
    %v368 = vadd.f32 %v136, %v367
    %v369 = vpop.f32.mrb[0].mxu0
    %370 = vmatprep.mubr.bf16.mxu0 0
    %371 = vmatmul.mubr.bf16.gmra.mrb[0].mxu0 %v209
    %v372 = vpop.f32.mrb[0].mxu0
    %v373 = vadd.f32 %v136, %v372
    %v374 = vpop.f32.mrb[0].mxu0
    %v375 = vpop.f32.mrb[0].mxu0
    %v376 = vadd.f32 %v136, %v375
    %v377 = vpop.f32.mrb[0].mxu0
    %378 = vmatprep.mubr.bf16.mxu0 0
    %379 = vmatmul.mubr.bf16.gmra.mrb[0].mxu0 %v210
    %v380 = vpop.f32.mrb[0].mxu0
    %v381 = vadd.f32 %v136, %v380
    %v382 = vpop.f32.mrb[0].mxu0
    %v383 = vpop.f32.mrb[0].mxu0
    %v384 = vadd.f32 %v136, %v383
    %v385 = vpop.f32.mrb[0].mxu0
    %386 = vmatprep.mubr.bf16.mxu0 0
    %387 = vmatmul.mubr.bf16.gmra.mrb[0].mxu0 %v211
    %v388 = vpop.f32.mrb[0].mxu0
    %v389 = vadd.f32 %v136, %v388
    %v390 = vpop.f32.mrb[0].mxu0
    %v391 = vpop.f32.mrb[0].mxu0
    %v392 = vadd.f32 %v136, %v391
    %v393 = vpop.f32.mrb[0].mxu0
    %394 = vmatprep.mubr.bf16.mxu0 0
    %395 = vmatmul.mubr.bf16.gmra.mrb[0].mxu0 %v212
    %v396 = vpop.f32.mrb[0].mxu0
    %v397 = vadd.f32 %v136, %v396
    %v398 = vpop.f32.mrb[0].mxu0
    %v399 = vpop.f32.mrb[0].mxu0
    %v400 = vadd.f32 %v136, %v399
    %v401 = vpop.f32.mrb[0].mxu0
    %402 = vmatprep.mubr.bf16.mxu0 0
    %403 = vmatmul.mubr.bf16.gmra.mrb[0].mxu0 %v213
    %v404 = vpop.f32.mrb[0].mxu0
    %v405 = vadd.f32 %v136, %v404
    %v406 = vpop.f32.mrb[0].mxu0
    %v407 = vpop.f32.mrb[0].mxu0
    %v408 = vadd.f32 %v136, %v407
    %v409 = vpop.f32.mrb[0].mxu0
    %410 = vmatprep.mubr.bf16.mxu0 0
    %411 = vmatmul.mubr.bf16.gmra.mrb[0].mxu0 %v214
    %v412 = vpop.f32.mrb[0].mxu0
    %v413 = vadd.f32 %v136, %v412
    %v414 = vpop.f32.mrb[0].mxu0
    %v415 = vpop.f32.mrb[0].mxu0
    %v416 = vadd.f32 %v136, %v415
    %v417 = vpop.f32.mrb[0].mxu0
    %418 = vmatprep.mubr.bf16.mxu0 0
    %419 = vmatmul.mubr.bf16.gmra.mrb[0].mxu0 %v215
    %v420 = vpop.f32.mrb[0].mxu0
    %v421 = vadd.f32 %v136, %v420
    %v422 = vpop.f32.mrb[0].mxu0
    %v423 = vpop.f32.mrb[0].mxu0
    %v424 = vadd.f32 %v136, %v423
    %v425 = vpop.f32.mrb[0].mxu0
    %426 = vmatprep.mubr.bf16.mxu0 0
    %427 = vmatmul.mubr.bf16.gmra.mrb[0].mxu0 %v216
    %v428 = vpop.f32.mrb[0].mxu0
    %v429 = vadd.f32 %v136, %v428
    %v430 = vpop.f32.mrb[0].mxu0
    %v431 = vpop.f32.mrb[0].mxu0
    %v432 = vadd.f32 %v136, %v431
    %v433 = vpop.f32.mrb[0].mxu0
    %434 = vmatprep.mubr.bf16.mxu0 0
    %435 = vmatmul.mubr.bf16.gmra.mrb[0].mxu0 %v217
    %v436 = vpop.f32.mrb[0].mxu0
    %v437 = vadd.f32 %v136, %v436
    %v438 = vpop.f32.mrb[0].mxu0
    %v439 = vpop.f32.mrb[0].mxu0
    %v440 = vadd.f32 %v136, %v439
    %v441 = vpop.f32.mrb[0].mxu0
    %442 = vdwg.mxu0
    %v443 = vtanh.pop %v317
    %v444 = vtanh.pop %v320
    %v445 = vtanh.pop %v325
    %v446 = vtanh.pop %v328
    %v447 = vtanh.pop %v333
    %v448 = vtanh.pop %v336
    %v449 = vtanh.pop %v341
    %v450 = vtanh.pop %v344
    %v451 = vtanh.pop %v349
    %v452 = vtanh.pop %v352
    %v453 = vtanh.pop %v357
    %v454 = vtanh.pop %v360
    %v455 = vtanh.pop %v365
    %v456 = vtanh.pop %v368
    %v457 = vtanh.pop %v373
    %v458 = vtanh.pop %v376
    %v459 = vtanh.pop %v381
    %v460 = vtanh.pop %v384
    %v461 = vtanh.pop %v389
    %v462 = vtanh.pop %v392
    %v463 = vtanh.pop %v397
    %v464 = vtanh.pop %v400
    %v465 = vtanh.pop %v405
    %v466 = vtanh.pop %v408
    %v467 = vtanh.pop %v413
    %v468 = vtanh.pop %v416
    %v469 = vtanh.pop %v421
    %v470 = vtanh.pop %v424
    %v471 = vtanh.pop %v429
    %v472 = vtanh.pop %v432
    %v473 = vtanh.pop %v437
    %v474 = vtanh.pop %v440
    %v475 = vld [vmem:[#allocation7] sm:$0xf]
    %v476 = vld [vmem:[#allocation7 + $0x4] sm:$0xf]
    %v477 = vld [vmem:[#allocation7 + $0x8] sm:$0xf]
    %v478 = vld [vmem:[#allocation7 + $0xc] sm:$0xf]
    %v479 = vld [vmem:[#allocation7 + $0x10] sm:$0xf]
    %v480 = vld [vmem:[#allocation7 + $0x14] sm:$0xf]
    %v481 = vld [vmem:[#allocation7 + $0x18] sm:$0xf]
    %v482 = vld [vmem:[#allocation7 + $0x1c] sm:$0xf]
    %v483 = vld [vmem:[#allocation7 + $0x20] sm:$0xf]
    %v484 = vld [vmem:[#allocation7 + $0x24] sm:$0xf]
    %v485 = vld [vmem:[#allocation7 + $0x28] sm:$0xf]
    %v486 = vld [vmem:[#allocation7 + $0x2c] sm:$0xf]
    %v487 = vld [vmem:[#allocation7 + $0x30] sm:$0xf]
    %v488 = vld [vmem:[#allocation7 + $0x34] sm:$0xf]
    %v489 = vld [vmem:[#allocation7 + $0x38] sm:$0xf]
    %v490 = vld [vmem:[#allocation7 + $0x3c] sm:$0xf]
    %v491 = vld [vmem:[%s4] sm:$0x1]
    %s492 = scalar_lea.vmem [#allocation7], 64
    %v493 = vld [vmem:[%s492] sm:$0xf]
    %v494 = vld [vmem:[%s492 + $0x4] sm:$0xf]
    %v495 = vld [vmem:[%s492 + $0x8] sm:$0xf]
    %v496 = vld [vmem:[%s492 + $0xc] sm:$0xf]
    %v497 = vld [vmem:[%s492 + $0x10] sm:$0xf]
    %v498 = vld [vmem:[%s492 + $0x14] sm:$0xf]
    %v499 = vld [vmem:[%s492 + $0x18] sm:$0xf]
    %v500 = vld [vmem:[%s492 + $0x1c] sm:$0xf]
    %v501 = vld [vmem:[%s492 + $0x20] sm:$0xf]
    %v502 = vld [vmem:[%s492 + $0x24] sm:$0xf]
    %v503 = vld [vmem:[%s492 + $0x28] sm:$0xf]
    %v504 = vld [vmem:[%s492 + $0x2c] sm:$0xf]
    %v505 = vld [vmem:[%s492 + $0x30] sm:$0xf]
    %v506 = vld [vmem:[%s492 + $0x34] sm:$0xf]
    %v507 = vld [vmem:[%s492 + $0x38] sm:$0xf]
    %v508 = vld [vmem:[%s492 + $0x3c] sm:$0xf]
    %s509 = scalar_lea.vmem %s4, 1
    %v510 = vld [vmem:[%s509] sm:$0x1]
    %v511 = vpack.c.bf16 %v444, %v443
    %v512 = vpack.c.bf16 %v446, %v445
    %v513 = vpack.c.bf16 %v448, %v447
    %v514 = vpack.c.bf16 %v450, %v449
    %v515 = vpack.c.bf16 %v452, %v451
    %v516 = vpack.c.bf16 %v454, %v453
    %v517 = vpack.c.bf16 %v456, %v455
    %v518 = vpack.c.bf16 %v458, %v457
    %v519 = vpack.c.bf16 %v460, %v459
    %v520 = vpack.c.bf16 %v462, %v461
    %v521 = vpack.c.bf16 %v464, %v463
    %v522 = vpack.c.bf16 %v466, %v465
    %v523 = vpack.c.bf16 %v468, %v467
    %v524 = vpack.c.bf16 %v470, %v469
    %v525 = vpack.c.bf16 %v472, %v471
    %v526 = vpack.c.bf16 %v474, %v473
    %v528 = vlaneseq
    %v529 = vshrl.u32 %v528, 7
    %v530 = vsub.s32 0, %v529
    %v531 = vrot.slane %v491, %v530
    %v549 = vunpack.c.l.b16 %v475
    %v550 = vunpack.c.l.b16 %v476
    %v551 = vunpack.c.l.b16 %v477
    %v552 = vunpack.c.l.b16 %v478
    %v553 = vunpack.c.l.b16 %v479
    %v554 = vunpack.c.l.b16 %v480
    %v555 = vunpack.c.l.b16 %v481
    %v556 = vunpack.c.l.b16 %v482
    %v557 = vunpack.c.l.b16 %v483
    %v558 = vunpack.c.l.b16 %v484
    %v559 = vunpack.c.l.b16 %v485
    %v560 = vunpack.c.l.b16 %v486
    %v561 = vunpack.c.l.b16 %v487
    %v562 = vunpack.c.l.b16 %v488
    %v563 = vunpack.c.l.b16 %v489
    %v564 = vunpack.c.l.b16 %v490
    %v565 = vpack.c.b16 %v550, %v549
    %v566 = vpack.c.b16 %v552, %v551
    %v567 = vpack.c.b16 %v554, %v553
    %v568 = vpack.c.b16 %v556, %v555
    %v569 = vpack.c.b16 %v558, %v557
    %v570 = vpack.c.b16 %v560, %v559
    %v571 = vpack.c.b16 %v562, %v561
    %v572 = vpack.c.b16 %v564, %v563
    %581 = vmatprep.subr.bf16.mxu0 0
    %582 = vmatpush1.bf16.msra.mxu0 %v565
    %583 = vmatprep.subr.bf16.mxu0 0
    %584 = vmatpush1.bf16.msra.mxu0 %v566
    %585 = vmatprep.subr.bf16.mxu0 0
    %586 = vmatpush1.bf16.msra.mxu0 %v567
    %587 = vmatprep.subr.bf16.mxu0 0
    %588 = vmatpush1.bf16.msra.mxu0 %v568
    %589 = vmatprep.subr.bf16.mxu0 0
    %590 = vmatpush1.bf16.msra.mxu0 %v569
    %591 = vmatprep.subr.bf16.mxu0 0
    %592 = vmatpush1.bf16.msra.mxu0 %v570
    %593 = vmatprep.subr.bf16.mxu0 0
    %594 = vmatpush1.bf16.msra.mxu0 %v571
    %595 = vmatprep.subr.bf16.mxu0 0
    %596 = vmatpush1.bf16.msra.mxu0 %v572
    %597 = vmatprep.subr.bf16.mxu0 0
    %598 = vmatpush1.bf16.msra.mxu0 0
    %599 = vmatprep.subr.bf16.mxu0 0
    %600 = vmatpush1.bf16.msra.mxu0 0
    %601 = vmatprep.subr.bf16.mxu0 0
    %602 = vmatpush1.bf16.msra.mxu0 0
    %603 = vmatprep.subr.bf16.mxu0 0
    %604 = vmatpush1.bf16.msra.mxu0 0
    %605 = vmatprep.subr.bf16.mxu0 0
    %606 = vmatpush1.bf16.msra.mxu0 0
    %607 = vmatprep.subr.bf16.mxu0 0
    %608 = vmatpush1.bf16.msra.mxu0 0
    %609 = vmatprep.subr.bf16.mxu0 0
    %610 = vmatpush1.bf16.msra.mxu0 0
    %611 = vmatprep.subr.bf16.mxu0 0
    %612 = vmatpush1.bf16.msra.mxu0 0
    %613 = vmatprep.mubr.bf16.mxu0 0
    %614 = vmatmul.mubr.bf16.gmra.mrb[0].mxu0 %v511
    %v615 = vpop.f32.mrb[0].mxu0
    %v616 = vadd.f32 %v531, %v615
    %v617 = vpop.f32.mrb[0].mxu0
    %v618 = vpop.f32.mrb[0].mxu0
    %v619 = vadd.f32 %v531, %v618
    %v620 = vpop.f32.mrb[0].mxu0
    %621 = vmatprep.mubr.bf16.mxu0 0
    %622 = vmatmul.mubr.bf16.gmra.mrb[0].mxu0 %v512
    %v623 = vpop.f32.mrb[0].mxu0
    %v624 = vadd.f32 %v531, %v623
    %v625 = vpop.f32.mrb[0].mxu0
    %v626 = vpop.f32.mrb[0].mxu0
    %v627 = vadd.f32 %v531, %v626
    %v628 = vpop.f32.mrb[0].mxu0
    %629 = vmatprep.mubr.bf16.mxu0 0
    %630 = vmatmul.mubr.bf16.gmra.mrb[0].mxu0 %v513
    %v631 = vpop.f32.mrb[0].mxu0
    %v632 = vadd.f32 %v531, %v631
    %v633 = vpop.f32.mrb[0].mxu0
    %v634 = vpop.f32.mrb[0].mxu0
    %v635 = vadd.f32 %v531, %v634
    %v636 = vpop.f32.mrb[0].mxu0
    %637 = vmatprep.mubr.bf16.mxu0 0
    %638 = vmatmul.mubr.bf16.gmra.mrb[0].mxu0 %v514
    %v639 = vpop.f32.mrb[0].mxu0
    %v640 = vadd.f32 %v531, %v639
    %v641 = vpop.f32.mrb[0].mxu0
    %v642 = vpop.f32.mrb[0].mxu0
    %v643 = vadd.f32 %v531, %v642
    %v644 = vpop.f32.mrb[0].mxu0
    %645 = vmatprep.mubr.bf16.mxu0 0
    %646 = vmatmul.mubr.bf16.gmra.mrb[0].mxu0 %v515
    %v647 = vpop.f32.mrb[0].mxu0
    %v648 = vadd.f32 %v531, %v647
    %v649 = vpop.f32.mrb[0].mxu0
    %v650 = vpop.f32.mrb[0].mxu0
    %v651 = vadd.f32 %v531, %v650
    %v652 = vpop.f32.mrb[0].mxu0
    %653 = vmatprep.mubr.bf16.mxu0 0
    %654 = vmatmul.mubr.bf16.gmra.mrb[0].mxu0 %v516
    %v655 = vpop.f32.mrb[0].mxu0
    %v656 = vadd.f32 %v531, %v655
    %v657 = vpop.f32.mrb[0].mxu0
    %v658 = vpop.f32.mrb[0].mxu0
    %v659 = vadd.f32 %v531, %v658
    %v660 = vpop.f32.mrb[0].mxu0
    %661 = vmatprep.mubr.bf16.mxu0 0
    %662 = vmatmul.mubr.bf16.gmra.mrb[0].mxu0 %v517
    %v663 = vpop.f32.mrb[0].mxu0
    %v664 = vadd.f32 %v531, %v663
    %v665 = vpop.f32.mrb[0].mxu0
    %v666 = vpop.f32.mrb[0].mxu0
    %v667 = vadd.f32 %v531, %v666
    %v668 = vpop.f32.mrb[0].mxu0
    %669 = vmatprep.mubr.bf16.mxu0 0
    %670 = vmatmul.mubr.bf16.gmra.mrb[0].mxu0 %v518
    %v671 = vpop.f32.mrb[0].mxu0
    %v672 = vadd.f32 %v531, %v671
    %v673 = vpop.f32.mrb[0].mxu0
    %v674 = vpop.f32.mrb[0].mxu0
    %v675 = vadd.f32 %v531, %v674
    %v676 = vpop.f32.mrb[0].mxu0
    %677 = vmatprep.mubr.bf16.mxu0 0
    %678 = vmatmul.mubr.bf16.gmra.mrb[0].mxu0 %v519
    %v679 = vpop.f32.mrb[0].mxu0
    %v680 = vadd.f32 %v531, %v679
    %v681 = vpop.f32.mrb[0].mxu0
    %v682 = vpop.f32.mrb[0].mxu0
    %v683 = vadd.f32 %v531, %v682
    %v684 = vpop.f32.mrb[0].mxu0
    %685 = vmatprep.mubr.bf16.mxu0 0
    %686 = vmatmul.mubr.bf16.gmra.mrb[0].mxu0 %v520
    %v687 = vpop.f32.mrb[0].mxu0
    %v688 = vadd.f32 %v531, %v687
    %v689 = vpop.f32.mrb[0].mxu0
    %v690 = vpop.f32.mrb[0].mxu0
    %v691 = vadd.f32 %v531, %v690
    %v692 = vpop.f32.mrb[0].mxu0
    %693 = vmatprep.mubr.bf16.mxu0 0
    %694 = vmatmul.mubr.bf16.gmra.mrb[0].mxu0 %v521
    %v695 = vpop.f32.mrb[0].mxu0
    %v696 = vadd.f32 %v531, %v695
    %v697 = vpop.f32.mrb[0].mxu0
    %v698 = vpop.f32.mrb[0].mxu0
    %v699 = vadd.f32 %v531, %v698
    %v700 = vpop.f32.mrb[0].mxu0
    %701 = vmatprep.mubr.bf16.mxu0 0
    %702 = vmatmul.mubr.bf16.gmra.mrb[0].mxu0 %v522
    %v703 = vpop.f32.mrb[0].mxu0
    %v704 = vadd.f32 %v531, %v703
    %v705 = vpop.f32.mrb[0].mxu0
    %v706 = vpop.f32.mrb[0].mxu0
    %v707 = vadd.f32 %v531, %v706
    %v708 = vpop.f32.mrb[0].mxu0
    %709 = vmatprep.mubr.bf16.mxu0 0
    %710 = vmatmul.mubr.bf16.gmra.mrb[0].mxu0 %v523
    %v711 = vpop.f32.mrb[0].mxu0
    %v712 = vadd.f32 %v531, %v711
    %v713 = vpop.f32.mrb[0].mxu0
    %v714 = vpop.f32.mrb[0].mxu0
    %v715 = vadd.f32 %v531, %v714
    %v716 = vpop.f32.mrb[0].mxu0
    %717 = vmatprep.mubr.bf16.mxu0 0
    %718 = vmatmul.mubr.bf16.gmra.mrb[0].mxu0 %v524
    %v719 = vpop.f32.mrb[0].mxu0
    %v720 = vadd.f32 %v531, %v719
    %v721 = vpop.f32.mrb[0].mxu0
    %v722 = vpop.f32.mrb[0].mxu0
    %v723 = vadd.f32 %v531, %v722
    %v724 = vpop.f32.mrb[0].mxu0
    %725 = vmatprep.mubr.bf16.mxu0 0
    %726 = vmatmul.mubr.bf16.gmra.mrb[0].mxu0 %v525
    %v727 = vpop.f32.mrb[0].mxu0
    %v728 = vadd.f32 %v531, %v727
    %v729 = vpop.f32.mrb[0].mxu0
    %v730 = vpop.f32.mrb[0].mxu0
    %v731 = vadd.f32 %v531, %v730
    %v732 = vpop.f32.mrb[0].mxu0
    %733 = vmatprep.mubr.bf16.mxu0 0
    %734 = vmatmul.mubr.bf16.gmra.mrb[0].mxu0 %v526
    %v735 = vpop.f32.mrb[0].mxu0
    %v736 = vadd.f32 %v531, %v735
    %v737 = vpop.f32.mrb[0].mxu0
    %v738 = vpop.f32.mrb[0].mxu0
    %v739 = vadd.f32 %v531, %v738
    %v740 = vpop.f32.mrb[0].mxu0
    %741 = vdwg.mxu0
    %v742 = vtanh.pop %v616
    %v743 = vtanh.pop %v619
    %v744 = vtanh.pop %v624
    %v745 = vtanh.pop %v627
    %v746 = vtanh.pop %v632
    %v747 = vtanh.pop %v635
    %v748 = vtanh.pop %v640
    %v749 = vtanh.pop %v643
    %v750 = vtanh.pop %v648
    %v751 = vtanh.pop %v651
    %v752 = vtanh.pop %v656
    %v753 = vtanh.pop %v659
    %v754 = vtanh.pop %v664
    %v755 = vtanh.pop %v667
    %v756 = vtanh.pop %v672
    %v757 = vtanh.pop %v675
    %v758 = vtanh.pop %v680
    %v759 = vtanh.pop %v683
    %v760 = vtanh.pop %v688
    %v761 = vtanh.pop %v691
    %v762 = vtanh.pop %v696
    %v763 = vtanh.pop %v699
    %v764 = vtanh.pop %v704
    %v765 = vtanh.pop %v707
    %v766 = vtanh.pop %v712
    %v767 = vtanh.pop %v715
    %v768 = vtanh.pop %v720
    %v769 = vtanh.pop %v723
    %v770 = vtanh.pop %v728
    %v771 = vtanh.pop %v731
    %v772 = vtanh.pop %v736
    %v773 = vtanh.pop %v739
    %v774 = vpack.c.bf16 %v743, %v742
    %v775 = vpack.c.bf16 %v745, %v744
    %v776 = vpack.c.bf16 %v747, %v746
    %v777 = vpack.c.bf16 %v749, %v748
    %v778 = vpack.c.bf16 %v751, %v750
    %v779 = vpack.c.bf16 %v753, %v752
    %v780 = vpack.c.bf16 %v755, %v754
    %v781 = vpack.c.bf16 %v757, %v756
    %v782 = vpack.c.bf16 %v759, %v758
    %v783 = vpack.c.bf16 %v761, %v760
    %v784 = vpack.c.bf16 %v763, %v762
    %v785 = vpack.c.bf16 %v765, %v764
    %v786 = vpack.c.bf16 %v767, %v766
    %v787 = vpack.c.bf16 %v769, %v768
    %v788 = vpack.c.bf16 %v771, %v770
    %v789 = vpack.c.bf16 %v773, %v772
    %v791 = vlaneseq
    %v792 = vshrl.u32 %v791, 7
    %v793 = vsub.s32 0, %v792
    %v794 = vrot.slane %v510, %v793
    %v812 = vunpack.c.l.b16 %v493
    %v813 = vunpack.c.l.b16 %v494
    %v814 = vunpack.c.l.b16 %v495
    %v815 = vunpack.c.l.b16 %v496
    %v816 = vunpack.c.l.b16 %v497
    %v817 = vunpack.c.l.b16 %v498
    %v818 = vunpack.c.l.b16 %v499
    %v819 = vunpack.c.l.b16 %v500
    %v820 = vunpack.c.l.b16 %v501
    %v821 = vunpack.c.l.b16 %v502
    %v822 = vunpack.c.l.b16 %v503
    %v823 = vunpack.c.l.b16 %v504
    %v824 = vunpack.c.l.b16 %v505
    %v825 = vunpack.c.l.b16 %v506
    %v826 = vunpack.c.l.b16 %v507
    %v827 = vunpack.c.l.b16 %v508
    %v828 = vpack.c.b16 %v813, %v812
    %v829 = vpack.c.b16 %v815, %v814
    %v830 = vpack.c.b16 %v817, %v816
    %v831 = vpack.c.b16 %v819, %v818
    %v832 = vpack.c.b16 %v821, %v820
    %v833 = vpack.c.b16 %v823, %v822
    %v834 = vpack.c.b16 %v825, %v824
    %v835 = vpack.c.b16 %v827, %v826
    %844 = vmatprep.subr.bf16.mxu0 0
    %845 = vmatpush1.bf16.msra.mxu0 %v828
    %846 = vmatprep.subr.bf16.mxu0 0
    %847 = vmatpush1.bf16.msra.mxu0 %v829
    %848 = vmatprep.subr.bf16.mxu0 0
    %849 = vmatpush1.bf16.msra.mxu0 %v830
    %850 = vmatprep.subr.bf16.mxu0 0
    %851 = vmatpush1.bf16.msra.mxu0 %v831
    %852 = vmatprep.subr.bf16.mxu0 0
    %853 = vmatpush1.bf16.msra.mxu0 %v832
    %854 = vmatprep.subr.bf16.mxu0 0
    %855 = vmatpush1.bf16.msra.mxu0 %v833
    %856 = vmatprep.subr.bf16.mxu0 0
    %857 = vmatpush1.bf16.msra.mxu0 %v834
    %858 = vmatprep.subr.bf16.mxu0 0
    %859 = vmatpush1.bf16.msra.mxu0 %v835
    %860 = vmatprep.subr.bf16.mxu0 0
    %861 = vmatpush1.bf16.msra.mxu0 0
    %862 = vmatprep.subr.bf16.mxu0 0
    %863 = vmatpush1.bf16.msra.mxu0 0
    %864 = vmatprep.subr.bf16.mxu0 0
    %865 = vmatpush1.bf16.msra.mxu0 0
    %866 = vmatprep.subr.bf16.mxu0 0
    %867 = vmatpush1.bf16.msra.mxu0 0
    %868 = vmatprep.subr.bf16.mxu0 0
    %869 = vmatpush1.bf16.msra.mxu0 0
    %870 = vmatprep.subr.bf16.mxu0 0
    %871 = vmatpush1.bf16.msra.mxu0 0
    %872 = vmatprep.subr.bf16.mxu0 0
    %873 = vmatpush1.bf16.msra.mxu0 0
    %874 = vmatprep.subr.bf16.mxu0 0
    %875 = vmatpush1.bf16.msra.mxu0 0
    %876 = vmatprep.mubr.bf16.mxu0 0
    %877 = vmatmul.mubr.bf16.gmra.mrb[0].mxu0 %v774
    %v878 = vpop.f32.mrb[0].mxu0
    %v879 = vadd.f32 %v794, %v878
    %v880 = vpop.f32.mrb[0].mxu0
    %v881 = vpop.f32.mrb[0].mxu0
    %v882 = vadd.f32 %v794, %v881
    %v883 = vpop.f32.mrb[0].mxu0
    %884 = vmatprep.mubr.bf16.mxu0 0
    %885 = vmatmul.mubr.bf16.gmra.mrb[0].mxu0 %v775
    %v886 = vpop.f32.mrb[0].mxu0
    %v887 = vadd.f32 %v794, %v886
    %v888 = vpop.f32.mrb[0].mxu0
    %v889 = vpop.f32.mrb[0].mxu0
    %v890 = vadd.f32 %v794, %v889
    %v891 = vpop.f32.mrb[0].mxu0
    %892 = vmatprep.mubr.bf16.mxu0 0
    %893 = vmatmul.mubr.bf16.gmra.mrb[0].mxu0 %v776
    %v894 = vpop.f32.mrb[0].mxu0
    %v895 = vadd.f32 %v794, %v894
    %v896 = vpop.f32.mrb[0].mxu0
    %v897 = vpop.f32.mrb[0].mxu0
    %v898 = vadd.f32 %v794, %v897
    %v899 = vpop.f32.mrb[0].mxu0
    %900 = vmatprep.mubr.bf16.mxu0 0
    %901 = vmatmul.mubr.bf16.gmra.mrb[0].mxu0 %v777
    %v902 = vpop.f32.mrb[0].mxu0
    %v903 = vadd.f32 %v794, %v902
    %v904 = vpop.f32.mrb[0].mxu0
    %v905 = vpop.f32.mrb[0].mxu0
    %v906 = vadd.f32 %v794, %v905
    %v907 = vpop.f32.mrb[0].mxu0
    %908 = vmatprep.mubr.bf16.mxu0 0
    %909 = vmatmul.mubr.bf16.gmra.mrb[0].mxu0 %v778
    %v910 = vpop.f32.mrb[0].mxu0
    %v911 = vadd.f32 %v794, %v910
    %v912 = vpop.f32.mrb[0].mxu0
    %v913 = vpop.f32.mrb[0].mxu0
    %v914 = vadd.f32 %v794, %v913
    %v915 = vpop.f32.mrb[0].mxu0
    %916 = vmatprep.mubr.bf16.mxu0 0
    %917 = vmatmul.mubr.bf16.gmra.mrb[0].mxu0 %v779
    %v918 = vpop.f32.mrb[0].mxu0
    %v919 = vadd.f32 %v794, %v918
    %v920 = vpop.f32.mrb[0].mxu0
    %v921 = vpop.f32.mrb[0].mxu0
    %v922 = vadd.f32 %v794, %v921
    %v923 = vpop.f32.mrb[0].mxu0
    %924 = vmatprep.mubr.bf16.mxu0 0
    %925 = vmatmul.mubr.bf16.gmra.mrb[0].mxu0 %v780
    %v926 = vpop.f32.mrb[0].mxu0
    %v927 = vadd.f32 %v794, %v926
    %v928 = vpop.f32.mrb[0].mxu0
    %v929 = vpop.f32.mrb[0].mxu0
    %v930 = vadd.f32 %v794, %v929
    %v931 = vpop.f32.mrb[0].mxu0
    %932 = vmatprep.mubr.bf16.mxu0 0
    %933 = vmatmul.mubr.bf16.gmra.mrb[0].mxu0 %v781
    %v934 = vpop.f32.mrb[0].mxu0
    %v935 = vadd.f32 %v794, %v934
    %v936 = vpop.f32.mrb[0].mxu0
    %v937 = vpop.f32.mrb[0].mxu0
    %v938 = vadd.f32 %v794, %v937
    %v939 = vpop.f32.mrb[0].mxu0
    %940 = vmatprep.mubr.bf16.mxu0 0
    %941 = vmatmul.mubr.bf16.gmra.mrb[0].mxu0 %v782
    %v942 = vpop.f32.mrb[0].mxu0
    %v943 = vadd.f32 %v794, %v942
    %v944 = vpop.f32.mrb[0].mxu0
    %v945 = vpop.f32.mrb[0].mxu0
    %v946 = vadd.f32 %v794, %v945
    %v947 = vpop.f32.mrb[0].mxu0
    %948 = vmatprep.mubr.bf16.mxu0 0
    %949 = vmatmul.mubr.bf16.gmra.mrb[0].mxu0 %v783
    %v950 = vpop.f32.mrb[0].mxu0
    %v951 = vadd.f32 %v794, %v950
    %v952 = vpop.f32.mrb[0].mxu0
    %v953 = vpop.f32.mrb[0].mxu0
    %v954 = vadd.f32 %v794, %v953
    %v955 = vpop.f32.mrb[0].mxu0
    %956 = vmatprep.mubr.bf16.mxu0 0
    %957 = vmatmul.mubr.bf16.gmra.mrb[0].mxu0 %v784
    %v958 = vpop.f32.mrb[0].mxu0
    %v959 = vadd.f32 %v794, %v958
    %v960 = vpop.f32.mrb[0].mxu0
    %v961 = vpop.f32.mrb[0].mxu0
    %v962 = vadd.f32 %v794, %v961
    %v963 = vpop.f32.mrb[0].mxu0
    %964 = vmatprep.mubr.bf16.mxu0 0
    %965 = vmatmul.mubr.bf16.gmra.mrb[0].mxu0 %v785
    %v966 = vpop.f32.mrb[0].mxu0
    %v967 = vadd.f32 %v794, %v966
    %v968 = vpop.f32.mrb[0].mxu0
    %v969 = vpop.f32.mrb[0].mxu0
    %v970 = vadd.f32 %v794, %v969
    %v971 = vpop.f32.mrb[0].mxu0
    %972 = vmatprep.mubr.bf16.mxu0 0
    %973 = vmatmul.mubr.bf16.gmra.mrb[0].mxu0 %v786
    %v974 = vpop.f32.mrb[0].mxu0
    %v975 = vadd.f32 %v794, %v974
    %v976 = vpop.f32.mrb[0].mxu0
    %v977 = vpop.f32.mrb[0].mxu0
    %v978 = vadd.f32 %v794, %v977
    %v979 = vpop.f32.mrb[0].mxu0
    %980 = vmatprep.mubr.bf16.mxu0 0
    %981 = vmatmul.mubr.bf16.gmra.mrb[0].mxu0 %v787
    %v982 = vpop.f32.mrb[0].mxu0
    %v983 = vadd.f32 %v794, %v982
    %v984 = vpop.f32.mrb[0].mxu0
    %v985 = vpop.f32.mrb[0].mxu0
    %v986 = vadd.f32 %v794, %v985
    %v987 = vpop.f32.mrb[0].mxu0
    %988 = vmatprep.mubr.bf16.mxu0 0
    %989 = vmatmul.mubr.bf16.gmra.mrb[0].mxu0 %v788
    %v990 = vpop.f32.mrb[0].mxu0
    %v991 = vadd.f32 %v794, %v990
    %v992 = vpop.f32.mrb[0].mxu0
    %v993 = vpop.f32.mrb[0].mxu0
    %v994 = vadd.f32 %v794, %v993
    %v995 = vpop.f32.mrb[0].mxu0
    %996 = vmatprep.mubr.bf16.mxu0 0
    %997 = vmatmul.mubr.bf16.gmra.mrb[0].mxu0 %v789
    %v998 = vpop.f32.mrb[0].mxu0
    %v999 = vadd.f32 %v794, %v998
    %v1000 = vpop.f32.mrb[0].mxu0
    %v1001 = vpop.f32.mrb[0].mxu0
    %v1002 = vadd.f32 %v794, %v1001
    %v1003 = vpop.f32.mrb[0].mxu0
    %1004 = vdwg.mxu0
    %v1005 = vtanh.pop %v879
    %v1006 = vtanh.pop %v882
    %v1007 = vtanh.pop %v887
    %v1008 = vtanh.pop %v890
    %v1009 = vtanh.pop %v895
    %v1010 = vtanh.pop %v898
    %v1011 = vtanh.pop %v903
    %v1012 = vtanh.pop %v906
    %v1013 = vtanh.pop %v911
    %v1014 = vtanh.pop %v914
    %v1015 = vtanh.pop %v919
    %v1016 = vtanh.pop %v922
    %v1017 = vtanh.pop %v927
    %v1018 = vtanh.pop %v930
    %v1019 = vtanh.pop %v935
    %v1020 = vtanh.pop %v938
    %v1021 = vtanh.pop %v943
    %v1022 = vtanh.pop %v946
    %v1023 = vtanh.pop %v951
    %v1024 = vtanh.pop %v954
    %v1025 = vtanh.pop %v959
    %v1026 = vtanh.pop %v962
    %v1027 = vtanh.pop %v967
    %v1028 = vtanh.pop %v970
    %v1029 = vtanh.pop %v975
    %v1030 = vtanh.pop %v978
    %v1031 = vtanh.pop %v983
    %v1032 = vtanh.pop %v986
    %v1033 = vtanh.pop %v991
    %v1034 = vtanh.pop %v994
    %v1035 = vtanh.pop %v999
    %v1036 = vtanh.pop %v1002
    %v1037 = vadd.f32 %v443, %v1005
    %v1038 = vadd.f32 %v444, %v1006
    %v1039 = vadd.f32 %v445, %v1007
    %v1040 = vadd.f32 %v446, %v1008
    %v1041 = vadd.f32 %v447, %v1009
    %v1042 = vadd.f32 %v448, %v1010
    %v1043 = vadd.f32 %v449, %v1011
    %v1044 = vadd.f32 %v450, %v1012
    %v1045 = vadd.f32 %v451, %v1013
    %v1046 = vadd.f32 %v452, %v1014
    %v1047 = vadd.f32 %v453, %v1015
    %v1048 = vadd.f32 %v454, %v1016
    %v1049 = vadd.f32 %v455, %v1017
    %v1050 = vadd.f32 %v456, %v1018
    %v1051 = vadd.f32 %v457, %v1019
    %v1052 = vadd.f32 %v458, %v1020
    %v1053 = vadd.f32 %v459, %v1021
    %v1054 = vadd.f32 %v460, %v1022
    %v1055 = vadd.f32 %v461, %v1023
    %v1056 = vadd.f32 %v462, %v1024
    %v1057 = vadd.f32 %v463, %v1025
    %v1058 = vadd.f32 %v464, %v1026
    %v1059 = vadd.f32 %v465, %v1027
    %v1060 = vadd.f32 %v466, %v1028
    %v1061 = vadd.f32 %v467, %v1029
    %v1062 = vadd.f32 %v468, %v1030
    %v1063 = vadd.f32 %v469, %v1031
    %v1064 = vadd.f32 %v470, %v1032
    %v1065 = vadd.f32 %v471, %v1033
    %v1066 = vadd.f32 %v472, %v1034
    %v1067 = vadd.f32 %v473, %v1035
    %v1068 = vadd.f32 %v474, %v1036
    %s1069 = scalar_lea.vmem [#allocation7], 128
    %v1070 = vld [vmem:[%s1069] sm:$0xf]
    %v1071 = vld [vmem:[%s1069 + $0x4] sm:$0xf]
    %v1072 = vld [vmem:[%s1069 + $0x8] sm:$0xf]
    %v1073 = vld [vmem:[%s1069 + $0xc] sm:$0xf]
    %v1074 = vld [vmem:[%s1069 + $0x10] sm:$0xf]
    %v1075 = vld [vmem:[%s1069 + $0x14] sm:$0xf]
    %v1076 = vld [vmem:[%s1069 + $0x18] sm:$0xf]
    %v1077 = vld [vmem:[%s1069 + $0x1c] sm:$0xf]
    %v1078 = vld [vmem:[%s1069 + $0x20] sm:$0xf]
    %v1079 = vld [vmem:[%s1069 + $0x24] sm:$0xf]
    %v1080 = vld [vmem:[%s1069 + $0x28] sm:$0xf]
    %v1081 = vld [vmem:[%s1069 + $0x2c] sm:$0xf]
    %v1082 = vld [vmem:[%s1069 + $0x30] sm:$0xf]
    %v1083 = vld [vmem:[%s1069 + $0x34] sm:$0xf]
    %v1084 = vld [vmem:[%s1069 + $0x38] sm:$0xf]
    %v1085 = vld [vmem:[%s1069 + $0x3c] sm:$0xf]
    %s1086 = scalar_lea.vmem %s4, 2
    %v1087 = vld [vmem:[%s1086] sm:$0x1]
    %s1088 = scalar_lea.vmem [#allocation7], 192
    %v1089 = vld [vmem:[%s1088] sm:$0xf]
    %v1090 = vld [vmem:[%s1088 + $0x4] sm:$0xf]
    %v1091 = vld [vmem:[%s1088 + $0x8] sm:$0xf]
    %v1092 = vld [vmem:[%s1088 + $0xc] sm:$0xf]
    %v1093 = vld [vmem:[%s1088 + $0x10] sm:$0xf]
    %v1094 = vld [vmem:[%s1088 + $0x14] sm:$0xf]
    %v1095 = vld [vmem:[%s1088 + $0x18] sm:$0xf]
    %v1096 = vld [vmem:[%s1088 + $0x1c] sm:$0xf]
    %v1097 = vld [vmem:[%s1088 + $0x20] sm:$0xf]
    %v1098 = vld [vmem:[%s1088 + $0x24] sm:$0xf]
    %v1099 = vld [vmem:[%s1088 + $0x28] sm:$0xf]
    %v1100 = vld [vmem:[%s1088 + $0x2c] sm:$0xf]
    %v1101 = vld [vmem:[%s1088 + $0x30] sm:$0xf]
    %v1102 = vld [vmem:[%s1088 + $0x34] sm:$0xf]
    %v1103 = vld [vmem:[%s1088 + $0x38] sm:$0xf]
    %v1104 = vld [vmem:[%s1088 + $0x3c] sm:$0xf]
    %s1105 = scalar_lea.vmem %s4, 3
    %v1106 = vld [vmem:[%s1105] sm:$0x1]
    %v1107 = vpack.c.bf16 %v1038, %v1037
    %v1108 = vpack.c.bf16 %v1040, %v1039
    %v1109 = vpack.c.bf16 %v1042, %v1041
    %v1110 = vpack.c.bf16 %v1044, %v1043
    %v1111 = vpack.c.bf16 %v1046, %v1045
    %v1112 = vpack.c.bf16 %v1048, %v1047
    %v1113 = vpack.c.bf16 %v1050, %v1049
    %v1114 = vpack.c.bf16 %v1052, %v1051
    %v1115 = vpack.c.bf16 %v1054, %v1053
    %v1116 = vpack.c.bf16 %v1056, %v1055
    %v1117 = vpack.c.bf16 %v1058, %v1057
    %v1118 = vpack.c.bf16 %v1060, %v1059
    %v1119 = vpack.c.bf16 %v1062, %v1061
    %v1120 = vpack.c.bf16 %v1064, %v1063
    %v1121 = vpack.c.bf16 %v1066, %v1065
    %v1122 = vpack.c.bf16 %v1068, %v1067
    %v1124 = vlaneseq
    %v1125 = vshrl.u32 %v1124, 7
    %v1126 = vsub.s32 0, %v1125
    %v1127 = vrot.slane %v1087, %v1126
    %v1145 = vunpack.c.l.b16 %v1070
    %v1146 = vunpack.c.l.b16 %v1071
    %v1147 = vunpack.c.l.b16 %v1072
    %v1148 = vunpack.c.l.b16 %v1073
    %v1149 = vunpack.c.l.b16 %v1074
    %v1150 = vunpack.c.l.b16 %v1075
    %v1151 = vunpack.c.l.b16 %v1076
    %v1152 = vunpack.c.l.b16 %v1077
    %v1153 = vunpack.c.l.b16 %v1078
    %v1154 = vunpack.c.l.b16 %v1079
    %v1155 = vunpack.c.l.b16 %v1080
    %v1156 = vunpack.c.l.b16 %v1081
    %v1157 = vunpack.c.l.b16 %v1082
    %v1158 = vunpack.c.l.b16 %v1083
    %v1159 = vunpack.c.l.b16 %v1084
    %v1160 = vunpack.c.l.b16 %v1085
    %v1161 = vpack.c.b16 %v1146, %v1145
    %v1162 = vpack.c.b16 %v1148, %v1147
    %v1163 = vpack.c.b16 %v1150, %v1149
    %v1164 = vpack.c.b16 %v1152, %v1151
    %v1165 = vpack.c.b16 %v1154, %v1153
    %v1166 = vpack.c.b16 %v1156, %v1155
    %v1167 = vpack.c.b16 %v1158, %v1157
    %v1168 = vpack.c.b16 %v1160, %v1159
    %1177 = vmatprep.subr.bf16.mxu0 0
    %1178 = vmatpush1.bf16.msra.mxu0 %v1161
    %1179 = vmatprep.subr.bf16.mxu0 0
    %1180 = vmatpush1.bf16.msra.mxu0 %v1162
    %1181 = vmatprep.subr.bf16.mxu0 0
    %1182 = vmatpush1.bf16.msra.mxu0 %v1163
    %1183 = vmatprep.subr.bf16.mxu0 0
    %1184 = vmatpush1.bf16.msra.mxu0 %v1164
    %1185 = vmatprep.subr.bf16.mxu0 0
    %1186 = vmatpush1.bf16.msra.mxu0 %v1165
    %1187 = vmatprep.subr.bf16.mxu0 0
    %1188 = vmatpush1.bf16.msra.mxu0 %v1166
    %1189 = vmatprep.subr.bf16.mxu0 0
    %1190 = vmatpush1.bf16.msra.mxu0 %v1167
    %1191 = vmatprep.subr.bf16.mxu0 0
    %1192 = vmatpush1.bf16.msra.mxu0 %v1168
    %1193 = vmatprep.subr.bf16.mxu0 0
    %1194 = vmatpush1.bf16.msra.mxu0 0
    %1195 = vmatprep.subr.bf16.mxu0 0
    %1196 = vmatpush1.bf16.msra.mxu0 0
    %1197 = vmatprep.subr.bf16.mxu0 0
    %1198 = vmatpush1.bf16.msra.mxu0 0
    %1199 = vmatprep.subr.bf16.mxu0 0
    %1200 = vmatpush1.bf16.msra.mxu0 0
    %1201 = vmatprep.subr.bf16.mxu0 0
    %1202 = vmatpush1.bf16.msra.mxu0 0
    %1203 = vmatprep.subr.bf16.mxu0 0
    %1204 = vmatpush1.bf16.msra.mxu0 0
    %1205 = vmatprep.subr.bf16.mxu0 0
    %1206 = vmatpush1.bf16.msra.mxu0 0
    %1207 = vmatprep.subr.bf16.mxu0 0
    %1208 = vmatpush1.bf16.msra.mxu0 0
    %1209 = vmatprep.mubr.bf16.mxu0 0
    %1210 = vmatmul.mubr.bf16.gmra.mrb[0].mxu0 %v1107
    %v1211 = vpop.f32.mrb[0].mxu0
    %v1212 = vadd.f32 %v1127, %v1211
    %v1213 = vpop.f32.mrb[0].mxu0
    %v1214 = vpop.f32.mrb[0].mxu0
    %v1215 = vadd.f32 %v1127, %v1214
    %v1216 = vpop.f32.mrb[0].mxu0
    %1217 = vmatprep.mubr.bf16.mxu0 0
    %1218 = vmatmul.mubr.bf16.gmra.mrb[0].mxu0 %v1108
    %v1219 = vpop.f32.mrb[0].mxu0
    %v1220 = vadd.f32 %v1127, %v1219
    %v1221 = vpop.f32.mrb[0].mxu0
    %v1222 = vpop.f32.mrb[0].mxu0
    %v1223 = vadd.f32 %v1127, %v1222
    %v1224 = vpop.f32.mrb[0].mxu0
    %1225 = vmatprep.mubr.bf16.mxu0 0
    %1226 = vmatmul.mubr.bf16.gmra.mrb[0].mxu0 %v1109
    %v1227 = vpop.f32.mrb[0].mxu0
    %v1228 = vadd.f32 %v1127, %v1227
    %v1229 = vpop.f32.mrb[0].mxu0
    %v1230 = vpop.f32.mrb[0].mxu0
    %v1231 = vadd.f32 %v1127, %v1230
    %v1232 = vpop.f32.mrb[0].mxu0
    %1233 = vmatprep.mubr.bf16.mxu0 0
    %1234 = vmatmul.mubr.bf16.gmra.mrb[0].mxu0 %v1110
    %v1235 = vpop.f32.mrb[0].mxu0
    %v1236 = vadd.f32 %v1127, %v1235
    %v1237 = vpop.f32.mrb[0].mxu0
    %v1238 = vpop.f32.mrb[0].mxu0
    %v1239 = vadd.f32 %v1127, %v1238
    %v1240 = vpop.f32.mrb[0].mxu0
    %1241 = vmatprep.mubr.bf16.mxu0 0
    %1242 = vmatmul.mubr.bf16.gmra.mrb[0].mxu0 %v1111
    %v1243 = vpop.f32.mrb[0].mxu0
    %v1244 = vadd.f32 %v1127, %v1243
    %v1245 = vpop.f32.mrb[0].mxu0
    %v1246 = vpop.f32.mrb[0].mxu0
    %v1247 = vadd.f32 %v1127, %v1246
    %v1248 = vpop.f32.mrb[0].mxu0
    %1249 = vmatprep.mubr.bf16.mxu0 0
    %1250 = vmatmul.mubr.bf16.gmra.mrb[0].mxu0 %v1112
    %v1251 = vpop.f32.mrb[0].mxu0
    %v1252 = vadd.f32 %v1127, %v1251
    %v1253 = vpop.f32.mrb[0].mxu0
    %v1254 = vpop.f32.mrb[0].mxu0
    %v1255 = vadd.f32 %v1127, %v1254
    %v1256 = vpop.f32.mrb[0].mxu0
    %1257 = vmatprep.mubr.bf16.mxu0 0
    %1258 = vmatmul.mubr.bf16.gmra.mrb[0].mxu0 %v1113
    %v1259 = vpop.f32.mrb[0].mxu0
    %v1260 = vadd.f32 %v1127, %v1259
    %v1261 = vpop.f32.mrb[0].mxu0
    %v1262 = vpop.f32.mrb[0].mxu0
    %v1263 = vadd.f32 %v1127, %v1262
    %v1264 = vpop.f32.mrb[0].mxu0
    %1265 = vmatprep.mubr.bf16.mxu0 0
    %1266 = vmatmul.mubr.bf16.gmra.mrb[0].mxu0 %v1114
    %v1267 = vpop.f32.mrb[0].mxu0
    %v1268 = vadd.f32 %v1127, %v1267
    %v1269 = vpop.f32.mrb[0].mxu0
    %v1270 = vpop.f32.mrb[0].mxu0
    %v1271 = vadd.f32 %v1127, %v1270
    %v1272 = vpop.f32.mrb[0].mxu0
    %1273 = vmatprep.mubr.bf16.mxu0 0
    %1274 = vmatmul.mubr.bf16.gmra.mrb[0].mxu0 %v1115
    %v1275 = vpop.f32.mrb[0].mxu0
    %v1276 = vadd.f32 %v1127, %v1275
    %v1277 = vpop.f32.mrb[0].mxu0
    %v1278 = vpop.f32.mrb[0].mxu0
    %v1279 = vadd.f32 %v1127, %v1278
    %v1280 = vpop.f32.mrb[0].mxu0
    %1281 = vmatprep.mubr.bf16.mxu0 0
    %1282 = vmatmul.mubr.bf16.gmra.mrb[0].mxu0 %v1116
    %v1283 = vpop.f32.mrb[0].mxu0
    %v1284 = vadd.f32 %v1127, %v1283
    %v1285 = vpop.f32.mrb[0].mxu0
    %v1286 = vpop.f32.mrb[0].mxu0
    %v1287 = vadd.f32 %v1127, %v1286
    %v1288 = vpop.f32.mrb[0].mxu0
    %1289 = vmatprep.mubr.bf16.mxu0 0
    %1290 = vmatmul.mubr.bf16.gmra.mrb[0].mxu0 %v1117
    %v1291 = vpop.f32.mrb[0].mxu0
    %v1292 = vadd.f32 %v1127, %v1291
    %v1293 = vpop.f32.mrb[0].mxu0
    %v1294 = vpop.f32.mrb[0].mxu0
    %v1295 = vadd.f32 %v1127, %v1294
    %v1296 = vpop.f32.mrb[0].mxu0
    %1297 = vmatprep.mubr.bf16.mxu0 0
    %1298 = vmatmul.mubr.bf16.gmra.mrb[0].mxu0 %v1118
    %v1299 = vpop.f32.mrb[0].mxu0
    %v1300 = vadd.f32 %v1127, %v1299
    %v1301 = vpop.f32.mrb[0].mxu0
    %v1302 = vpop.f32.mrb[0].mxu0
    %v1303 = vadd.f32 %v1127, %v1302
    %v1304 = vpop.f32.mrb[0].mxu0
    %1305 = vmatprep.mubr.bf16.mxu0 0
    %1306 = vmatmul.mubr.bf16.gmra.mrb[0].mxu0 %v1119
    %v1307 = vpop.f32.mrb[0].mxu0
    %v1308 = vadd.f32 %v1127, %v1307
    %v1309 = vpop.f32.mrb[0].mxu0
    %v1310 = vpop.f32.mrb[0].mxu0
    %v1311 = vadd.f32 %v1127, %v1310
    %v1312 = vpop.f32.mrb[0].mxu0
    %1313 = vmatprep.mubr.bf16.mxu0 0
    %1314 = vmatmul.mubr.bf16.gmra.mrb[0].mxu0 %v1120
    %v1315 = vpop.f32.mrb[0].mxu0
    %v1316 = vadd.f32 %v1127, %v1315
    %v1317 = vpop.f32.mrb[0].mxu0
    %v1318 = vpop.f32.mrb[0].mxu0
    %v1319 = vadd.f32 %v1127, %v1318
    %v1320 = vpop.f32.mrb[0].mxu0
    %1321 = vmatprep.mubr.bf16.mxu0 0
    %1322 = vmatmul.mubr.bf16.gmra.mrb[0].mxu0 %v1121
    %v1323 = vpop.f32.mrb[0].mxu0
    %v1324 = vadd.f32 %v1127, %v1323
    %v1325 = vpop.f32.mrb[0].mxu0
    %v1326 = vpop.f32.mrb[0].mxu0
    %v1327 = vadd.f32 %v1127, %v1326
    %v1328 = vpop.f32.mrb[0].mxu0
    %1329 = vmatprep.mubr.bf16.mxu0 0
    %1330 = vmatmul.mubr.bf16.gmra.mrb[0].mxu0 %v1122
    %v1331 = vpop.f32.mrb[0].mxu0
    %v1332 = vadd.f32 %v1127, %v1331
    %v1333 = vpop.f32.mrb[0].mxu0
    %v1334 = vpop.f32.mrb[0].mxu0
    %v1335 = vadd.f32 %v1127, %v1334
    %v1336 = vpop.f32.mrb[0].mxu0
    %1337 = vdwg.mxu0
    %v1338 = vtanh.pop %v1212
    %v1339 = vtanh.pop %v1215
    %v1340 = vtanh.pop %v1220
    %v1341 = vtanh.pop %v1223
    %v1342 = vtanh.pop %v1228
    %v1343 = vtanh.pop %v1231
    %v1344 = vtanh.pop %v1236
    %v1345 = vtanh.pop %v1239
    %v1346 = vtanh.pop %v1244
    %v1347 = vtanh.pop %v1247
    %v1348 = vtanh.pop %v1252
    %v1349 = vtanh.pop %v1255
    %v1350 = vtanh.pop %v1260
    %v1351 = vtanh.pop %v1263
    %v1352 = vtanh.pop %v1268
    %v1353 = vtanh.pop %v1271
    %v1354 = vtanh.pop %v1276
    %v1355 = vtanh.pop %v1279
    %v1356 = vtanh.pop %v1284
    %v1357 = vtanh.pop %v1287
    %v1358 = vtanh.pop %v1292
    %v1359 = vtanh.pop %v1295
    %v1360 = vtanh.pop %v1300
    %v1361 = vtanh.pop %v1303
    %v1362 = vtanh.pop %v1308
    %v1363 = vtanh.pop %v1311
    %v1364 = vtanh.pop %v1316
    %v1365 = vtanh.pop %v1319
    %v1366 = vtanh.pop %v1324
    %v1367 = vtanh.pop %v1327
    %v1368 = vtanh.pop %v1332
    %v1369 = vtanh.pop %v1335
    %v1370 = vpack.c.bf16 %v1339, %v1338
    %v1371 = vpack.c.bf16 %v1341, %v1340
    %v1372 = vpack.c.bf16 %v1343, %v1342
    %v1373 = vpack.c.bf16 %v1345, %v1344
    %v1374 = vpack.c.bf16 %v1347, %v1346
    %v1375 = vpack.c.bf16 %v1349, %v1348
    %v1376 = vpack.c.bf16 %v1351, %v1350
    %v1377 = vpack.c.bf16 %v1353, %v1352
    %v1378 = vpack.c.bf16 %v1355, %v1354
    %v1379 = vpack.c.bf16 %v1357, %v1356
    %v1380 = vpack.c.bf16 %v1359, %v1358
    %v1381 = vpack.c.bf16 %v1361, %v1360
    %v1382 = vpack.c.bf16 %v1363, %v1362
    %v1383 = vpack.c.bf16 %v1365, %v1364
    %v1384 = vpack.c.bf16 %v1367, %v1366
    %v1385 = vpack.c.bf16 %v1369, %v1368
    %v1387 = vlaneseq
    %v1388 = vshrl.u32 %v1387, 7
    %v1389 = vsub.s32 0, %v1388
    %v1390 = vrot.slane %v1106, %v1389
    %v1408 = vunpack.c.l.b16 %v1089
    %v1409 = vunpack.c.l.b16 %v1090
    %v1410 = vunpack.c.l.b16 %v1091
    %v1411 = vunpack.c.l.b16 %v1092
    %v1412 = vunpack.c.l.b16 %v1093
    %v1413 = vunpack.c.l.b16 %v1094
    %v1414 = vunpack.c.l.b16 %v1095
    %v1415 = vunpack.c.l.b16 %v1096
    %v1416 = vunpack.c.l.b16 %v1097
    %v1417 = vunpack.c.l.b16 %v1098
    %v1418 = vunpack.c.l.b16 %v1099
    %v1419 = vunpack.c.l.b16 %v1100
    %v1420 = vunpack.c.l.b16 %v1101
    %v1421 = vunpack.c.l.b16 %v1102
    %v1422 = vunpack.c.l.b16 %v1103
    %v1423 = vunpack.c.l.b16 %v1104
    %v1424 = vpack.c.b16 %v1409, %v1408
    %v1425 = vpack.c.b16 %v1411, %v1410
    %v1426 = vpack.c.b16 %v1413, %v1412
    %v1427 = vpack.c.b16 %v1415, %v1414
    %v1428 = vpack.c.b16 %v1417, %v1416
    %v1429 = vpack.c.b16 %v1419, %v1418
    %v1430 = vpack.c.b16 %v1421, %v1420
    %v1431 = vpack.c.b16 %v1423, %v1422
    %1440 = vmatprep.subr.bf16.mxu0 0
    %1441 = vmatpush1.bf16.msra.mxu0 %v1424
    %1442 = vmatprep.subr.bf16.mxu0 0
    %1443 = vmatpush1.bf16.msra.mxu0 %v1425
    %1444 = vmatprep.subr.bf16.mxu0 0
    %1445 = vmatpush1.bf16.msra.mxu0 %v1426
    %1446 = vmatprep.subr.bf16.mxu0 0
    %1447 = vmatpush1.bf16.msra.mxu0 %v1427
    %1448 = vmatprep.subr.bf16.mxu0 0
    %1449 = vmatpush1.bf16.msra.mxu0 %v1428
    %1450 = vmatprep.subr.bf16.mxu0 0
    %1451 = vmatpush1.bf16.msra.mxu0 %v1429
    %1452 = vmatprep.subr.bf16.mxu0 0
    %1453 = vmatpush1.bf16.msra.mxu0 %v1430
    %1454 = vmatprep.subr.bf16.mxu0 0
    %1455 = vmatpush1.bf16.msra.mxu0 %v1431
    %1456 = vmatprep.subr.bf16.mxu0 0
    %1457 = vmatpush1.bf16.msra.mxu0 0
    %1458 = vmatprep.subr.bf16.mxu0 0
    %1459 = vmatpush1.bf16.msra.mxu0 0
    %1460 = vmatprep.subr.bf16.mxu0 0
    %1461 = vmatpush1.bf16.msra.mxu0 0
    %1462 = vmatprep.subr.bf16.mxu0 0
    %1463 = vmatpush1.bf16.msra.mxu0 0
    %1464 = vmatprep.subr.bf16.mxu0 0
    %1465 = vmatpush1.bf16.msra.mxu0 0
    %1466 = vmatprep.subr.bf16.mxu0 0
    %1467 = vmatpush1.bf16.msra.mxu0 0
    %1468 = vmatprep.subr.bf16.mxu0 0
    %1469 = vmatpush1.bf16.msra.mxu0 0
    %1470 = vmatprep.subr.bf16.mxu0 0
    %1471 = vmatpush1.bf16.msra.mxu0 0
    %1472 = vmatprep.mubr.bf16.mxu0 0
    %1473 = vmatmul.mubr.bf16.gmra.mrb[0].mxu0 %v1370
    %v1474 = vpop.f32.mrb[0].mxu0
    %v1475 = vadd.f32 %v1390, %v1474
    %v1476 = vpop.f32.mrb[0].mxu0
    %v1477 = vpop.f32.mrb[0].mxu0
    %v1478 = vadd.f32 %v1390, %v1477
    %v1479 = vpop.f32.mrb[0].mxu0
    %1480 = vmatprep.mubr.bf16.mxu0 0
    %1481 = vmatmul.mubr.bf16.gmra.mrb[0].mxu0 %v1371
    %v1482 = vpop.f32.mrb[0].mxu0
    %v1483 = vadd.f32 %v1390, %v1482
    %v1484 = vpop.f32.mrb[0].mxu0
    %v1485 = vpop.f32.mrb[0].mxu0
    %v1486 = vadd.f32 %v1390, %v1485
    %v1487 = vpop.f32.mrb[0].mxu0
    %1488 = vmatprep.mubr.bf16.mxu0 0
    %1489 = vmatmul.mubr.bf16.gmra.mrb[0].mxu0 %v1372
    %v1490 = vpop.f32.mrb[0].mxu0
    %v1491 = vadd.f32 %v1390, %v1490
    %v1492 = vpop.f32.mrb[0].mxu0
    %v1493 = vpop.f32.mrb[0].mxu0
    %v1494 = vadd.f32 %v1390, %v1493
    %v1495 = vpop.f32.mrb[0].mxu0
    %1496 = vmatprep.mubr.bf16.mxu0 0
    %1497 = vmatmul.mubr.bf16.gmra.mrb[0].mxu0 %v1373
    %v1498 = vpop.f32.mrb[0].mxu0
    %v1499 = vadd.f32 %v1390, %v1498
    %v1500 = vpop.f32.mrb[0].mxu0
    %v1501 = vpop.f32.mrb[0].mxu0
    %v1502 = vadd.f32 %v1390, %v1501
    %v1503 = vpop.f32.mrb[0].mxu0
    %1504 = vmatprep.mubr.bf16.mxu0 0
    %1505 = vmatmul.mubr.bf16.gmra.mrb[0].mxu0 %v1374
    %v1506 = vpop.f32.mrb[0].mxu0
    %v1507 = vadd.f32 %v1390, %v1506
    %v1508 = vpop.f32.mrb[0].mxu0
    %v1509 = vpop.f32.mrb[0].mxu0
    %v1510 = vadd.f32 %v1390, %v1509
    %v1511 = vpop.f32.mrb[0].mxu0
    %1512 = vmatprep.mubr.bf16.mxu0 0
    %1513 = vmatmul.mubr.bf16.gmra.mrb[0].mxu0 %v1375
    %v1514 = vpop.f32.mrb[0].mxu0
    %v1515 = vadd.f32 %v1390, %v1514
    %v1516 = vpop.f32.mrb[0].mxu0
    %v1517 = vpop.f32.mrb[0].mxu0
    %v1518 = vadd.f32 %v1390, %v1517
    %v1519 = vpop.f32.mrb[0].mxu0
    %1520 = vmatprep.mubr.bf16.mxu0 0
    %1521 = vmatmul.mubr.bf16.gmra.mrb[0].mxu0 %v1376
    %v1522 = vpop.f32.mrb[0].mxu0
    %v1523 = vadd.f32 %v1390, %v1522
    %v1524 = vpop.f32.mrb[0].mxu0
    %v1525 = vpop.f32.mrb[0].mxu0
    %v1526 = vadd.f32 %v1390, %v1525
    %v1527 = vpop.f32.mrb[0].mxu0
    %1528 = vmatprep.mubr.bf16.mxu0 0
    %1529 = vmatmul.mubr.bf16.gmra.mrb[0].mxu0 %v1377
    %v1530 = vpop.f32.mrb[0].mxu0
    %v1531 = vadd.f32 %v1390, %v1530
    %v1532 = vpop.f32.mrb[0].mxu0
    %v1533 = vpop.f32.mrb[0].mxu0
    %v1534 = vadd.f32 %v1390, %v1533
    %v1535 = vpop.f32.mrb[0].mxu0
    %1536 = vmatprep.mubr.bf16.mxu0 0
    %1537 = vmatmul.mubr.bf16.gmra.mrb[0].mxu0 %v1378
    %v1538 = vpop.f32.mrb[0].mxu0
    %v1539 = vadd.f32 %v1390, %v1538
    %v1540 = vpop.f32.mrb[0].mxu0
    %v1541 = vpop.f32.mrb[0].mxu0
    %v1542 = vadd.f32 %v1390, %v1541
    %v1543 = vpop.f32.mrb[0].mxu0
    %1544 = vmatprep.mubr.bf16.mxu0 0
    %1545 = vmatmul.mubr.bf16.gmra.mrb[0].mxu0 %v1379
    %v1546 = vpop.f32.mrb[0].mxu0
    %v1547 = vadd.f32 %v1390, %v1546
    %v1548 = vpop.f32.mrb[0].mxu0
    %v1549 = vpop.f32.mrb[0].mxu0
    %v1550 = vadd.f32 %v1390, %v1549
    %v1551 = vpop.f32.mrb[0].mxu0
    %1552 = vmatprep.mubr.bf16.mxu0 0
    %1553 = vmatmul.mubr.bf16.gmra.mrb[0].mxu0 %v1380
    %v1554 = vpop.f32.mrb[0].mxu0
    %v1555 = vadd.f32 %v1390, %v1554
    %v1556 = vpop.f32.mrb[0].mxu0
    %v1557 = vpop.f32.mrb[0].mxu0
    %v1558 = vadd.f32 %v1390, %v1557
    %v1559 = vpop.f32.mrb[0].mxu0
    %1560 = vmatprep.mubr.bf16.mxu0 0
    %1561 = vmatmul.mubr.bf16.gmra.mrb[0].mxu0 %v1381
    %v1562 = vpop.f32.mrb[0].mxu0
    %v1563 = vadd.f32 %v1390, %v1562
    %v1564 = vpop.f32.mrb[0].mxu0
    %v1565 = vpop.f32.mrb[0].mxu0
    %v1566 = vadd.f32 %v1390, %v1565
    %v1567 = vpop.f32.mrb[0].mxu0
    %1568 = vmatprep.mubr.bf16.mxu0 0
    %1569 = vmatmul.mubr.bf16.gmra.mrb[0].mxu0 %v1382
    %v1570 = vpop.f32.mrb[0].mxu0
    %v1571 = vadd.f32 %v1390, %v1570
    %v1572 = vpop.f32.mrb[0].mxu0
    %v1573 = vpop.f32.mrb[0].mxu0
    %v1574 = vadd.f32 %v1390, %v1573
    %v1575 = vpop.f32.mrb[0].mxu0
    %1576 = vmatprep.mubr.bf16.mxu0 0
    %1577 = vmatmul.mubr.bf16.gmra.mrb[0].mxu0 %v1383
    %v1578 = vpop.f32.mrb[0].mxu0
    %v1579 = vadd.f32 %v1390, %v1578
    %v1580 = vpop.f32.mrb[0].mxu0
    %v1581 = vpop.f32.mrb[0].mxu0
    %v1582 = vadd.f32 %v1390, %v1581
    %v1583 = vpop.f32.mrb[0].mxu0
    %1584 = vmatprep.mubr.bf16.mxu0 0
    %1585 = vmatmul.mubr.bf16.gmra.mrb[0].mxu0 %v1384
    %v1586 = vpop.f32.mrb[0].mxu0
    %v1587 = vadd.f32 %v1390, %v1586
    %v1588 = vpop.f32.mrb[0].mxu0
    %v1589 = vpop.f32.mrb[0].mxu0
    %v1590 = vadd.f32 %v1390, %v1589
    %v1591 = vpop.f32.mrb[0].mxu0
    %1592 = vmatprep.mubr.bf16.mxu0 0
    %1593 = vmatmul.mubr.bf16.gmra.mrb[0].mxu0 %v1385
    %v1594 = vpop.f32.mrb[0].mxu0
    %v1595 = vadd.f32 %v1390, %v1594
    %v1596 = vpop.f32.mrb[0].mxu0
    %v1597 = vpop.f32.mrb[0].mxu0
    %v1598 = vadd.f32 %v1390, %v1597
    %v1599 = vpop.f32.mrb[0].mxu0
    %1600 = vdwg.mxu0
    %v1601 = vtanh.pop %v1475
    %v1602 = vtanh.pop %v1478
    %v1603 = vtanh.pop %v1483
    %v1604 = vtanh.pop %v1486
    %v1605 = vtanh.pop %v1491
    %v1606 = vtanh.pop %v1494
    %v1607 = vtanh.pop %v1499
    %v1608 = vtanh.pop %v1502
    %v1609 = vtanh.pop %v1507
    %v1610 = vtanh.pop %v1510
    %v1611 = vtanh.pop %v1515
    %v1612 = vtanh.pop %v1518
    %v1613 = vtanh.pop %v1523
    %v1614 = vtanh.pop %v1526
    %v1615 = vtanh.pop %v1531
    %v1616 = vtanh.pop %v1534
    %v1617 = vtanh.pop %v1539
    %v1618 = vtanh.pop %v1542
    %v1619 = vtanh.pop %v1547
    %v1620 = vtanh.pop %v1550
    %v1621 = vtanh.pop %v1555
    %v1622 = vtanh.pop %v1558
    %v1623 = vtanh.pop %v1563
    %v1624 = vtanh.pop %v1566
    %v1625 = vtanh.pop %v1571
    %v1626 = vtanh.pop %v1574
    %v1627 = vtanh.pop %v1579
    %v1628 = vtanh.pop %v1582
    %v1629 = vtanh.pop %v1587
    %v1630 = vtanh.pop %v1590
    %v1631 = vtanh.pop %v1595
    %v1632 = vtanh.pop %v1598
    %v1633 = vadd.f32 %v1037, %v1601
    %v1634 = vadd.f32 %v1038, %v1602
    %v1635 = vadd.f32 %v1039, %v1603
    %v1636 = vadd.f32 %v1040, %v1604
    %v1637 = vadd.f32 %v1041, %v1605
    %v1638 = vadd.f32 %v1042, %v1606
    %v1639 = vadd.f32 %v1043, %v1607
    %v1640 = vadd.f32 %v1044, %v1608
    %v1641 = vadd.f32 %v1045, %v1609
    %v1642 = vadd.f32 %v1046, %v1610
    %v1643 = vadd.f32 %v1047, %v1611
    %v1644 = vadd.f32 %v1048, %v1612
    %v1645 = vadd.f32 %v1049, %v1613
    %v1646 = vadd.f32 %v1050, %v1614
    %v1647 = vadd.f32 %v1051, %v1615
    %v1648 = vadd.f32 %v1052, %v1616
    %v1649 = vadd.f32 %v1053, %v1617
    %v1650 = vadd.f32 %v1054, %v1618
    %v1651 = vadd.f32 %v1055, %v1619
    %v1652 = vadd.f32 %v1056, %v1620
    %v1653 = vadd.f32 %v1057, %v1621
    %v1654 = vadd.f32 %v1058, %v1622
    %v1655 = vadd.f32 %v1059, %v1623
    %v1656 = vadd.f32 %v1060, %v1624
    %v1657 = vadd.f32 %v1061, %v1625
    %v1658 = vadd.f32 %v1062, %v1626
    %v1659 = vadd.f32 %v1063, %v1627
    %v1660 = vadd.f32 %v1064, %v1628
    %v1661 = vadd.f32 %v1065, %v1629
    %v1662 = vadd.f32 %v1066, %v1630
    %v1663 = vadd.f32 %v1067, %v1631
    %v1664 = vadd.f32 %v1068, %v1632
    %v1665 = vpack.c.bf16 %v1634, %v1633
    %v1666 = vpack.c.bf16 %v1636, %v1635
    %v1667 = vpack.c.bf16 %v1638, %v1637
    %v1668 = vpack.c.bf16 %v1640, %v1639
    %v1669 = vpack.c.bf16 %v1642, %v1641
    %v1670 = vpack.c.bf16 %v1644, %v1643
    %v1671 = vpack.c.bf16 %v1646, %v1645
    %v1672 = vpack.c.bf16 %v1648, %v1647
    %v1673 = vpack.c.bf16 %v1650, %v1649
    %v1674 = vpack.c.bf16 %v1652, %v1651
    %v1675 = vpack.c.bf16 %v1654, %v1653
    %v1676 = vpack.c.bf16 %v1656, %v1655
    %v1677 = vpack.c.bf16 %v1658, %v1657
    %v1678 = vpack.c.bf16 %v1660, %v1659
    %v1679 = vpack.c.bf16 %v1662, %v1661
    %v1680 = vpack.c.bf16 %v1664, %v1663
    %v1681 = vld [vmem:[#allocation8] sm:$0xf]
    %v1682 = vld [vmem:[#allocation8 + $0x4] sm:$0xf]
    %v1683 = vld [vmem:[#allocation8 + $0x8] sm:$0xf]
    %v1684 = vld [vmem:[#allocation8 + $0xc] sm:$0xf]
    %v1685 = vld [vmem:[#allocation8 + $0x10] sm:$0xf]
    %v1686 = vld [vmem:[#allocation8 + $0x14] sm:$0xf]
    %v1687 = vld [vmem:[#allocation8 + $0x18] sm:$0xf]
    %v1688 = vld [vmem:[#allocation8 + $0x1c] sm:$0xf]
    %v1689 = vld [vmem:[#allocation8 + $0x20] sm:$0xf]
    %v1690 = vld [vmem:[#allocation8 + $0x24] sm:$0xf]
    %v1691 = vld [vmem:[#allocation8 + $0x28] sm:$0xf]
    %v1692 = vld [vmem:[#allocation8 + $0x2c] sm:$0xf]
    %v1693 = vld [vmem:[#allocation8 + $0x30] sm:$0xf]
    %v1694 = vld [vmem:[#allocation8 + $0x34] sm:$0xf]
    %v1695 = vld [vmem:[#allocation8 + $0x38] sm:$0xf]
    %v1696 = vld [vmem:[#allocation8 + $0x3c] sm:$0xf]
    %v1697 = vld [vmem:[%s6] sm:$0x1]
    %v1699 = vlaneseq
    %v1700 = vshrl.u32 %v1699, 7
    %v1701 = vsub.s32 0, %v1700
    %v1702 = vrot.slane %v1697, %v1701
    %v1720 = vunpack.c.l.b16 %v1681
    %v1721 = vunpack.c.l.b16 %v1682
    %v1722 = vunpack.c.l.b16 %v1683
    %v1723 = vunpack.c.l.b16 %v1684
    %v1724 = vunpack.c.l.b16 %v1685
    %v1725 = vunpack.c.l.b16 %v1686
    %v1726 = vunpack.c.l.b16 %v1687
    %v1727 = vunpack.c.l.b16 %v1688
    %v1728 = vunpack.c.l.b16 %v1689
    %v1729 = vunpack.c.l.b16 %v1690
    %v1730 = vunpack.c.l.b16 %v1691
    %v1731 = vunpack.c.l.b16 %v1692
    %v1732 = vunpack.c.l.b16 %v1693
    %v1733 = vunpack.c.l.b16 %v1694
    %v1734 = vunpack.c.l.b16 %v1695
    %v1735 = vunpack.c.l.b16 %v1696
    %v1736 = vpack.c.b16 %v1721, %v1720
    %v1737 = vpack.c.b16 %v1723, %v1722
    %v1738 = vpack.c.b16 %v1725, %v1724
    %v1739 = vpack.c.b16 %v1727, %v1726
    %v1740 = vpack.c.b16 %v1729, %v1728
    %v1741 = vpack.c.b16 %v1731, %v1730
    %v1742 = vpack.c.b16 %v1733, %v1732
    %v1743 = vpack.c.b16 %v1735, %v1734
    %1752 = vmatprep.subr.bf16.mxu0 0
    %1753 = vmatpush1.bf16.msra.mxu0 %v1736
    %1754 = vmatprep.subr.bf16.mxu0 0
    %1755 = vmatpush1.bf16.msra.mxu0 %v1737
    %1756 = vmatprep.subr.bf16.mxu0 0
    %1757 = vmatpush1.bf16.msra.mxu0 %v1738
    %1758 = vmatprep.subr.bf16.mxu0 0
    %1759 = vmatpush1.bf16.msra.mxu0 %v1739
    %1760 = vmatprep.subr.bf16.mxu0 0
    %1761 = vmatpush1.bf16.msra.mxu0 %v1740
    %1762 = vmatprep.subr.bf16.mxu0 0
    %1763 = vmatpush1.bf16.msra.mxu0 %v1741
    %1764 = vmatprep.subr.bf16.mxu0 0
    %1765 = vmatpush1.bf16.msra.mxu0 %v1742
    %1766 = vmatprep.subr.bf16.mxu0 0
    %1767 = vmatpush1.bf16.msra.mxu0 %v1743
    %1768 = vmatprep.subr.bf16.mxu0 0
    %1769 = vmatpush1.bf16.msra.mxu0 0
    %1770 = vmatprep.subr.bf16.mxu0 0
    %1771 = vmatpush1.bf16.msra.mxu0 0
    %1772 = vmatprep.subr.bf16.mxu0 0
    %1773 = vmatpush1.bf16.msra.mxu0 0
    %1774 = vmatprep.subr.bf16.mxu0 0
    %1775 = vmatpush1.bf16.msra.mxu0 0
    %1776 = vmatprep.subr.bf16.mxu0 0
    %1777 = vmatpush1.bf16.msra.mxu0 0
    %1778 = vmatprep.subr.bf16.mxu0 0
    %1779 = vmatpush1.bf16.msra.mxu0 0
    %1780 = vmatprep.subr.bf16.mxu0 0
    %1781 = vmatpush1.bf16.msra.mxu0 0
    %1782 = vmatprep.subr.bf16.mxu0 0
    %1783 = vmatpush1.bf16.msra.mxu0 0
    %1784 = vmatprep.mubr.bf16.mxu0 0
    %1785 = vmatmul.mubr.bf16.gmra.mrb[0].mxu0 %v1665
    %v1786 = vpop.f32.mrb[0].mxu0
    %v1787 = vadd.f32 %v1702, %v1786
    %v1788 = vpop.f32.mrb[0].mxu0
    %v1789 = vpop.f32.mrb[0].mxu0
    %v1790 = vadd.f32 %v1702, %v1789
    %v1791 = vpop.f32.mrb[0].mxu0
    %1792 = vmatprep.mubr.bf16.mxu0 0
    %1793 = vmatmul.mubr.bf16.gmra.mrb[0].mxu0 %v1666
    %v1794 = vpop.f32.mrb[0].mxu0
    %v1795 = vadd.f32 %v1702, %v1794
    %v1796 = vpop.f32.mrb[0].mxu0
    %v1797 = vpop.f32.mrb[0].mxu0
    %v1798 = vadd.f32 %v1702, %v1797
    %v1799 = vpop.f32.mrb[0].mxu0
    %1800 = vmatprep.mubr.bf16.mxu0 0
    %1801 = vmatmul.mubr.bf16.gmra.mrb[0].mxu0 %v1667
    %v1802 = vpop.f32.mrb[0].mxu0
    %v1803 = vadd.f32 %v1702, %v1802
    %v1804 = vpop.f32.mrb[0].mxu0
    %v1805 = vpop.f32.mrb[0].mxu0
    %v1806 = vadd.f32 %v1702, %v1805
    %v1807 = vpop.f32.mrb[0].mxu0
    %1808 = vmatprep.mubr.bf16.mxu0 0
    %1809 = vmatmul.mubr.bf16.gmra.mrb[0].mxu0 %v1668
    %v1810 = vpop.f32.mrb[0].mxu0
    %v1811 = vadd.f32 %v1702, %v1810
    %v1812 = vpop.f32.mrb[0].mxu0
    %v1813 = vpop.f32.mrb[0].mxu0
    %v1814 = vadd.f32 %v1702, %v1813
    %v1815 = vpop.f32.mrb[0].mxu0
    %1816 = vmatprep.mubr.bf16.mxu0 0
    %1817 = vmatmul.mubr.bf16.gmra.mrb[0].mxu0 %v1669
    %v1818 = vpop.f32.mrb[0].mxu0
    %v1819 = vadd.f32 %v1702, %v1818
    %v1820 = vpop.f32.mrb[0].mxu0
    %v1821 = vpop.f32.mrb[0].mxu0
    %v1822 = vadd.f32 %v1702, %v1821
    %v1823 = vpop.f32.mrb[0].mxu0
    %1824 = vmatprep.mubr.bf16.mxu0 0
    %1825 = vmatmul.mubr.bf16.gmra.mrb[0].mxu0 %v1670
    %v1826 = vpop.f32.mrb[0].mxu0
    %v1827 = vadd.f32 %v1702, %v1826
    %v1828 = vpop.f32.mrb[0].mxu0
    %v1829 = vpop.f32.mrb[0].mxu0
    %v1830 = vadd.f32 %v1702, %v1829
    %v1831 = vpop.f32.mrb[0].mxu0
    %1832 = vmatprep.mubr.bf16.mxu0 0
    %1833 = vmatmul.mubr.bf16.gmra.mrb[0].mxu0 %v1671
    %v1834 = vpop.f32.mrb[0].mxu0
    %v1835 = vadd.f32 %v1702, %v1834
    %v1836 = vpop.f32.mrb[0].mxu0
    %v1837 = vpop.f32.mrb[0].mxu0
    %v1838 = vadd.f32 %v1702, %v1837
    %v1839 = vpop.f32.mrb[0].mxu0
    %1840 = vmatprep.mubr.bf16.mxu0 0
    %1841 = vmatmul.mubr.bf16.gmra.mrb[0].mxu0 %v1672
    %v1842 = vpop.f32.mrb[0].mxu0
    %v1843 = vadd.f32 %v1702, %v1842
    %v1844 = vpop.f32.mrb[0].mxu0
    %v1845 = vpop.f32.mrb[0].mxu0
    %v1846 = vadd.f32 %v1702, %v1845
    %v1847 = vpop.f32.mrb[0].mxu0
    %1848 = vmatprep.mubr.bf16.mxu0 0
    %1849 = vmatmul.mubr.bf16.gmra.mrb[0].mxu0 %v1673
    %v1850 = vpop.f32.mrb[0].mxu0
    %v1851 = vadd.f32 %v1702, %v1850
    %v1852 = vpop.f32.mrb[0].mxu0
    %v1853 = vpop.f32.mrb[0].mxu0
    %v1854 = vadd.f32 %v1702, %v1853
    %v1855 = vpop.f32.mrb[0].mxu0
    %1856 = vmatprep.mubr.bf16.mxu0 0
    %1857 = vmatmul.mubr.bf16.gmra.mrb[0].mxu0 %v1674
    %v1858 = vpop.f32.mrb[0].mxu0
    %v1859 = vadd.f32 %v1702, %v1858
    %v1860 = vpop.f32.mrb[0].mxu0
    %v1861 = vpop.f32.mrb[0].mxu0
    %v1862 = vadd.f32 %v1702, %v1861
    %v1863 = vpop.f32.mrb[0].mxu0
    %1864 = vmatprep.mubr.bf16.mxu0 0
    %1865 = vmatmul.mubr.bf16.gmra.mrb[0].mxu0 %v1675
    %v1866 = vpop.f32.mrb[0].mxu0
    %v1867 = vadd.f32 %v1702, %v1866
    %v1868 = vpop.f32.mrb[0].mxu0
    %v1869 = vpop.f32.mrb[0].mxu0
    %v1870 = vadd.f32 %v1702, %v1869
    %v1871 = vpop.f32.mrb[0].mxu0
    %1872 = vmatprep.mubr.bf16.mxu0 0
    %1873 = vmatmul.mubr.bf16.gmra.mrb[0].mxu0 %v1676
    %v1874 = vpop.f32.mrb[0].mxu0
    %v1875 = vadd.f32 %v1702, %v1874
    %v1876 = vpop.f32.mrb[0].mxu0
    %v1877 = vpop.f32.mrb[0].mxu0
    %v1878 = vadd.f32 %v1702, %v1877
    %v1879 = vpop.f32.mrb[0].mxu0
    %1880 = vmatprep.mubr.bf16.mxu0 0
    %1881 = vmatmul.mubr.bf16.gmra.mrb[0].mxu0 %v1677
    %v1882 = vpop.f32.mrb[0].mxu0
    %v1883 = vadd.f32 %v1702, %v1882
    %v1884 = vpop.f32.mrb[0].mxu0
    %v1885 = vpop.f32.mrb[0].mxu0
    %v1886 = vadd.f32 %v1702, %v1885
    %v1887 = vpop.f32.mrb[0].mxu0
    %1888 = vmatprep.mubr.bf16.mxu0 0
    %1889 = vmatmul.mubr.bf16.gmra.mrb[0].mxu0 %v1678
    %v1890 = vpop.f32.mrb[0].mxu0
    %v1891 = vadd.f32 %v1702, %v1890
    %v1892 = vpop.f32.mrb[0].mxu0
    %v1893 = vpop.f32.mrb[0].mxu0
    %v1894 = vadd.f32 %v1702, %v1893
    %v1895 = vpop.f32.mrb[0].mxu0
    %1896 = vmatprep.mubr.bf16.mxu0 0
    %1897 = vmatmul.mubr.bf16.gmra.mrb[0].mxu0 %v1679
    %v1898 = vpop.f32.mrb[0].mxu0
    %v1899 = vadd.f32 %v1702, %v1898
    %v1900 = vpop.f32.mrb[0].mxu0
    %v1901 = vpop.f32.mrb[0].mxu0
    %v1902 = vadd.f32 %v1702, %v1901
    %v1903 = vpop.f32.mrb[0].mxu0
    %1904 = vmatprep.mubr.bf16.mxu0 0
    %1905 = vmatmul.mubr.bf16.gmra.mrb[0].mxu0 %v1680
    %v1906 = vpop.f32.mrb[0].mxu0
    %v1907 = vadd.f32 %v1702, %v1906
    %v1908 = vpop.f32.mrb[0].mxu0
    %v1909 = vpop.f32.mrb[0].mxu0
    %v1910 = vadd.f32 %v1702, %v1909
    %v1911 = vpop.f32.mrb[0].mxu0
    %1912 = vdwg.mxu0
    %1913 = vmax.xlane.f32.xlu0 %v1787
    %v1914 = vpop.xlane.xlu0 %1913
    %1915 = vmax.xlane.f32.xlu0 %v1790
    %v1916 = vpop.xlane.xlu0 %1915
    %1917 = vmax.xlane.f32.xlu0 %v1795
    %v1918 = vpop.xlane.xlu0 %1917
    %1919 = vmax.xlane.f32.xlu0 %v1798
    %v1920 = vpop.xlane.xlu0 %1919
    %1921 = vmax.xlane.f32.xlu0 %v1803
    %v1922 = vpop.xlane.xlu0 %1921
    %1923 = vmax.xlane.f32.xlu0 %v1806
    %v1924 = vpop.xlane.xlu0 %1923
    %1925 = vmax.xlane.f32.xlu0 %v1811
    %v1926 = vpop.xlane.xlu0 %1925
    %1927 = vmax.xlane.f32.xlu0 %v1814
    %v1928 = vpop.xlane.xlu0 %1927
    %1929 = vmax.xlane.f32.xlu0 %v1819
    %v1930 = vpop.xlane.xlu0 %1929
    %1931 = vmax.xlane.f32.xlu0 %v1822
    %v1932 = vpop.xlane.xlu0 %1931
    %1933 = vmax.xlane.f32.xlu0 %v1827
    %v1934 = vpop.xlane.xlu0 %1933
    %1935 = vmax.xlane.f32.xlu0 %v1830
    %v1936 = vpop.xlane.xlu0 %1935
    %1937 = vmax.xlane.f32.xlu0 %v1835
    %v1938 = vpop.xlane.xlu0 %1937
    %1939 = vmax.xlane.f32.xlu0 %v1838
    %v1940 = vpop.xlane.xlu0 %1939
    %1941 = vmax.xlane.f32.xlu0 %v1843
    %v1942 = vpop.xlane.xlu0 %1941
    %1943 = vmax.xlane.f32.xlu0 %v1846
    %v1944 = vpop.xlane.xlu0 %1943
    %1945 = vmax.xlane.f32.xlu0 %v1851
    %v1946 = vpop.xlane.xlu0 %1945
    %1947 = vmax.xlane.f32.xlu0 %v1854
    %v1948 = vpop.xlane.xlu0 %1947
    %1949 = vmax.xlane.f32.xlu0 %v1859
    %v1950 = vpop.xlane.xlu0 %1949
    %1951 = vmax.xlane.f32.xlu0 %v1862
    %v1952 = vpop.xlane.xlu0 %1951
    %1953 = vmax.xlane.f32.xlu0 %v1867
    %v1954 = vpop.xlane.xlu0 %1953
    %1955 = vmax.xlane.f32.xlu0 %v1870
    %v1956 = vpop.xlane.xlu0 %1955
    %1957 = vmax.xlane.f32.xlu0 %v1875
    %v1958 = vpop.xlane.xlu0 %1957
    %1959 = vmax.xlane.f32.xlu0 %v1878
    %v1960 = vpop.xlane.xlu0 %1959
    %1961 = vmax.xlane.f32.xlu0 %v1883
    %v1962 = vpop.xlane.xlu0 %1961
    %1963 = vmax.xlane.f32.xlu0 %v1886
    %v1964 = vpop.xlane.xlu0 %1963
    %1965 = vmax.xlane.f32.xlu0 %v1891
    %v1966 = vpop.xlane.xlu0 %1965
    %1967 = vmax.xlane.f32.xlu0 %v1894
    %v1968 = vpop.xlane.xlu0 %1967
    %1969 = vmax.xlane.f32.xlu0 %v1899
    %v1970 = vpop.xlane.xlu0 %1969
    %1971 = vmax.xlane.f32.xlu0 %v1902
    %v1972 = vpop.xlane.xlu0 %1971
    %1973 = vmax.xlane.f32.xlu0 %v1907
    %v1974 = vpop.xlane.xlu0 %1973
    %1975 = vmax.xlane.f32.xlu0 %v1910
    %v1976 = vpop.xlane.xlu0 %1975
    %v1977 = vsub.f32 %v1787, %v1914
    %v1978 = vsub.f32 %v1790, %v1916
    %v1979 = vsub.f32 %v1795, %v1918
    %v1980 = vsub.f32 %v1798, %v1920
    %v1981 = vsub.f32 %v1803, %v1922
    %v1982 = vsub.f32 %v1806, %v1924
    %v1983 = vsub.f32 %v1811, %v1926
    %v1984 = vsub.f32 %v1814, %v1928
    %v1985 = vsub.f32 %v1819, %v1930
    %v1986 = vsub.f32 %v1822, %v1932
    %v1987 = vsub.f32 %v1827, %v1934
    %v1988 = vsub.f32 %v1830, %v1936
    %v1989 = vsub.f32 %v1835, %v1938
    %v1990 = vsub.f32 %v1838, %v1940
    %v1991 = vsub.f32 %v1843, %v1942
    %v1992 = vsub.f32 %v1846, %v1944
    %v1993 = vsub.f32 %v1851, %v1946
    %v1994 = vsub.f32 %v1854, %v1948
    %v1995 = vsub.f32 %v1859, %v1950
    %v1996 = vsub.f32 %v1862, %v1952
    %v1997 = vsub.f32 %v1867, %v1954
    %v1998 = vsub.f32 %v1870, %v1956
    %v1999 = vsub.f32 %v1875, %v1958
    %v2000 = vsub.f32 %v1878, %v1960
    %v2001 = vsub.f32 %v1883, %v1962
    %v2002 = vsub.f32 %v1886, %v1964
    %v2003 = vsub.f32 %v1891, %v1966
    %v2004 = vsub.f32 %v1894, %v1968
    %v2005 = vsub.f32 %v1899, %v1970
    %v2006 = vsub.f32 %v1902, %v1972
    %v2007 = vsub.f32 %v1907, %v1974
    %v2008 = vsub.f32 %v1910, %v1976
    %v2009 = vmul.f32 %v1977, 1.442695
    %v2010 = vpow.pop %v2009
    %v2011 = vmul.f32 %v1978, 1.442695
    %v2012 = vpow.pop %v2011
    %v2013 = vmul.f32 %v1979, 1.442695
    %v2014 = vpow.pop %v2013
    %v2015 = vmul.f32 %v1980, 1.442695
    %v2016 = vpow.pop %v2015
    %v2017 = vmul.f32 %v1981, 1.442695
    %v2018 = vpow.pop %v2017
    %v2019 = vmul.f32 %v1982, 1.442695
    %v2020 = vpow.pop %v2019
    %v2021 = vmul.f32 %v1983, 1.442695
    %v2022 = vpow.pop %v2021
    %v2023 = vmul.f32 %v1984, 1.442695
    %v2024 = vpow.pop %v2023
    %v2025 = vmul.f32 %v1985, 1.442695
    %v2026 = vpow.pop %v2025
    %v2027 = vmul.f32 %v1986, 1.442695
    %v2028 = vpow.pop %v2027
    %v2029 = vmul.f32 %v1987, 1.442695
    %v2030 = vpow.pop %v2029
    %v2031 = vmul.f32 %v1988, 1.442695
    %v2032 = vpow.pop %v2031
    %v2033 = vmul.f32 %v1989, 1.442695
    %v2034 = vpow.pop %v2033
    %v2035 = vmul.f32 %v1990, 1.442695
    %v2036 = vpow.pop %v2035
    %v2037 = vmul.f32 %v1991, 1.442695
    %v2038 = vpow.pop %v2037
    %v2039 = vmul.f32 %v1992, 1.442695
    %v2040 = vpow.pop %v2039
    %v2041 = vmul.f32 %v1993, 1.442695
    %v2042 = vpow.pop %v2041
    %v2043 = vmul.f32 %v1994, 1.442695
    %v2044 = vpow.pop %v2043
    %v2045 = vmul.f32 %v1995, 1.442695
    %v2046 = vpow.pop %v2045
    %v2047 = vmul.f32 %v1996, 1.442695
    %v2048 = vpow.pop %v2047
    %v2049 = vmul.f32 %v1997, 1.442695
    %v2050 = vpow.pop %v2049
    %v2051 = vmul.f32 %v1998, 1.442695
    %v2052 = vpow.pop %v2051
    %v2053 = vmul.f32 %v1999, 1.442695
    %v2054 = vpow.pop %v2053
    %v2055 = vmul.f32 %v2000, 1.442695
    %v2056 = vpow.pop %v2055
    %v2057 = vmul.f32 %v2001, 1.442695
    %v2058 = vpow.pop %v2057
    %v2059 = vmul.f32 %v2002, 1.442695
    %v2060 = vpow.pop %v2059
    %v2061 = vmul.f32 %v2003, 1.442695
    %v2062 = vpow.pop %v2061
    %v2063 = vmul.f32 %v2004, 1.442695
    %v2064 = vpow.pop %v2063
    %v2065 = vmul.f32 %v2005, 1.442695
    %v2066 = vpow.pop %v2065
    %v2067 = vmul.f32 %v2006, 1.442695
    %v2068 = vpow.pop %v2067
    %v2069 = vmul.f32 %v2007, 1.442695
    %v2070 = vpow.pop %v2069
    %v2071 = vmul.f32 %v2008, 1.442695
    %v2072 = vpow.pop %v2071
    %2073 = vadd.xlane.f32.xlu0 %v2010
    %v2074 = vpop.xlane.xlu0 %2073
    %2075 = vadd.xlane.f32.xlu0 %v2012
    %v2076 = vpop.xlane.xlu0 %2075
    %2077 = vadd.xlane.f32.xlu0 %v2014
    %v2078 = vpop.xlane.xlu0 %2077
    %2079 = vadd.xlane.f32.xlu0 %v2016
    %v2080 = vpop.xlane.xlu0 %2079
    %2081 = vadd.xlane.f32.xlu0 %v2018
    %v2082 = vpop.xlane.xlu0 %2081
    %2083 = vadd.xlane.f32.xlu0 %v2020
    %v2084 = vpop.xlane.xlu0 %2083
    %2085 = vadd.xlane.f32.xlu0 %v2022
    %v2086 = vpop.xlane.xlu0 %2085
    %2087 = vadd.xlane.f32.xlu0 %v2024
    %v2088 = vpop.xlane.xlu0 %2087
    %2089 = vadd.xlane.f32.xlu0 %v2026
    %v2090 = vpop.xlane.xlu0 %2089
    %2091 = vadd.xlane.f32.xlu0 %v2028
    %v2092 = vpop.xlane.xlu0 %2091
    %2093 = vadd.xlane.f32.xlu0 %v2030
    %v2094 = vpop.xlane.xlu0 %2093
    %2095 = vadd.xlane.f32.xlu0 %v2032
    %v2096 = vpop.xlane.xlu0 %2095
    %2097 = vadd.xlane.f32.xlu0 %v2034
    %v2098 = vpop.xlane.xlu0 %2097
    %2099 = vadd.xlane.f32.xlu0 %v2036
    %v2100 = vpop.xlane.xlu0 %2099
    %2101 = vadd.xlane.f32.xlu0 %v2038
    %v2102 = vpop.xlane.xlu0 %2101
    %2103 = vadd.xlane.f32.xlu0 %v2040
    %v2104 = vpop.xlane.xlu0 %2103
    %2105 = vadd.xlane.f32.xlu0 %v2042
    %v2106 = vpop.xlane.xlu0 %2105
    %2107 = vadd.xlane.f32.xlu0 %v2044
    %v2108 = vpop.xlane.xlu0 %2107
    %2109 = vadd.xlane.f32.xlu0 %v2046
    %v2110 = vpop.xlane.xlu0 %2109
    %2111 = vadd.xlane.f32.xlu0 %v2048
    %v2112 = vpop.xlane.xlu0 %2111
    %2113 = vadd.xlane.f32.xlu0 %v2050
    %v2114 = vpop.xlane.xlu0 %2113
    %2115 = vadd.xlane.f32.xlu0 %v2052
    %v2116 = vpop.xlane.xlu0 %2115
    %2117 = vadd.xlane.f32.xlu0 %v2054
    %v2118 = vpop.xlane.xlu0 %2117
    %2119 = vadd.xlane.f32.xlu0 %v2056
    %v2120 = vpop.xlane.xlu0 %2119
    %2121 = vadd.xlane.f32.xlu0 %v2058
    %v2122 = vpop.xlane.xlu0 %2121
    %2123 = vadd.xlane.f32.xlu0 %v2060
    %v2124 = vpop.xlane.xlu0 %2123
    %2125 = vadd.xlane.f32.xlu0 %v2062
    %v2126 = vpop.xlane.xlu0 %2125
    %2127 = vadd.xlane.f32.xlu0 %v2064
    %v2128 = vpop.xlane.xlu0 %2127
    %2129 = vadd.xlane.f32.xlu0 %v2066
    %v2130 = vpop.xlane.xlu0 %2129
    %2131 = vadd.xlane.f32.xlu0 %v2068
    %v2132 = vpop.xlane.xlu0 %2131
    %2133 = vadd.xlane.f32.xlu0 %v2070
    %v2134 = vpop.xlane.xlu0 %2133
    %2135 = vadd.xlane.f32.xlu0 %v2072
    %v2136 = vpop.xlane.xlu0 %2135
    %v2137 = vrcp.pop %v2074
    %v2138 = vrcp.pop %v2076
    %v2139 = vrcp.pop %v2078
    %v2140 = vrcp.pop %v2080
    %v2141 = vrcp.pop %v2082
    %v2142 = vrcp.pop %v2084
    %v2143 = vrcp.pop %v2086
    %v2144 = vrcp.pop %v2088
    %v2145 = vrcp.pop %v2090
    %v2146 = vrcp.pop %v2092
    %v2147 = vrcp.pop %v2094
    %v2148 = vrcp.pop %v2096
    %v2149 = vrcp.pop %v2098
    %v2150 = vrcp.pop %v2100
    %v2151 = vrcp.pop %v2102
    %v2152 = vrcp.pop %v2104
    %v2153 = vrcp.pop %v2106
    %v2154 = vrcp.pop %v2108
    %v2155 = vrcp.pop %v2110
    %v2156 = vrcp.pop %v2112
    %v2157 = vrcp.pop %v2114
    %v2158 = vrcp.pop %v2116
    %v2159 = vrcp.pop %v2118
    %v2160 = vrcp.pop %v2120
    %v2161 = vrcp.pop %v2122
    %v2162 = vrcp.pop %v2124
    %v2163 = vrcp.pop %v2126
    %v2164 = vrcp.pop %v2128
    %v2165 = vrcp.pop %v2130
    %v2166 = vrcp.pop %v2132
    %v2167 = vrcp.pop %v2134
    %v2168 = vrcp.pop %v2136
    %v2169 = vmul.f32 %v2074, %v2137
    %v2170 = vmul.f32 %v2076, %v2138
    %v2171 = vmul.f32 %v2078, %v2139
    %v2172 = vmul.f32 %v2080, %v2140
    %v2173 = vmul.f32 %v2082, %v2141
    %v2174 = vmul.f32 %v2084, %v2142
    %v2175 = vmul.f32 %v2086, %v2143
    %v2176 = vmul.f32 %v2088, %v2144
    %v2177 = vmul.f32 %v2090, %v2145
    %v2178 = vmul.f32 %v2092, %v2146
    %v2179 = vmul.f32 %v2094, %v2147
    %v2180 = vmul.f32 %v2096, %v2148
    %v2181 = vmul.f32 %v2098, %v2149
    %v2182 = vmul.f32 %v2100, %v2150
    %v2183 = vmul.f32 %v2102, %v2151
    %v2184 = vmul.f32 %v2104, %v2152
    %v2185 = vmul.f32 %v2106, %v2153
    %v2186 = vmul.f32 %v2108, %v2154
    %v2187 = vmul.f32 %v2110, %v2155
    %v2188 = vmul.f32 %v2112, %v2156
    %v2189 = vmul.f32 %v2114, %v2157
    %v2190 = vmul.f32 %v2116, %v2158
    %v2191 = vmul.f32 %v2118, %v2159
    %v2192 = vmul.f32 %v2120, %v2160
    %v2193 = vmul.f32 %v2122, %v2161
    %v2194 = vmul.f32 %v2124, %v2162
    %v2195 = vmul.f32 %v2126, %v2163
    %v2196 = vmul.f32 %v2128, %v2164
    %v2197 = vmul.f32 %v2130, %v2165
    %v2198 = vmul.f32 %v2132, %v2166
    %v2199 = vmul.f32 %v2134, %v2167
    %v2200 = vmul.f32 %v2136, %v2168
    %v2201 = vsub.f32 2.0, %v2169
    %v2202 = vsub.f32 2.0, %v2170
    %v2203 = vsub.f32 2.0, %v2171
    %v2204 = vsub.f32 2.0, %v2172
    %v2205 = vsub.f32 2.0, %v2173
    %v2206 = vsub.f32 2.0, %v2174
    %v2207 = vsub.f32 2.0, %v2175
    %v2208 = vsub.f32 2.0, %v2176
    %v2209 = vsub.f32 2.0, %v2177
    %v2210 = vsub.f32 2.0, %v2178
    %v2211 = vsub.f32 2.0, %v2179
    %v2212 = vsub.f32 2.0, %v2180
    %v2213 = vsub.f32 2.0, %v2181
    %v2214 = vsub.f32 2.0, %v2182
    %v2215 = vsub.f32 2.0, %v2183
    %v2216 = vsub.f32 2.0, %v2184
    %v2217 = vsub.f32 2.0, %v2185
    %v2218 = vsub.f32 2.0, %v2186
    %v2219 = vsub.f32 2.0, %v2187
    %v2220 = vsub.f32 2.0, %v2188
    %v2221 = vsub.f32 2.0, %v2189
    %v2222 = vsub.f32 2.0, %v2190
    %v2223 = vsub.f32 2.0, %v2191
    %v2224 = vsub.f32 2.0, %v2192
    %v2225 = vsub.f32 2.0, %v2193
    %v2226 = vsub.f32 2.0, %v2194
    %v2227 = vsub.f32 2.0, %v2195
    %v2228 = vsub.f32 2.0, %v2196
    %v2229 = vsub.f32 2.0, %v2197
    %v2230 = vsub.f32 2.0, %v2198
    %v2231 = vsub.f32 2.0, %v2199
    %v2232 = vsub.f32 2.0, %v2200
    %v2233 = vmul.f32 %v2137, %v2201
    %v2234 = vmul.f32 %v2138, %v2202
    %v2235 = vmul.f32 %v2139, %v2203
    %v2236 = vmul.f32 %v2140, %v2204
    %v2237 = vmul.f32 %v2141, %v2205
    %v2238 = vmul.f32 %v2142, %v2206
    %v2239 = vmul.f32 %v2143, %v2207
    %v2240 = vmul.f32 %v2144, %v2208
    %v2241 = vmul.f32 %v2145, %v2209
    %v2242 = vmul.f32 %v2146, %v2210
    %v2243 = vmul.f32 %v2147, %v2211
    %v2244 = vmul.f32 %v2148, %v2212
    %v2245 = vmul.f32 %v2149, %v2213
    %v2246 = vmul.f32 %v2150, %v2214
    %v2247 = vmul.f32 %v2151, %v2215
    %v2248 = vmul.f32 %v2152, %v2216
    %v2249 = vmul.f32 %v2153, %v2217
    %v2250 = vmul.f32 %v2154, %v2218
    %v2251 = vmul.f32 %v2155, %v2219
    %v2252 = vmul.f32 %v2156, %v2220
    %v2253 = vmul.f32 %v2157, %v2221
    %v2254 = vmul.f32 %v2158, %v2222
    %v2255 = vmul.f32 %v2159, %v2223
    %v2256 = vmul.f32 %v2160, %v2224
    %v2257 = vmul.f32 %v2161, %v2225
    %v2258 = vmul.f32 %v2162, %v2226
    %v2259 = vmul.f32 %v2163, %v2227
    %v2260 = vmul.f32 %v2164, %v2228
    %v2261 = vmul.f32 %v2165, %v2229
    %v2262 = vmul.f32 %v2166, %v2230
    %v2263 = vmul.f32 %v2167, %v2231
    %v2264 = vmul.f32 %v2168, %v2232
    %v2265 = vmul.f32 %v2010, %v2233
    %v2266 = vmul.f32 %v2012, %v2234
    %v2267 = vmul.f32 %v2014, %v2235
    %v2268 = vmul.f32 %v2016, %v2236
    %v2269 = vmul.f32 %v2018, %v2237
    %v2270 = vmul.f32 %v2020, %v2238
    %v2271 = vmul.f32 %v2022, %v2239
    %v2272 = vmul.f32 %v2024, %v2240
    %v2273 = vmul.f32 %v2026, %v2241
    %v2274 = vmul.f32 %v2028, %v2242
    %v2275 = vmul.f32 %v2030, %v2243
    %v2276 = vmul.f32 %v2032, %v2244
    %v2277 = vmul.f32 %v2034, %v2245
    %v2278 = vmul.f32 %v2036, %v2246
    %v2279 = vmul.f32 %v2038, %v2247
    %v2280 = vmul.f32 %v2040, %v2248
    %v2281 = vmul.f32 %v2042, %v2249
    %v2282 = vmul.f32 %v2044, %v2250
    %v2283 = vmul.f32 %v2046, %v2251
    %v2284 = vmul.f32 %v2048, %v2252
    %v2285 = vmul.f32 %v2050, %v2253
    %v2286 = vmul.f32 %v2052, %v2254
    %v2287 = vmul.f32 %v2054, %v2255
    %v2288 = vmul.f32 %v2056, %v2256
    %v2289 = vmul.f32 %v2058, %v2257
    %v2290 = vmul.f32 %v2060, %v2258
    %v2291 = vmul.f32 %v2062, %v2259
    %v2292 = vmul.f32 %v2064, %v2260
    %v2293 = vmul.f32 %v2066, %v2261
    %v2294 = vmul.f32 %v2068, %v2262
    %v2295 = vmul.f32 %v2070, %v2263
    %v2296 = vmul.f32 %v2072, %v2264
    %2297 = vst [vmem:[#allocation10] sm:$0xff] %v2265
    %2298 = vst [vmem:[#allocation10 + $0x8] sm:$0xff] %v2266
    %2299 = vst [vmem:[#allocation10 + $0x10] sm:$0xff] %v2267
    %2300 = vst [vmem:[#allocation10 + $0x18] sm:$0xff] %v2268
    %2301 = vst [vmem:[#allocation10 + $0x20] sm:$0xff] %v2269
    %2302 = vst [vmem:[#allocation10 + $0x28] sm:$0xff] %v2270
    %2303 = vst [vmem:[#allocation10 + $0x30] sm:$0xff] %v2271
    %2304 = vst [vmem:[#allocation10 + $0x38] sm:$0xff] %v2272
    %2305 = vst [vmem:[#allocation10 + $0x40] sm:$0xff] %v2273
    %2306 = vst [vmem:[#allocation10 + $0x48] sm:$0xff] %v2274
    %2307 = vst [vmem:[#allocation10 + $0x50] sm:$0xff] %v2275
    %2308 = vst [vmem:[#allocation10 + $0x58] sm:$0xff] %v2276
    %2309 = vst [vmem:[#allocation10 + $0x60] sm:$0xff] %v2277
    %2310 = vst [vmem:[#allocation10 + $0x68] sm:$0xff] %v2278
    %2311 = vst [vmem:[#allocation10 + $0x70] sm:$0xff] %v2279
    %2312 = vst [vmem:[#allocation10 + $0x78] sm:$0xff] %v2280
    %2313 = vst [vmem:[#allocation10 + $0x80] sm:$0xff] %v2281
    %2314 = vst [vmem:[#allocation10 + $0x88] sm:$0xff] %v2282
    %2315 = vst [vmem:[#allocation10 + $0x90] sm:$0xff] %v2283
    %2316 = vst [vmem:[#allocation10 + $0x98] sm:$0xff] %v2284
    %2317 = vst [vmem:[#allocation10 + $0xa0] sm:$0xff] %v2285
    %2318 = vst [vmem:[#allocation10 + $0xa8] sm:$0xff] %v2286
    %2319 = vst [vmem:[#allocation10 + $0xb0] sm:$0xff] %v2287
    %2320 = vst [vmem:[#allocation10 + $0xb8] sm:$0xff] %v2288
    %2321 = vst [vmem:[#allocation10 + $0xc0] sm:$0xff] %v2289
    %2322 = vst [vmem:[#allocation10 + $0xc8] sm:$0xff] %v2290
    %2323 = vst [vmem:[#allocation10 + $0xd0] sm:$0xff] %v2291
    %2324 = vst [vmem:[#allocation10 + $0xd8] sm:$0xff] %v2292
    %2325 = vst [vmem:[#allocation10 + $0xe0] sm:$0xff] %v2293
    %2326 = vst [vmem:[#allocation10 + $0xe8] sm:$0xff] %v2294
    %2327 = vst [vmem:[#allocation10 + $0xf0] sm:$0xff] %v2295
    %2328 = vst [vmem:[#allocation10 + $0xf8] sm:$0xff] %v2296
    // Predicated region
    $region46: #{tpu_custom_call.1} parent=1 // pred_check
      _
    $region47: #{tpu_custom_call.1} parent=1 // pred_check_branch
      %2330 = sbr.rel (0) target = $region49
    $region48: #{tpu_custom_call.1} parent=1 // pred_region
      %s2332 = ssub.s32 4096, 4096
      %2333 = vsyncadd [#allocation4], %s2332
      %s2334 = sshll.u32 [#allocation10], 4
      %s2335 = int_to_ptr.vmem [resolvable:$true] %s2334
      %2340 = dma.vmem_to_hbm [thread:$0]  %s2335, 4096, %s7, [#allocation4], 128, 128, 8
    $region49: #{tpu_custom_call.1} parent=1 // pred_fallthru
      _
    // Predicated region
    $region50: #{tpu_custom_call.1} parent=1 // pred_check
      _
    $region51: #{tpu_custom_call.1} parent=1 // pred_check_branch
      %2342 = sbr.rel (0) target = $region53
    $region52: #{tpu_custom_call.1} parent=1 // pred_region
      %2343 = dma.done [#allocation4], 4096
    $region53: #{tpu_custom_call.1} parent=1 // pred_fallthru
      _
    %2344 = vsyncpa [#allocation3], 1
    %2345 = vsyncpa [#allocation6], 1
    %2346 = vsyncpa [#allocation9], 1
    %2347 = vsyncpa [#allocation4], 1

// kernel: tpu_custom_call.1
$region0: #{tpu_custom_call.1}
  #allocation0 [shape = 'u32[]', space=smem, size = 0x4, offset = 0x4, fixed_abs, tag = 'smem constant byte address 0x4 - core index']
  #allocation1 [shape = 'u32[144,128]{1,0:T(1,128)}', space=vmem, size = 0x12000, scoped, tag = 'internal scratch']
  %s0 = inlined_call_operand.hbm [shape: bf16[256,128], index: 0, kind: input, shape index: {}]
  %s1 = inlined_call_operand.hbm [shape: bf16[128,128], index: 1, kind: input, shape index: {}]
  %s2 = inlined_call_operand.vmem [shape: f32[1,128], index: 2, kind: input, shape index: {}]
  %s3 = inlined_call_operand.hbm [shape: bf16[2,2,128,128], index: 3, kind: input, shape index: {}]
  %s4 = inlined_call_operand.vmem [shape: f32[2,2,1,128], index: 4, kind: input, shape index: {}]
  %s5 = inlined_call_operand.hbm [shape: bf16[128,128], index: 5, kind: input, shape index: {}]
  %s6 = inlined_call_operand.vmem [shape: f32[1,128], index: 6, kind: input, shape index: {}]
  %s7 = inlined_call_operand.hbm [shape: f32[256,128], index: 7, kind: output, shape index: {}]
  %s8 = sld [smem:[#allocation0]]
  $region54: #{tpu_custom_call.1} parent=0
    _
  %s10 = ssub.s32 1, %s8
  %s11 = scalar_select 0, %s10, %s8
  $region1: #{tpu_custom_call.1} parent=0
    #allocation2 [shape = 'u8[65536]{0}', space=vmem, size = 0x10000, scoped, tag = 'input window, operand 0, single buffered']
    #allocation3 [shape = 's32[1]{0}', space=sflag, size = 0x4, scoped, tag = 'scoped memory for tpu_custom_call.1']
    #allocation4 [shape = 's32[1]{0}', space=sflag, size = 0x4, scoped, tag = 'scoped memory for tpu_custom_call.1']
    #allocation5 [shape = 'u8[32768]{0}', space=vmem, size = 0x8000, scoped, tag = 'input window, operand 1, single buffered']
    #allocation6 [shape = 's32[1]{0}', space=sflag, size = 0x4, scoped, tag = 'scoped memory for tpu_custom_call.1']
    #allocation7 [shape = 'u8[131072]{0}', space=vmem, size = 0x20000, scoped, tag = 'input window, operand 3, single buffered']
    #allocation8 [shape = 'u8[32768]{0}', space=vmem, size = 0x8000, scoped, tag = 'input window, operand 5, single buffered']
    #allocation9 [shape = 's32[1]{0}', space=sflag, size = 0x4, scoped, tag = 'scoped memory for tpu_custom_call.1']
    #allocation10 [shape = 'u8[131072]{0}', space=vmem, size = 0x20000, scoped, tag = 'output window, operand 0, single buffered']
    %12 = vsyncpa [#allocation3], 0
    %13 = vsyncpa [#allocation6], 0
    %14 = vsyncpa [#allocation9], 0
    %15 = vsyncpa [#allocation4], 0
    // Predicated region
    $region2: #{tpu_custom_call.1} parent=1 // pred_check
      _
    $region3: #{tpu_custom_call.1} parent=1 // pred_check_branch
      %17 = sbr.rel (0) target = $region5
    $region4: #{tpu_custom_call.1} parent=1 // pred_region
      %s19 = ssub.s32 2048, 2048
      %20 = vsyncadd [#allocation3], %s19
      %s21 = sshll.u32 [#allocation2], 4
      %s22 = int_to_ptr.vmem [resolvable:$true] %s21
      %27 = dma.hbm_to_vmem [thread:$0]  %s0, 2048, %s22, [#allocation3], 64, 64, 4
    $region5: #{tpu_custom_call.1} parent=1 // pred_fallthru
      _
    // Predicated region
    $region6: #{tpu_custom_call.1} parent=1 // pred_check
      _
    $region7: #{tpu_custom_call.1} parent=1 // pred_check_branch
      %29 = sbr.rel (0) target = $region9
    $region8: #{tpu_custom_call.1} parent=1 // pred_region
      %s31 = ssub.s32 1024, 1024
      %32 = vsyncadd [#allocation6], %s31
      %s33 = sshll.u32 [#allocation5], 4
      %s34 = int_to_ptr.vmem [resolvable:$true] %s33
      %39 = dma.hbm_to_vmem [thread:$0]  %s1, 1024, %s34, [#allocation6], 64, 64, 4
    $region9: #{tpu_custom_call.1} parent=1 // pred_fallthru
      _
    // Predicated region
    $region10: #{tpu_custom_call.1} parent=1 // pred_check
      _
    $region11: #{tpu_custom_call.1} parent=1 // pred_check_branch
      %41 = sbr.rel (0) target = $region13
    $region12: #{tpu_custom_call.1} parent=1 // pred_region
      _
    $region13: #{tpu_custom_call.1} parent=1 // pred_fallthru
      _
    // Predicated region
    $region14: #{tpu_custom_call.1} parent=1 // pred_check
      _
    $region15: #{tpu_custom_call.1} parent=1 // pred_check_branch
      %43 = sbr.rel (0) target = $region17
    $region16: #{tpu_custom_call.1} parent=1 // pred_region
      %s45 = ssub.s32 4096, 4096
      %46 = vsyncadd [#allocation6], %s45
      %s47 = sshll.u32 [#allocation7], 4
      %s48 = int_to_ptr.vmem [resolvable:$true] %s47
      %53 = dma.hbm_to_vmem [thread:$0]  %s3, 4096, %s48, [#allocation6], 64, 64, 4
    $region17: #{tpu_custom_call.1} parent=1 // pred_fallthru
      _
    // Predicated region
    $region18: #{tpu_custom_call.1} parent=1 // pred_check
      _
    $region19: #{tpu_custom_call.1} parent=1 // pred_check_branch
      %55 = sbr.rel (0) target = $region21
    $region20: #{tpu_custom_call.1} parent=1 // pred_region
      _
    $region21: #{tpu_custom_call.1} parent=1 // pred_fallthru
      _
    // Predicated region
    $region22: #{tpu_custom_call.1} parent=1 // pred_check
      _
    $region23: #{tpu_custom_call.1} parent=1 // pred_check_branch
      %57 = sbr.rel (0) target = $region25
    $region24: #{tpu_custom_call.1} parent=1 // pred_region
      %s59 = ssub.s32 1024, 1024
      %60 = vsyncadd [#allocation9], %s59
      %s61 = sshll.u32 [#allocation8], 4
      %s62 = int_to_ptr.vmem [resolvable:$true] %s61
      %67 = dma.hbm_to_vmem [thread:$0]  %s5, 1024, %s62, [#allocation9], 64, 64, 4
    $region25: #{tpu_custom_call.1} parent=1 // pred_fallthru
      _
    // Predicated region
    $region26: #{tpu_custom_call.1} parent=1 // pred_check
      _
    $region27: #{tpu_custom_call.1} parent=1 // pred_check_branch
      %69 = sbr.rel (0) target = $region29
    $region28: #{tpu_custom_call.1} parent=1 // pred_region
      _
    $region29: #{tpu_custom_call.1} parent=1 // pred_fallthru
      _
    // Predicated region
    $region30: #{tpu_custom_call.1} parent=1 // pred_check
      _
    $region31: #{tpu_custom_call.1} parent=1 // pred_check_branch
      %71 = sbr.rel (0) target = $region33
    $region32: #{tpu_custom_call.1} parent=1 // pred_region
      %72 = dma.done [#allocation3], 2048
    $region33: #{tpu_custom_call.1} parent=1 // pred_fallthru
      _
    // Predicated region
    $region34: #{tpu_custom_call.1} parent=1 // pred_check
      _
    $region35: #{tpu_custom_call.1} parent=1 // pred_check_branch
      %74 = sbr.rel (0) target = $region37
    $region36: #{tpu_custom_call.1} parent=1 // pred_region
      %75 = dma.done [#allocation6], 1024
    $region37: #{tpu_custom_call.1} parent=1 // pred_fallthru
      _
    // Predicated region
    $region38: #{tpu_custom_call.1} parent=1 // pred_check
      _
    $region39: #{tpu_custom_call.1} parent=1 // pred_check_branch
      %77 = sbr.rel (0) target = $region41
    $region40: #{tpu_custom_call.1} parent=1 // pred_region
      %78 = dma.done [#allocation6], 4096
    $region41: #{tpu_custom_call.1} parent=1 // pred_fallthru
      _
    // Predicated region
    $region42: #{tpu_custom_call.1} parent=1 // pred_check
      _
    $region43: #{tpu_custom_call.1} parent=1 // pred_check_branch
      %80 = sbr.rel (0) target = $region45
    $region44: #{tpu_custom_call.1} parent=1 // pred_region
      %81 = dma.done [#allocation9], 1024
    $region45: #{tpu_custom_call.1} parent=1 // pred_fallthru
      _
    %v83 = vld [vmem:[#allocation2] sm:$0xf]
    %v84 = vld [vmem:[#allocation2 + $0x4] sm:$0xf]
    %v85 = vld [vmem:[#allocation2 + $0x8] sm:$0xf]
    %v86 = vld [vmem:[#allocation2 + $0xc] sm:$0xf]
    %v87 = vld [vmem:[#allocation2 + $0x10] sm:$0xf]
    %v88 = vld [vmem:[#allocation2 + $0x14] sm:$0xf]
    %v89 = vld [vmem:[#allocation2 + $0x18] sm:$0xf]
    %v90 = vld [vmem:[#allocation2 + $0x1c] sm:$0xf]
    %v91 = vld [vmem:[#allocation2 + $0x20] sm:$0xf]
    %v92 = vld [vmem:[#allocation2 + $0x24] sm:$0xf]
    %v93 = vld [vmem:[#allocation2 + $0x28] sm:$0xf]
    %v94 = vld [vmem:[#allocation2 + $0x2c] sm:$0xf]
    %v95 = vld [vmem:[#allocation2 + $0x30] sm:$0xf]
    %v96 = vld [vmem:[#allocation2 + $0x34] sm:$0xf]
    %v97 = vld [vmem:[#allocation2 + $0x38] sm:$0xf]
    %v98 = vld [vmem:[#allocation2 + $0x3c] sm:$0xf]
    %v99 = vld [vmem:[#allocation2 + $0x40] sm:$0xf]
    %v100 = vld [vmem:[#allocation2 + $0x44] sm:$0xf]
    %v101 = vld [vmem:[#allocation2 + $0x48] sm:$0xf]
    %v102 = vld [vmem:[#allocation2 + $0x4c] sm:$0xf]
    %v103 = vld [vmem:[#allocation2 + $0x50] sm:$0xf]
    %v104 = vld [vmem:[#allocation2 + $0x54] sm:$0xf]
    %v105 = vld [vmem:[#allocation2 + $0x58] sm:$0xf]
    %v106 = vld [vmem:[#allocation2 + $0x5c] sm:$0xf]
    %v107 = vld [vmem:[#allocation2 + $0x60] sm:$0xf]
    %v108 = vld [vmem:[#allocation2 + $0x64] sm:$0xf]
    %v109 = vld [vmem:[#allocation2 + $0x68] sm:$0xf]
    %v110 = vld [vmem:[#allocation2 + $0x6c] sm:$0xf]
    %v111 = vld [vmem:[#allocation2 + $0x70] sm:$0xf]
    %v112 = vld [vmem:[#allocation2 + $0x74] sm:$0xf]
    %v113 = vld [vmem:[#allocation2 + $0x78] sm:$0xf]
    %v114 = vld [vmem:[#allocation2 + $0x7c] sm:$0xf]
    %v115 = vld [vmem:[#allocation5] sm:$0xf]
    %v116 = vld [vmem:[#allocation5 + $0x4] sm:$0xf]
    %v117 = vld [vmem:[#allocation5 + $0x8] sm:$0xf]
    %v118 = vld [vmem:[#allocation5 + $0xc] sm:$0xf]
    %v119 = vld [vmem:[#allocation5 + $0x10] sm:$0xf]
    %v120 = vld [vmem:[#allocation5 + $0x14] sm:$0xf]
    %v121 = vld [vmem:[#allocation5 + $0x18] sm:$0xf]
    %v122 = vld [vmem:[#allocation5 + $0x1c] sm:$0xf]
    %v123 = vld [vmem:[#allocation5 + $0x20] sm:$0xf]
    %v124 = vld [vmem:[#allocation5 + $0x24] sm:$0xf]
    %v125 = vld [vmem:[#allocation5 + $0x28] sm:$0xf]
    %v126 = vld [vmem:[#allocation5 + $0x2c] sm:$0xf]
    %v127 = vld [vmem:[#allocation5 + $0x30] sm:$0xf]
    %v128 = vld [vmem:[#allocation5 + $0x34] sm:$0xf]
    %v129 = vld [vmem:[#allocation5 + $0x38] sm:$0xf]
    %v130 = vld [vmem:[#allocation5 + $0x3c] sm:$0xf]
    %v131 = vld [vmem:[%s2] sm:$0x1]
    %v133 = vlaneseq
    %v134 = vshrl.u32 %v133, 7
    %v135 = vsub.s32 0, %v134
    %v136 = vrot.slane %v131, %v135
    %v170 = vunpack.c.l.b16 %v83
    %v171 = vunpack.c.l.b16 %v84
    %v172 = vunpack.c.l.b16 %v85
    %v173 = vunpack.c.l.b16 %v86
    %v174 = vunpack.c.l.b16 %v87
    %v175 = vunpack.c.l.b16 %v88
    %v176 = vunpack.c.l.b16 %v89
    %v177 = vunpack.c.l.b16 %v90
    %v178 = vunpack.c.l.b16 %v91
    %v179 = vunpack.c.l.b16 %v92
    %v180 = vunpack.c.l.b16 %v93
    %v181 = vunpack.c.l.b16 %v94
    %v182 = vunpack.c.l.b16 %v95
    %v183 = vunpack.c.l.b16 %v96
    %v184 = vunpack.c.l.b16 %v97
    %v185 = vunpack.c.l.b16 %v98
    %v186 = vunpack.c.l.b16 %v99
    %v187 = vunpack.c.l.b16 %v100
    %v188 = vunpack.c.l.b16 %v101
    %v189 = vunpack.c.l.b16 %v102
    %v190 = vunpack.c.l.b16 %v103
    %v191 = vunpack.c.l.b16 %v104
    %v192 = vunpack.c.l.b16 %v105
    %v193 = vunpack.c.l.b16 %v106
    %v194 = vunpack.c.l.b16 %v107
    %v195 = vunpack.c.l.b16 %v108
    %v196 = vunpack.c.l.b16 %v109
    %v197 = vunpack.c.l.b16 %v110
    %v198 = vunpack.c.l.b16 %v111
    %v199 = vunpack.c.l.b16 %v112
    %v200 = vunpack.c.l.b16 %v113
    %v201 = vunpack.c.l.b16 %v114
    %v202 = vpack.c.b16 %v171, %v170
    %v203 = vpack.c.b16 %v173, %v172
    %v204 = vpack.c.b16 %v175, %v174
    %v205 = vpack.c.b16 %v177, %v176
    %v206 = vpack.c.b16 %v179, %v178
    %v207 = vpack.c.b16 %v181, %v180
    %v208 = vpack.c.b16 %v183, %v182
    %v209 = vpack.c.b16 %v185, %v184
    %v210 = vpack.c.b16 %v187, %v186
    %v211 = vpack.c.b16 %v189, %v188
    %v212 = vpack.c.b16 %v191, %v190
    %v213 = vpack.c.b16 %v193, %v192
    %v214 = vpack.c.b16 %v195, %v194
    %v215 = vpack.c.b16 %v197, %v196
    %v216 = vpack.c.b16 %v199, %v198
    %v217 = vpack.c.b16 %v201, %v200
    %v250 = vunpack.c.l.b16 %v115
    %v251 = vunpack.c.l.b16 %v116
    %v252 = vunpack.c.l.b16 %v117
    %v253 = vunpack.c.l.b16 %v118
    %v254 = vunpack.c.l.b16 %v119
    %v255 = vunpack.c.l.b16 %v120
    %v256 = vunpack.c.l.b16 %v121
    %v257 = vunpack.c.l.b16 %v122
    %v258 = vunpack.c.l.b16 %v123
    %v259 = vunpack.c.l.b16 %v124
    %v260 = vunpack.c.l.b16 %v125
    %v261 = vunpack.c.l.b16 %v126
    %v262 = vunpack.c.l.b16 %v127
    %v263 = vunpack.c.l.b16 %v128
    %v264 = vunpack.c.l.b16 %v129
    %v265 = vunpack.c.l.b16 %v130
    %v266 = vpack.c.b16 %v251, %v250
    %v267 = vpack.c.b16 %v253, %v252
    %v268 = vpack.c.b16 %v255, %v254
    %v269 = vpack.c.b16 %v257, %v256
    %v270 = vpack.c.b16 %v259, %v258
    %v271 = vpack.c.b16 %v261, %v260
    %v272 = vpack.c.b16 %v263, %v262
    %v273 = vpack.c.b16 %v265, %v264
    %282 = vmatprep.subr.bf16.mxu0 0
    %283 = vmatpush1.bf16.msra.mxu0 %v266
    %284 = vmatprep.subr.bf16.mxu0 0
    %285 = vmatpush1.bf16.msra.mxu0 %v267
    %286 = vmatprep.subr.bf16.mxu0 0
    %287 = vmatpush1.bf16.msra.mxu0 %v268
    %288 = vmatprep.subr.bf16.mxu0 0
    %289 = vmatpush1.bf16.msra.mxu0 %v269
    %290 = vmatprep.subr.bf16.mxu0 0
    %291 = vmatpush1.bf16.msra.mxu0 %v270
    %292 = vmatprep.subr.bf16.mxu0 0
    %293 = vmatpush1.bf16.msra.mxu0 %v271
    %294 = vmatprep.subr.bf16.mxu0 0
    %295 = vmatpush1.bf16.msra.mxu0 %v272
    %296 = vmatprep.subr.bf16.mxu0 0
    %297 = vmatpush1.bf16.msra.mxu0 %v273
    %298 = vmatprep.subr.bf16.mxu0 0
    %299 = vmatpush1.bf16.msra.mxu0 0
    %300 = vmatprep.subr.bf16.mxu0 0
    %301 = vmatpush1.bf16.msra.mxu0 0
    %302 = vmatprep.subr.bf16.mxu0 0
    %303 = vmatpush1.bf16.msra.mxu0 0
    %304 = vmatprep.subr.bf16.mxu0 0
    %305 = vmatpush1.bf16.msra.mxu0 0
    %306 = vmatprep.subr.bf16.mxu0 0
    %307 = vmatpush1.bf16.msra.mxu0 0
    %308 = vmatprep.subr.bf16.mxu0 0
    %309 = vmatpush1.bf16.msra.mxu0 0
    %310 = vmatprep.subr.bf16.mxu0 0
    %311 = vmatpush1.bf16.msra.mxu0 0
    %312 = vmatprep.subr.bf16.mxu0 0
    %313 = vmatpush1.bf16.msra.mxu0 0
    %314 = vmatprep.mubr.bf16.mxu0 0
    %315 = vmatmul.mubr.bf16.gmra.mrb[0].mxu0 %v202
    %v316 = vpop.f32.mrb[0].mxu0
    %v317 = vadd.f32 %v136, %v316
    %v318 = vpop.f32.mrb[0].mxu0
    %v319 = vpop.f32.mrb[0].mxu0
    %v320 = vadd.f32 %v136, %v319
    %v321 = vpop.f32.mrb[0].mxu0
    %322 = vmatprep.mubr.bf16.mxu0 0
    %323 = vmatmul.mubr.bf16.gmra.mrb[0].mxu0 %v203
    %v324 = vpop.f32.mrb[0].mxu0
    %v325 = vadd.f32 %v136, %v324
    %v326 = vpop.f32.mrb[0].mxu0
    %v327 = vpop.f32.mrb[0].mxu0
    %v328 = vadd.f32 %v136, %v327
    %v329 = vpop.f32.mrb[0].mxu0
    %330 = vmatprep.mubr.bf16.mxu0 0
    %331 = vmatmul.mubr.bf16.gmra.mrb[0].mxu0 %v204
    %v332 = vpop.f32.mrb[0].mxu0
    %v333 = vadd.f32 %v136, %v332
    %v334 = vpop.f32.mrb[0].mxu0
    %v335 = vpop.f32.mrb[0].mxu0
    %v336 = vadd.f32 %v136, %v335
    %v337 = vpop.f32.mrb[0].mxu0
    %338 = vmatprep.mubr.bf16.mxu0 0
    %339 = vmatmul.mubr.bf16.gmra.mrb[0].mxu0 %v205
    %v340 = vpop.f32.mrb[0].mxu0
    %v341 = vadd.f32 %v136, %v340
    %v342 = vpop.f32.mrb[0].mxu0
    %v343 = vpop.f32.mrb[0].mxu0
    %v344 = vadd.f32 %v136, %v343
    %v345 = vpop.f32.mrb[0].mxu0
    %346 = vmatprep.mubr.bf16.mxu0 0
    %347 = vmatmul.mubr.bf16.gmra.mrb[0].mxu0 %v206
    %v348 = vpop.f32.mrb[0].mxu0
    %v349 = vadd.f32 %v136, %v348
    %v350 = vpop.f32.mrb[0].mxu0
    %v351 = vpop.f32.mrb[0].mxu0
    %v352 = vadd.f32 %v136, %v351
    %v353 = vpop.f32.mrb[0].mxu0
    %354 = vmatprep.mubr.bf16.mxu0 0
    %355 = vmatmul.mubr.bf16.gmra.mrb[0].mxu0 %v207
    %v356 = vpop.f32.mrb[0].mxu0
    %v357 = vadd.f32 %v136, %v356
    %v358 = vpop.f32.mrb[0].mxu0
    %v359 = vpop.f32.mrb[0].mxu0
    %v360 = vadd.f32 %v136, %v359
    %v361 = vpop.f32.mrb[0].mxu0
    %362 = vmatprep.mubr.bf16.mxu0 0
    %363 = vmatmul.mubr.bf16.gmra.mrb[0].mxu0 %v208
    %v364 = vpop.f32.mrb[0].mxu0
    %v365 = vadd.f32 %v136, %v364
    %v366 = vpop.f32.mrb[0].mxu0
    %v367 = vpop.f32.mrb[0].mxu0
    %v368 = vadd.f32 %v136, %v367
    %v369 = vpop.f32.mrb[0].mxu0
    %370 = vmatprep.mubr.bf16.mxu0 0
    %371 = vmatmul.mubr.bf16.gmra.mrb[0].mxu0 %v209
    %v372 = vpop.f32.mrb[0].mxu0
    %v373 = vadd.f32 %v136, %v372
    %v374 = vpop.f32.mrb[0].mxu0
    %v375 = vpop.f32.mrb[0].mxu0
    %v376 = vadd.f32 %v136, %v375
    %v377 = vpop.f32.mrb[0].mxu0
    %378 = vmatprep.mubr.bf16.mxu0 0
    %379 = vmatmul.mubr.bf16.gmra.mrb[0].mxu0 %v210
    %v380 = vpop.f32.mrb[0].mxu0
    %v381 = vadd.f32 %v136, %v380
    %v382 = vpop.f32.mrb[0].mxu0
    %v383 = vpop.f32.mrb[0].mxu0
    %v384 = vadd.f32 %v136, %v383
    %v385 = vpop.f32.mrb[0].mxu0
    %386 = vmatprep.mubr.bf16.mxu0 0
    %387 = vmatmul.mubr.bf16.gmra.mrb[0].mxu0 %v211
    %v388 = vpop.f32.mrb[0].mxu0
    %v389 = vadd.f32 %v136, %v388
    %v390 = vpop.f32.mrb[0].mxu0
    %v391 = vpop.f32.mrb[0].mxu0
    %v392 = vadd.f32 %v136, %v391
    %v393 = vpop.f32.mrb[0].mxu0
    %394 = vmatprep.mubr.bf16.mxu0 0
    %395 = vmatmul.mubr.bf16.gmra.mrb[0].mxu0 %v212
    %v396 = vpop.f32.mrb[0].mxu0
    %v397 = vadd.f32 %v136, %v396
    %v398 = vpop.f32.mrb[0].mxu0
    %v399 = vpop.f32.mrb[0].mxu0
    %v400 = vadd.f32 %v136, %v399
    %v401 = vpop.f32.mrb[0].mxu0
    %402 = vmatprep.mubr.bf16.mxu0 0
    %403 = vmatmul.mubr.bf16.gmra.mrb[0].mxu0 %v213
    %v404 = vpop.f32.mrb[0].mxu0
    %v405 = vadd.f32 %v136, %v404
    %v406 = vpop.f32.mrb[0].mxu0
    %v407 = vpop.f32.mrb[0].mxu0
    %v408 = vadd.f32 %v136, %v407
    %v409 = vpop.f32.mrb[0].mxu0
    %410 = vmatprep.mubr.bf16.mxu0 0
    %411 = vmatmul.mubr.bf16.gmra.mrb[0].mxu0 %v214
    %v412 = vpop.f32.mrb[0].mxu0
    %v413 = vadd.f32 %v136, %v412
    %v414 = vpop.f32.mrb[0].mxu0
    %v415 = vpop.f32.mrb[0].mxu0
    %v416 = vadd.f32 %v136, %v415
    %v417 = vpop.f32.mrb[0].mxu0
    %418 = vmatprep.mubr.bf16.mxu0 0
    %419 = vmatmul.mubr.bf16.gmra.mrb[0].mxu0 %v215
    %v420 = vpop.f32.mrb[0].mxu0
    %v421 = vadd.f32 %v136, %v420
    %v422 = vpop.f32.mrb[0].mxu0
    %v423 = vpop.f32.mrb[0].mxu0
    %v424 = vadd.f32 %v136, %v423
    %v425 = vpop.f32.mrb[0].mxu0
    %426 = vmatprep.mubr.bf16.mxu0 0
    %427 = vmatmul.mubr.bf16.gmra.mrb[0].mxu0 %v216
    %v428 = vpop.f32.mrb[0].mxu0
    %v429 = vadd.f32 %v136, %v428
    %v430 = vpop.f32.mrb[0].mxu0
    %v431 = vpop.f32.mrb[0].mxu0
    %v432 = vadd.f32 %v136, %v431
    %v433 = vpop.f32.mrb[0].mxu0
    %434 = vmatprep.mubr.bf16.mxu0 0
    %435 = vmatmul.mubr.bf16.gmra.mrb[0].mxu0 %v217
    %v436 = vpop.f32.mrb[0].mxu0
    %v437 = vadd.f32 %v136, %v436
    %v438 = vpop.f32.mrb[0].mxu0
    %v439 = vpop.f32.mrb[0].mxu0
    %v440 = vadd.f32 %v136, %v439
    %v441 = vpop.f32.mrb[0].mxu0
    %442 = vdwg.mxu0
    %v443 = vtanh.pop %v317
    %v444 = vtanh.pop %v320
    %v445 = vtanh.pop %v325
    %v446 = vtanh.pop %v328
    %v447 = vtanh.pop %v333
    %v448 = vtanh.pop %v336
    %v449 = vtanh.pop %v341
    %v450 = vtanh.pop %v344
    %v451 = vtanh.pop %v349
    %v452 = vtanh.pop %v352
    %v453 = vtanh.pop %v357
    %v454 = vtanh.pop %v360
    %v455 = vtanh.pop %v365
    %v456 = vtanh.pop %v368
    %v457 = vtanh.pop %v373
    %v458 = vtanh.pop %v376
    %v459 = vtanh.pop %v381
    %v460 = vtanh.pop %v384
    %v461 = vtanh.pop %v389
    %v462 = vtanh.pop %v392
    %v463 = vtanh.pop %v397
    %v464 = vtanh.pop %v400
    %v465 = vtanh.pop %v405
    %v466 = vtanh.pop %v408
    %v467 = vtanh.pop %v413
    %v468 = vtanh.pop %v416
    %v469 = vtanh.pop %v421
    %v470 = vtanh.pop %v424
    %v471 = vtanh.pop %v429
    %v472 = vtanh.pop %v432
    %v473 = vtanh.pop %v437
    %v474 = vtanh.pop %v440
    %v475 = vld [vmem:[#allocation7] sm:$0xf]
    %v476 = vld [vmem:[#allocation7 + $0x4] sm:$0xf]
    %v477 = vld [vmem:[#allocation7 + $0x8] sm:$0xf]
    %v478 = vld [vmem:[#allocation7 + $0xc] sm:$0xf]
    %v479 = vld [vmem:[#allocation7 + $0x10] sm:$0xf]
    %v480 = vld [vmem:[#allocation7 + $0x14] sm:$0xf]
    %v481 = vld [vmem:[#allocation7 + $0x18] sm:$0xf]
    %v482 = vld [vmem:[#allocation7 + $0x1c] sm:$0xf]
    %v483 = vld [vmem:[#allocation7 + $0x20] sm:$0xf]
    %v484 = vld [vmem:[#allocation7 + $0x24] sm:$0xf]
    %v485 = vld [vmem:[#allocation7 + $0x28] sm:$0xf]
    %v486 = vld [vmem:[#allocation7 + $0x2c] sm:$0xf]
    %v487 = vld [vmem:[#allocation7 + $0x30] sm:$0xf]
    %v488 = vld [vmem:[#allocation7 + $0x34] sm:$0xf]
    %v489 = vld [vmem:[#allocation7 + $0x38] sm:$0xf]
    %v490 = vld [vmem:[#allocation7 + $0x3c] sm:$0xf]
    %v491 = vld [vmem:[%s4] sm:$0x1]
    %s492 = scalar_lea.vmem [#allocation7], 64
    %v493 = vld [vmem:[%s492] sm:$0xf]
    %v494 = vld [vmem:[%s492 + $0x4] sm:$0xf]
    %v495 = vld [vmem:[%s492 + $0x8] sm:$0xf]
    %v496 = vld [vmem:[%s492 + $0xc] sm:$0xf]
    %v497 = vld [vmem:[%s492 + $0x10] sm:$0xf]
    %v498 = vld [vmem:[%s492 + $0x14] sm:$0xf]
    %v499 = vld [vmem:[%s492 + $0x18] sm:$0xf]
    %v500 = vld [vmem:[%s492 + $0x1c] sm:$0xf]
    %v501 = vld [vmem:[%s492 + $0x20] sm:$0xf]
    %v502 = vld [vmem:[%s492 + $0x24] sm:$0xf]
    %v503 = vld [vmem:[%s492 + $0x28] sm:$0xf]
    %v504 = vld [vmem:[%s492 + $0x2c] sm:$0xf]
    %v505 = vld [vmem:[%s492 + $0x30] sm:$0xf]
    %v506 = vld [vmem:[%s492 + $0x34] sm:$0xf]
    %v507 = vld [vmem:[%s492 + $0x38] sm:$0xf]
    %v508 = vld [vmem:[%s492 + $0x3c] sm:$0xf]
    %s509 = scalar_lea.vmem %s4, 1
    %v510 = vld [vmem:[%s509] sm:$0x1]
    %v511 = vpack.c.bf16 %v444, %v443
    %v512 = vpack.c.bf16 %v446, %v445
    %v513 = vpack.c.bf16 %v448, %v447
    %v514 = vpack.c.bf16 %v450, %v449
    %v515 = vpack.c.bf16 %v452, %v451
    %v516 = vpack.c.bf16 %v454, %v453
    %v517 = vpack.c.bf16 %v456, %v455
    %v518 = vpack.c.bf16 %v458, %v457
    %v519 = vpack.c.bf16 %v460, %v459
    %v520 = vpack.c.bf16 %v462, %v461
    %v521 = vpack.c.bf16 %v464, %v463
    %v522 = vpack.c.bf16 %v466, %v465
    %v523 = vpack.c.bf16 %v468, %v467
    %v524 = vpack.c.bf16 %v470, %v469
    %v525 = vpack.c.bf16 %v472, %v471
    %v526 = vpack.c.bf16 %v474, %v473
    %v528 = vlaneseq
    %v529 = vshrl.u32 %v528, 7
    %v530 = vsub.s32 0, %v529
    %v531 = vrot.slane %v491, %v530
    %v549 = vunpack.c.l.b16 %v475
    %v550 = vunpack.c.l.b16 %v476
    %v551 = vunpack.c.l.b16 %v477
    %v552 = vunpack.c.l.b16 %v478
    %v553 = vunpack.c.l.b16 %v479
    %v554 = vunpack.c.l.b16 %v480
    %v555 = vunpack.c.l.b16 %v481
    %v556 = vunpack.c.l.b16 %v482
    %v557 = vunpack.c.l.b16 %v483
    %v558 = vunpack.c.l.b16 %v484
    %v559 = vunpack.c.l.b16 %v485
    %v560 = vunpack.c.l.b16 %v486
    %v561 = vunpack.c.l.b16 %v487
    %v562 = vunpack.c.l.b16 %v488
    %v563 = vunpack.c.l.b16 %v489
    %v564 = vunpack.c.l.b16 %v490
    %v565 = vpack.c.b16 %v550, %v549
    %v566 = vpack.c.b16 %v552, %v551
    %v567 = vpack.c.b16 %v554, %v553
    %v568 = vpack.c.b16 %v556, %v555
    %v569 = vpack.c.b16 %v558, %v557
    %v570 = vpack.c.b16 %v560, %v559
    %v571 = vpack.c.b16 %v562, %v561
    %v572 = vpack.c.b16 %v564, %v563
    %581 = vmatprep.subr.bf16.mxu0 0
    %582 = vmatpush1.bf16.msra.mxu0 %v565
    %583 = vmatprep.subr.bf16.mxu0 0
    %584 = vmatpush1.bf16.msra.mxu0 %v566
    %585 = vmatprep.subr.bf16.mxu0 0
    %586 = vmatpush1.bf16.msra.mxu0 %v567
    %587 = vmatprep.subr.bf16.mxu0 0
    %588 = vmatpush1.bf16.msra.mxu0 %v568
    %589 = vmatprep.subr.bf16.mxu0 0
    %590 = vmatpush1.bf16.msra.mxu0 %v569
    %591 = vmatprep.subr.bf16.mxu0 0
    %592 = vmatpush1.bf16.msra.mxu0 %v570
    %593 = vmatprep.subr.bf16.mxu0 0
    %594 = vmatpush1.bf16.msra.mxu0 %v571
    %595 = vmatprep.subr.bf16.mxu0 0
    %596 = vmatpush1.bf16.msra.mxu0 %v572
    %597 = vmatprep.subr.bf16.mxu0 0
    %598 = vmatpush1.bf16.msra.mxu0 0
    %599 = vmatprep.subr.bf16.mxu0 0
    %600 = vmatpush1.bf16.msra.mxu0 0
    %601 = vmatprep.subr.bf16.mxu0 0
    %602 = vmatpush1.bf16.msra.mxu0 0
    %603 = vmatprep.subr.bf16.mxu0 0
    %604 = vmatpush1.bf16.msra.mxu0 0
    %605 = vmatprep.subr.bf16.mxu0 0
    %606 = vmatpush1.bf16.msra.mxu0 0
    %607 = vmatprep.subr.bf16.mxu0 0
    %608 = vmatpush1.bf16.msra.mxu0 0
    %609 = vmatprep.subr.bf16.mxu0 0
    %610 = vmatpush1.bf16.msra.mxu0 0
    %611 = vmatprep.subr.bf16.mxu0 0
    %612 = vmatpush1.bf16.msra.mxu0 0
    %613 = vmatprep.mubr.bf16.mxu0 0
    %614 = vmatmul.mubr.bf16.gmra.mrb[0].mxu0 %v511
    %v615 = vpop.f32.mrb[0].mxu0
    %v616 = vadd.f32 %v531, %v615
    %v617 = vpop.f32.mrb[0].mxu0
    %v618 = vpop.f32.mrb[0].mxu0
    %v619 = vadd.f32 %v531, %v618
    %v620 = vpop.f32.mrb[0].mxu0
    %621 = vmatprep.mubr.bf16.mxu0 0
    %622 = vmatmul.mubr.bf16.gmra.mrb[0].mxu0 %v512
    %v623 = vpop.f32.mrb[0].mxu0
    %v624 = vadd.f32 %v531, %v623
    %v625 = vpop.f32.mrb[0].mxu0
    %v626 = vpop.f32.mrb[0].mxu0
    %v627 = vadd.f32 %v531, %v626
    %v628 = vpop.f32.mrb[0].mxu0
    %629 = vmatprep.mubr.bf16.mxu0 0
    %630 = vmatmul.mubr.bf16.gmra.mrb[0].mxu0 %v513
    %v631 = vpop.f32.mrb[0].mxu0
    %v632 = vadd.f32 %v531, %v631
    %v633 = vpop.f32.mrb[0].mxu0
    %v634 = vpop.f32.mrb[0].mxu0
    %v635 = vadd.f32 %v531, %v634
    %v636 = vpop.f32.mrb[0].mxu0
    %637 = vmatprep.mubr.bf16.mxu0 0
    %638 = vmatmul.mubr.bf16.gmra.mrb[0].mxu0 %v514
    %v639 = vpop.f32.mrb[0].mxu0
    %v640 = vadd.f32 %v531, %v639
    %v641 = vpop.f32.mrb[0].mxu0
    %v642 = vpop.f32.mrb[0].mxu0
    %v643 = vadd.f32 %v531, %v642
    %v644 = vpop.f32.mrb[0].mxu0
    %645 = vmatprep.mubr.bf16.mxu0 0
    %646 = vmatmul.mubr.bf16.gmra.mrb[0].mxu0 %v515
    %v647 = vpop.f32.mrb[0].mxu0
    %v648 = vadd.f32 %v531, %v647
    %v649 = vpop.f32.mrb[0].mxu0
    %v650 = vpop.f32.mrb[0].mxu0
    %v651 = vadd.f32 %v531, %v650
    %v652 = vpop.f32.mrb[0].mxu0
    %653 = vmatprep.mubr.bf16.mxu0 0
    %654 = vmatmul.mubr.bf16.gmra.mrb[0].mxu0 %v516
    %v655 = vpop.f32.mrb[0].mxu0
    %v656 = vadd.f32 %v531, %v655
    %v657 = vpop.f32.mrb[0].mxu0
    %v658 = vpop.f32.mrb[0].mxu0
    %v659 = vadd.f32 %v531, %v658
    %v660 = vpop.f32.mrb[0].mxu0
    %661 = vmatprep.mubr.bf16.mxu0 0
    %662 = vmatmul.mubr.bf16.gmra.mrb[0].mxu0 %v517
    %v663 = vpop.f32.mrb[0].mxu0
    %v664 = vadd.f32 %v531, %v663
    %v665 = vpop.f32.mrb[0].mxu0
    %v666 = vpop.f32.mrb[0].mxu0
    %v667 = vadd.f32 %v531, %v666
    %v668 = vpop.f32.mrb[0].mxu0
    %669 = vmatprep.mubr.bf16.mxu0 0
    %670 = vmatmul.mubr.bf16.gmra.mrb[0].mxu0 %v518
    %v671 = vpop.f32.mrb[0].mxu0
    %v672 = vadd.f32 %v531, %v671
    %v673 = vpop.f32.mrb[0].mxu0
    %v674 = vpop.f32.mrb[0].mxu0
    %v675 = vadd.f32 %v531, %v674
    %v676 = vpop.f32.mrb[0].mxu0
    %677 = vmatprep.mubr.bf16.mxu0 0
    %678 = vmatmul.mubr.bf16.gmra.mrb[0].mxu0 %v519
    %v679 = vpop.f32.mrb[0].mxu0
    %v680 = vadd.f32 %v531, %v679
    %v681 = vpop.f32.mrb[0].mxu0
    %v682 = vpop.f32.mrb[0].mxu0
    %v683 = vadd.f32 %v531, %v682
    %v684 = vpop.f32.mrb[0].mxu0
    %685 = vmatprep.mubr.bf16.mxu0 0
    %686 = vmatmul.mubr.bf16.gmra.mrb[0].mxu0 %v520
    %v687 = vpop.f32.mrb[0].mxu0
    %v688 = vadd.f32 %v531, %v687
    %v689 = vpop.f32.mrb[0].mxu0
    %v690 = vpop.f32.mrb[0].mxu0
    %v691 = vadd.f32 %v531, %v690
    %v692 = vpop.f32.mrb[0].mxu0
    %693 = vmatprep.mubr.bf16.mxu0 0
    %694 = vmatmul.mubr.bf16.gmra.mrb[0].mxu0 %v521
    %v695 = vpop.f32.mrb[0].mxu0
    %v696 = vadd.f32 %v531, %v695
    %v697 = vpop.f32.mrb[0].mxu0
    %v698 = vpop.f32.mrb[0].mxu0
    %v699 = vadd.f32 %v531, %v698
    %v700 = vpop.f32.mrb[0].mxu0
    %701 = vmatprep.mubr.bf16.mxu0 0
    %702 = vmatmul.mubr.bf16.gmra.mrb[0].mxu0 %v522
    %v703 = vpop.f32.mrb[0].mxu0
    %v704 = vadd.f32 %v531, %v703
    %v705 = vpop.f32.mrb[0].mxu0
    %v706 = vpop.f32.mrb[0].mxu0
    %v707 = vadd.f32 %v531, %v706
    %v708 = vpop.f32.mrb[0].mxu0
    %709 = vmatprep.mubr.bf16.mxu0 0
    %710 = vmatmul.mubr.bf16.gmra.mrb[0].mxu0 %v523
    %v711 = vpop.f32.mrb[0].mxu0
    %v712 = vadd.f32 %v531, %v711
    %v713 = vpop.f32.mrb[0].mxu0
    %v714 = vpop.f32.mrb[0].mxu0
    %v715 = vadd.f32 %v531, %v714
    %v716 = vpop.f32.mrb[0].mxu0
    %717 = vmatprep.mubr.bf16.mxu0 0
    %718 = vmatmul.mubr.bf16.gmra.mrb[0].mxu0 %v524
    %v719 = vpop.f32.mrb[0].mxu0
    %v720 = vadd.f32 %v531, %v719
    %v721 = vpop.f32.mrb[0].mxu0
    %v722 = vpop.f32.mrb[0].mxu0
    %v723 = vadd.f32 %v531, %v722
    %v724 = vpop.f32.mrb[0].mxu0
    %725 = vmatprep.mubr.bf16.mxu0 0
    %726 = vmatmul.mubr.bf16.gmra.mrb[0].mxu0 %v525
    %v727 = vpop.f32.mrb[0].mxu0
    %v728 = vadd.f32 %v531, %v727
    %v729 = vpop.f32.mrb[0].mxu0
    %v730 = vpop.f32.mrb[0].mxu0
    %v731 = vadd.f32 %v531, %v730
    %v732 = vpop.f32.mrb[0].mxu0
    %733 = vmatprep.mubr.bf16.mxu0 0
    %734 = vmatmul.mubr.bf16.gmra.mrb[0].mxu0 %v526
    %v735 = vpop.f32.mrb[0].mxu0
    %v736 = vadd.f32 %v531, %v735
    %v737 = vpop.f32.mrb[0].mxu0
    %v738 = vpop.f32.mrb[0].mxu0
    %v739 = vadd.f32 %v531, %v738
    %v740 = vpop.f32.mrb[0].mxu0
    %741 = vdwg.mxu0
    %v742 = vtanh.pop %v616
    %v743 = vtanh.pop %v619
    %v744 = vtanh.pop %v624
    %v745 = vtanh.pop %v627
    %v746 = vtanh.pop %v632
    %v747 = vtanh.pop %v635
    %v748 = vtanh.pop %v640
    %v749 = vtanh.pop %v643
    %v750 = vtanh.pop %v648
    %v751 = vtanh.pop %v651
    %v752 = vtanh.pop %v656
    %v753 = vtanh.pop %v659
    %v754 = vtanh.pop %v664
    %v755 = vtanh.pop %v667
    %v756 = vtanh.pop %v672
    %v757 = vtanh.pop %v675
    %v758 = vtanh.pop %v680
    %v759 = vtanh.pop %v683
    %v760 = vtanh.pop %v688
    %v761 = vtanh.pop %v691
    %v762 = vtanh.pop %v696
    %v763 = vtanh.pop %v699
    %v764 = vtanh.pop %v704
    %v765 = vtanh.pop %v707
    %v766 = vtanh.pop %v712
    %v767 = vtanh.pop %v715
    %v768 = vtanh.pop %v720
    %v769 = vtanh.pop %v723
    %v770 = vtanh.pop %v728
    %v771 = vtanh.pop %v731
    %v772 = vtanh.pop %v736
    %v773 = vtanh.pop %v739
    %v774 = vpack.c.bf16 %v743, %v742
    %v775 = vpack.c.bf16 %v745, %v744
    %v776 = vpack.c.bf16 %v747, %v746
    %v777 = vpack.c.bf16 %v749, %v748
    %v778 = vpack.c.bf16 %v751, %v750
    %v779 = vpack.c.bf16 %v753, %v752
    %v780 = vpack.c.bf16 %v755, %v754
    %v781 = vpack.c.bf16 %v757, %v756
    %v782 = vpack.c.bf16 %v759, %v758
    %v783 = vpack.c.bf16 %v761, %v760
    %v784 = vpack.c.bf16 %v763, %v762
    %v785 = vpack.c.bf16 %v765, %v764
    %v786 = vpack.c.bf16 %v767, %v766
    %v787 = vpack.c.bf16 %v769, %v768
    %v788 = vpack.c.bf16 %v771, %v770
    %v789 = vpack.c.bf16 %v773, %v772
    %v791 = vlaneseq
    %v792 = vshrl.u32 %v791, 7
    %v793 = vsub.s32 0, %v792
    %v794 = vrot.slane %v510, %v793
    %v812 = vunpack.c.l.b16 %v493
    %v813 = vunpack.c.l.b16 %v494
    %v814 = vunpack.c.l.b16 %v495
    %v815 = vunpack.c.l.b16 %v496
    %v816 = vunpack.c.l.b16 %v497
    %v817 = vunpack.c.l.b16 %v498
    %v818 = vunpack.c.l.b16 %v499
    %v819 = vunpack.c.l.b16 %v500
    %v820 = vunpack.c.l.b16 %v501
    %v821 = vunpack.c.l.b16 %v502
    %v822 = vunpack.c.l.b16 %v503
    %v823 = vunpack.c.l.b16 %v504
    %v824 = vunpack.c.l.b16 %v505
    %v825 = vunpack.c.l.b16 %v506
    %v826 = vunpack.c.l.b16 %v507
    %v827 = vunpack.c.l.b16 %v508
    %v828 = vpack.c.b16 %v813, %v812
    %v829 = vpack.c.b16 %v815, %v814
    %v830 = vpack.c.b16 %v817, %v816
    %v831 = vpack.c.b16 %v819, %v818
    %v832 = vpack.c.b16 %v821, %v820
    %v833 = vpack.c.b16 %v823, %v822
    %v834 = vpack.c.b16 %v825, %v824
    %v835 = vpack.c.b16 %v827, %v826
    %844 = vmatprep.subr.bf16.mxu0 0
    %845 = vmatpush1.bf16.msra.mxu0 %v828
    %846 = vmatprep.subr.bf16.mxu0 0
    %847 = vmatpush1.bf16.msra.mxu0 %v829
    %848 = vmatprep.subr.bf16.mxu0 0
    %849 = vmatpush1.bf16.msra.mxu0 %v830
    %850 = vmatprep.subr.bf16.mxu0 0
    %851 = vmatpush1.bf16.msra.mxu0 %v831
    %852 = vmatprep.subr.bf16.mxu0 0
    %853 = vmatpush1.bf16.msra.mxu0 %v832
    %854 = vmatprep.subr.bf16.mxu0 0
    %855 = vmatpush1.bf16.msra.mxu0 %v833
    %856 = vmatprep.subr.bf16.mxu0 0
    %857 = vmatpush1.bf16.msra.mxu0 %v834
    %858 = vmatprep.subr.bf16.mxu0 0
    %859 = vmatpush1.bf16.msra.mxu0 %v835
    %860 = vmatprep.subr.bf16.mxu0 0
    %861 = vmatpush1.bf16.msra.mxu0 0
    %862 = vmatprep.subr.bf16.mxu0 0
    %863 = vmatpush1.bf16.msra.mxu0 0
    %864 = vmatprep.subr.bf16.mxu0 0
    %865 = vmatpush1.bf16.msra.mxu0 0
    %866 = vmatprep.subr.bf16.mxu0 0
    %867 = vmatpush1.bf16.msra.mxu0 0
    %868 = vmatprep.subr.bf16.mxu0 0
    %869 = vmatpush1.bf16.msra.mxu0 0
    %870 = vmatprep.subr.bf16.mxu0 0
    %871 = vmatpush1.bf16.msra.mxu0 0
    %872 = vmatprep.subr.bf16.mxu0 0
    %873 = vmatpush1.bf16.msra.mxu0 0
    %874 = vmatprep.subr.bf16.mxu0 0
    %875 = vmatpush1.bf16.msra.mxu0 0
    %876 = vmatprep.mubr.bf16.mxu0 0
    %877 = vmatmul.mubr.bf16.gmra.mrb[0].mxu0 %v774
    %v878 = vpop.f32.mrb[0].mxu0
    %v879 = vadd.f32 %v794, %v878
    %v880 = vpop.f32.mrb[0].mxu0
    %v881 = vpop.f32.mrb[0].mxu0
    %v882 = vadd.f32 %v794, %v881
    %v883 = vpop.f32.mrb[0].mxu0
    %884 = vmatprep.mubr.bf16.mxu0 0
    %885 = vmatmul.mubr.bf16.gmra.mrb[0].mxu0 %v775
    %v886 = vpop.f32.mrb[0].mxu0
    %v887 = vadd.f32 %v794, %v886
    %v888 = vpop.f32.mrb[0].mxu0
    %v889 = vpop.f32.mrb[0].mxu0
    %v890 = vadd.f32 %v794, %v889
    %v891 = vpop.f32.mrb[0].mxu0
    %892 = vmatprep.mubr.bf16.mxu0 0
    %893 = vmatmul.mubr.bf16.gmra.mrb[0].mxu0 %v776
    %v894 = vpop.f32.mrb[0].mxu0
    %v895 = vadd.f32 %v794, %v894
    %v896 = vpop.f32.mrb[0].mxu0
    %v897 = vpop.f32.mrb[0].mxu0
    %v898 = vadd.f32 %v794, %v897
    %v899 = vpop.f32.mrb[0].mxu0
    %900 = vmatprep.mubr.bf16.mxu0 0
    %901 = vmatmul.mubr.bf16.gmra.mrb[0].mxu0 %v777
    %v902 = vpop.f32.mrb[0].mxu0
    %v903 = vadd.f32 %v794, %v902
    %v904 = vpop.f32.mrb[0].mxu0
    %v905 = vpop.f32.mrb[0].mxu0
    %v906 = vadd.f32 %v794, %v905
    %v907 = vpop.f32.mrb[0].mxu0
    %908 = vmatprep.mubr.bf16.mxu0 0
    %909 = vmatmul.mubr.bf16.gmra.mrb[0].mxu0 %v778
    %v910 = vpop.f32.mrb[0].mxu0
    %v911 = vadd.f32 %v794, %v910
    %v912 = vpop.f32.mrb[0].mxu0
    %v913 = vpop.f32.mrb[0].mxu0
    %v914 = vadd.f32 %v794, %v913
    %v915 = vpop.f32.mrb[0].mxu0
    %916 = vmatprep.mubr.bf16.mxu0 0
    %917 = vmatmul.mubr.bf16.gmra.mrb[0].mxu0 %v779
    %v918 = vpop.f32.mrb[0].mxu0
    %v919 = vadd.f32 %v794, %v918
    %v920 = vpop.f32.mrb[0].mxu0
    %v921 = vpop.f32.mrb[0].mxu0
    %v922 = vadd.f32 %v794, %v921
    %v923 = vpop.f32.mrb[0].mxu0
    %924 = vmatprep.mubr.bf16.mxu0 0
    %925 = vmatmul.mubr.bf16.gmra.mrb[0].mxu0 %v780
    %v926 = vpop.f32.mrb[0].mxu0
    %v927 = vadd.f32 %v794, %v926
    %v928 = vpop.f32.mrb[0].mxu0
    %v929 = vpop.f32.mrb[0].mxu0
    %v930 = vadd.f32 %v794, %v929
    %v931 = vpop.f32.mrb[0].mxu0
    %932 = vmatprep.mubr.bf16.mxu0 0
    %933 = vmatmul.mubr.bf16.gmra.mrb[0].mxu0 %v781
    %v934 = vpop.f32.mrb[0].mxu0
    %v935 = vadd.f32 %v794, %v934
    %v936 = vpop.f32.mrb[0].mxu0
    %v937 = vpop.f32.mrb[0].mxu0
    %v938 = vadd.f32 %v794, %v937
    %v939 = vpop.f32.mrb[0].mxu0
    %940 = vmatprep.mubr.bf16.mxu0 0
    %941 = vmatmul.mubr.bf16.gmra.mrb[0].mxu0 %v782
    %v942 = vpop.f32.mrb[0].mxu0
    %v943 = vadd.f32 %v794, %v942
    %v944 = vpop.f32.mrb[0].mxu0
    %v945 = vpop.f32.mrb[0].mxu0
    %v946 = vadd.f32 %v794, %v945
    %v947 = vpop.f32.mrb[0].mxu0
    %948 = vmatprep.mubr.bf16.mxu0 0
    %949 = vmatmul.mubr.bf16.gmra.mrb[0].mxu0 %v783
    %v950 = vpop.f32.mrb[0].mxu0
    %v951 = vadd.f32 %v794, %v950
    %v952 = vpop.f32.mrb[0].mxu0
    %v953 = vpop.f32.mrb[0].mxu0
    %v954 = vadd.f32 %v794, %v953
    %v955 = vpop.f32.mrb[0].mxu0
    %956 = vmatprep.mubr.bf16.mxu0 0
    %957 = vmatmul.mubr.bf16.gmra.mrb[0].mxu0 %v784
    %v958 = vpop.f32.mrb[0].mxu0
    %v959 = vadd.f32 %v794, %v958
    %v960 = vpop.f32.mrb[0].mxu0
    %v961 = vpop.f32.mrb[0].mxu0
    %v962 = vadd.f32 %v794, %v961
    %v963 = vpop.f32.mrb[0].mxu0
    %964 = vmatprep.mubr.bf16.mxu0 0
    %965 = vmatmul.mubr.bf16.gmra.mrb[0].mxu0 %v785
    %v966 = vpop.f32.mrb[0].mxu0
    %v967 = vadd.f32 %v794, %v966
    %v968 = vpop.f32.mrb[0].mxu0
    %v969 = vpop.f32.mrb[0].mxu0
    %v970 = vadd.f32 %v794, %v969
    %v971 = vpop.f32.mrb[0].mxu0
    %972 = vmatprep.mubr.bf16.mxu0 0
    %973 = vmatmul.mubr.bf16.gmra.mrb[0].mxu0 %v786
    %v974 = vpop.f32.mrb[0].mxu0
    %v975 = vadd.f32 %v794, %v974
    %v976 = vpop.f32.mrb[0].mxu0
    %v977 = vpop.f32.mrb[0].mxu0
    %v978 = vadd.f32 %v794, %v977
    %v979 = vpop.f32.mrb[0].mxu0
    %980 = vmatprep.mubr.bf16.mxu0 0
    %981 = vmatmul.mubr.bf16.gmra.mrb[0].mxu0 %v787
    %v982 = vpop.f32.mrb[0].mxu0
    %v983 = vadd.f32 %v794, %v982
    %v984 = vpop.f32.mrb[0].mxu0
    %v985 = vpop.f32.mrb[0].mxu0
    %v986 = vadd.f32 %v794, %v985
    %v987 = vpop.f32.mrb[0].mxu0
    %988 = vmatprep.mubr.bf16.mxu0 0
    %989 = vmatmul.mubr.bf16.gmra.mrb[0].mxu0 %v788
    %v990 = vpop.f32.mrb[0].mxu0
    %v991 = vadd.f32 %v794, %v990
    %v992 = vpop.f32.mrb[0].mxu0
    %v993 = vpop.f32.mrb[0].mxu0
    %v994 = vadd.f32 %v794, %v993
    %v995 = vpop.f32.mrb[0].mxu0
    %996 = vmatprep.mubr.bf16.mxu0 0
    %997 = vmatmul.mubr.bf16.gmra.mrb[0].mxu0 %v789
    %v998 = vpop.f32.mrb[0].mxu0
    %v999 = vadd.f32 %v794, %v998
    %v1000 = vpop.f32.mrb[0].mxu0
    %v1001 = vpop.f32.mrb[0].mxu0
    %v1002 = vadd.f32 %v794, %v1001
    %v1003 = vpop.f32.mrb[0].mxu0
    %1004 = vdwg.mxu0
    %v1005 = vtanh.pop %v879
    %v1006 = vtanh.pop %v882
    %v1007 = vtanh.pop %v887
    %v1008 = vtanh.pop %v890
    %v1009 = vtanh.pop %v895
    %v1010 = vtanh.pop %v898
    %v1011 = vtanh.pop %v903
    %v1012 = vtanh.pop %v906
    %v1013 = vtanh.pop %v911
    %v1014 = vtanh.pop %v914
    %v1015 = vtanh.pop %v919
    %v1016 = vtanh.pop %v922
    %v1017 = vtanh.pop %v927
    %v1018 = vtanh.pop %v930
    %v1019 = vtanh.pop %v935
    %v1020 = vtanh.pop %v938
    %v1021 = vtanh.pop %v943
    %v1022 = vtanh.pop %v946
    %v1023 = vtanh.pop %v951
    %v1024 = vtanh.pop %v954
    %v1025 = vtanh.pop %v959
    %v1026 = vtanh.pop %v962
    %v1027 = vtanh.pop %v967
    %v1028 = vtanh.pop %v970
    %v1029 = vtanh.pop %v975
    %v1030 = vtanh.pop %v978
    %v1031 = vtanh.pop %v983
    %v1032 = vtanh.pop %v986
    %v1033 = vtanh.pop %v991
    %v1034 = vtanh.pop %v994
    %v1035 = vtanh.pop %v999
    %v1036 = vtanh.pop %v1002
    %v1037 = vadd.f32 %v443, %v1005
    %v1038 = vadd.f32 %v444, %v1006
    %v1039 = vadd.f32 %v445, %v1007
    %v1040 = vadd.f32 %v446, %v1008
    %v1041 = vadd.f32 %v447, %v1009
    %v1042 = vadd.f32 %v448, %v1010
    %v1043 = vadd.f32 %v449, %v1011
    %v1044 = vadd.f32 %v450, %v1012
    %v1045 = vadd.f32 %v451, %v1013
    %v1046 = vadd.f32 %v452, %v1014
    %v1047 = vadd.f32 %v453, %v1015
    %v1048 = vadd.f32 %v454, %v1016
    %v1049 = vadd.f32 %v455, %v1017
    %v1050 = vadd.f32 %v456, %v1018
    %v1051 = vadd.f32 %v457, %v1019
    %v1052 = vadd.f32 %v458, %v1020
    %v1053 = vadd.f32 %v459, %v1021
    %v1054 = vadd.f32 %v460, %v1022
    %v1055 = vadd.f32 %v461, %v1023
    %v1056 = vadd.f32 %v462, %v1024
    %v1057 = vadd.f32 %v463, %v1025
    %v1058 = vadd.f32 %v464, %v1026
    %v1059 = vadd.f32 %v465, %v1027
    %v1060 = vadd.f32 %v466, %v1028
    %v1061 = vadd.f32 %v467, %v1029
    %v1062 = vadd.f32 %v468, %v1030
    %v1063 = vadd.f32 %v469, %v1031
    %v1064 = vadd.f32 %v470, %v1032
    %v1065 = vadd.f32 %v471, %v1033
    %v1066 = vadd.f32 %v472, %v1034
    %v1067 = vadd.f32 %v473, %v1035
    %v1068 = vadd.f32 %v474, %v1036
    %s1069 = scalar_lea.vmem [#allocation7], 128
    %v1070 = vld [vmem:[%s1069] sm:$0xf]
    %v1071 = vld [vmem:[%s1069 + $0x4] sm:$0xf]
    %v1072 = vld [vmem:[%s1069 + $0x8] sm:$0xf]
    %v1073 = vld [vmem:[%s1069 + $0xc] sm:$0xf]
    %v1074 = vld [vmem:[%s1069 + $0x10] sm:$0xf]
    %v1075 = vld [vmem:[%s1069 + $0x14] sm:$0xf]
    %v1076 = vld [vmem:[%s1069 + $0x18] sm:$0xf]
    %v1077 = vld [vmem:[%s1069 + $0x1c] sm:$0xf]
    %v1078 = vld [vmem:[%s1069 + $0x20] sm:$0xf]
    %v1079 = vld [vmem:[%s1069 + $0x24] sm:$0xf]
    %v1080 = vld [vmem:[%s1069 + $0x28] sm:$0xf]
    %v1081 = vld [vmem:[%s1069 + $0x2c] sm:$0xf]
    %v1082 = vld [vmem:[%s1069 + $0x30] sm:$0xf]
    %v1083 = vld [vmem:[%s1069 + $0x34] sm:$0xf]
    %v1084 = vld [vmem:[%s1069 + $0x38] sm:$0xf]
    %v1085 = vld [vmem:[%s1069 + $0x3c] sm:$0xf]
    %s1086 = scalar_lea.vmem %s4, 2
    %v1087 = vld [vmem:[%s1086] sm:$0x1]
    %s1088 = scalar_lea.vmem [#allocation7], 192
    %v1089 = vld [vmem:[%s1088] sm:$0xf]
    %v1090 = vld [vmem:[%s1088 + $0x4] sm:$0xf]
    %v1091 = vld [vmem:[%s1088 + $0x8] sm:$0xf]
    %v1092 = vld [vmem:[%s1088 + $0xc] sm:$0xf]
    %v1093 = vld [vmem:[%s1088 + $0x10] sm:$0xf]
    %v1094 = vld [vmem:[%s1088 + $0x14] sm:$0xf]
    %v1095 = vld [vmem:[%s1088 + $0x18] sm:$0xf]
    %v1096 = vld [vmem:[%s1088 + $0x1c] sm:$0xf]
    %v1097 = vld [vmem:[%s1088 + $0x20] sm:$0xf]
    %v1098 = vld [vmem:[%s1088 + $0x24] sm:$0xf]
    %v1099 = vld [vmem:[%s1088 + $0x28] sm:$0xf]
    %v1100 = vld [vmem:[%s1088 + $0x2c] sm:$0xf]
    %v1101 = vld [vmem:[%s1088 + $0x30] sm:$0xf]
    %v1102 = vld [vmem:[%s1088 + $0x34] sm:$0xf]
    %v1103 = vld [vmem:[%s1088 + $0x38] sm:$0xf]
    %v1104 = vld [vmem:[%s1088 + $0x3c] sm:$0xf]
    %s1105 = scalar_lea.vmem %s4, 3
    %v1106 = vld [vmem:[%s1105] sm:$0x1]
    %v1107 = vpack.c.bf16 %v1038, %v1037
    %v1108 = vpack.c.bf16 %v1040, %v1039
    %v1109 = vpack.c.bf16 %v1042, %v1041
    %v1110 = vpack.c.bf16 %v1044, %v1043
    %v1111 = vpack.c.bf16 %v1046, %v1045
    %v1112 = vpack.c.bf16 %v1048, %v1047
    %v1113 = vpack.c.bf16 %v1050, %v1049
    %v1114 = vpack.c.bf16 %v1052, %v1051
    %v1115 = vpack.c.bf16 %v1054, %v1053
    %v1116 = vpack.c.bf16 %v1056, %v1055
    %v1117 = vpack.c.bf16 %v1058, %v1057
    %v1118 = vpack.c.bf16 %v1060, %v1059
    %v1119 = vpack.c.bf16 %v1062, %v1061
    %v1120 = vpack.c.bf16 %v1064, %v1063
    %v1121 = vpack.c.bf16 %v1066, %v1065
    %v1122 = vpack.c.bf16 %v1068, %v1067
    %v1124 = vlaneseq
    %v1125 = vshrl.u32 %v1124, 7
    %v1126 = vsub.s32 0, %v1125
    %v1127 = vrot.slane %v1087, %v1126
    %v1145 = vunpack.c.l.b16 %v1070
    %v1146 = vunpack.c.l.b16 %v1071
    %v1147 = vunpack.c.l.b16 %v1072
    %v1148 = vunpack.c.l.b16 %v1073
    %v1149 = vunpack.c.l.b16 %v1074
    %v1150 = vunpack.c.l.b16 %v1075
    %v1151 = vunpack.c.l.b16 %v1076
    %v1152 = vunpack.c.l.b16 %v1077
    %v1153 = vunpack.c.l.b16 %v1078
    %v1154 = vunpack.c.l.b16 %v1079
    %v1155 = vunpack.c.l.b16 %v1080
    %v1156 = vunpack.c.l.b16 %v1081
    %v1157 = vunpack.c.l.b16 %v1082
    %v1158 = vunpack.c.l.b16 %v1083
    %v1159 = vunpack.c.l.b16 %v1084
    %v1160 = vunpack.c.l.b16 %v1085
    %v1161 = vpack.c.b16 %v1146, %v1145
    %v1162 = vpack.c.b16 %v1148, %v1147
    %v1163 = vpack.c.b16 %v1150, %v1149
    %v1164 = vpack.c.b16 %v1152, %v1151
    %v1165 = vpack.c.b16 %v1154, %v1153
    %v1166 = vpack.c.b16 %v1156, %v1155
    %v1167 = vpack.c.b16 %v1158, %v1157
    %v1168 = vpack.c.b16 %v1160, %v1159
    %1177 = vmatprep.subr.bf16.mxu0 0
    %1178 = vmatpush1.bf16.msra.mxu0 %v1161
    %1179 = vmatprep.subr.bf16.mxu0 0
    %1180 = vmatpush1.bf16.msra.mxu0 %v1162
    %1181 = vmatprep.subr.bf16.mxu0 0
    %1182 = vmatpush1.bf16.msra.mxu0 %v1163
    %1183 = vmatprep.subr.bf16.mxu0 0
    %1184 = vmatpush1.bf16.msra.mxu0 %v1164
    %1185 = vmatprep.subr.bf16.mxu0 0
    %1186 = vmatpush1.bf16.msra.mxu0 %v1165
    %1187 = vmatprep.subr.bf16.mxu0 0
    %1188 = vmatpush1.bf16.msra.mxu0 %v1166
    %1189 = vmatprep.subr.bf16.mxu0 0
    %1190 = vmatpush1.bf16.msra.mxu0 %v1167
    %1191 = vmatprep.subr.bf16.mxu0 0
    %1192 = vmatpush1.bf16.msra.mxu0 %v1168
    %1193 = vmatprep.subr.bf16.mxu0 0
    %1194 = vmatpush1.bf16.msra.mxu0 0
    %1195 = vmatprep.subr.bf16.mxu0 0
    %1196 = vmatpush1.bf16.msra.mxu0 0
    %1197 = vmatprep.subr.bf16.mxu0 0
    %1198 = vmatpush1.bf16.msra.mxu0 0
    %1199 = vmatprep.subr.bf16.mxu0 0
    %1200 = vmatpush1.bf16.msra.mxu0 0
    %1201 = vmatprep.subr.bf16.mxu0 0
    %1202 = vmatpush1.bf16.msra.mxu0 0
    %1203 = vmatprep.subr.bf16.mxu0 0
    %1204 = vmatpush1.bf16.msra.mxu0 0
    %1205 = vmatprep.subr.bf16.mxu0 0
    %1206 = vmatpush1.bf16.msra.mxu0 0
    %1207 = vmatprep.subr.bf16.mxu0 0
    %1208 = vmatpush1.bf16.msra.mxu0 0
    %1209 = vmatprep.mubr.bf16.mxu0 0
    %1210 = vmatmul.mubr.bf16.gmra.mrb[0].mxu0 %v1107
    %v1211 = vpop.f32.mrb[0].mxu0
    %v1212 = vadd.f32 %v1127, %v1211
    %v1213 = vpop.f32.mrb[0].mxu0
    %v1214 = vpop.f32.mrb[0].mxu0
    %v1215 = vadd.f32 %v1127, %v1214
    %v1216 = vpop.f32.mrb[0].mxu0
    %1217 = vmatprep.mubr.bf16.mxu0 0
    %1218 = vmatmul.mubr.bf16.gmra.mrb[0].mxu0 %v1108
    %v1219 = vpop.f32.mrb[0].mxu0
    %v1220 = vadd.f32 %v1127, %v1219
    %v1221 = vpop.f32.mrb[0].mxu0
    %v1222 = vpop.f32.mrb[0].mxu0
    %v1223 = vadd.f32 %v1127, %v1222
    %v1224 = vpop.f32.mrb[0].mxu0
    %1225 = vmatprep.mubr.bf16.mxu0 0
    %1226 = vmatmul.mubr.bf16.gmra.mrb[0].mxu0 %v1109
    %v1227 = vpop.f32.mrb[0].mxu0
    %v1228 = vadd.f32 %v1127, %v1227
    %v1229 = vpop.f32.mrb[0].mxu0
    %v1230 = vpop.f32.mrb[0].mxu0
    %v1231 = vadd.f32 %v1127, %v1230
    %v1232 = vpop.f32.mrb[0].mxu0
    %1233 = vmatprep.mubr.bf16.mxu0 0
    %1234 = vmatmul.mubr.bf16.gmra.mrb[0].mxu0 %v1110
    %v1235 = vpop.f32.mrb[0].mxu0
    %v1236 = vadd.f32 %v1127, %v1235
    %v1237 = vpop.f32.mrb[0].mxu0
    %v1238 = vpop.f32.mrb[0].mxu0
    %v1239 = vadd.f32 %v1127, %v1238
    %v1240 = vpop.f32.mrb[0].mxu0
    %1241 = vmatprep.mubr.bf16.mxu0 0
    %1242 = vmatmul.mubr.bf16.gmra.mrb[0].mxu0 %v1111
    %v1243 = vpop.f32.mrb[0].mxu0
    %v1244 = vadd.f32 %v1127, %v1243
    %v1245 = vpop.f32.mrb[0].mxu0
    %v1246 = vpop.f32.mrb[0].mxu0
    %v1247 = vadd.f32 %v1127, %v1246
    %v1248 = vpop.f32.mrb[0].mxu0
    %1249 = vmatprep.mubr.bf16.mxu0 0
    %1250 = vmatmul.mubr.bf16.gmra.mrb[0].mxu0 %v1112
    %v1251 = vpop.f32.mrb[0].mxu0
    %v1252 = vadd.f32 %v1127, %v1251
    %v1253 = vpop.f32.mrb[0].mxu0
    %v1254 = vpop.f32.mrb[0].mxu0
    %v1255 = vadd.f32 %v1127, %v1254
    %v1256 = vpop.f32.mrb[0].mxu0
    %1257 = vmatprep.mubr.bf16.mxu0 0
    %1258 = vmatmul.mubr.bf16.gmra.mrb[0].mxu0 %v1113
    %v1259 = vpop.f32.mrb[0].mxu0
    %v1260 = vadd.f32 %v1127, %v1259
    %v1261 = vpop.f32.mrb[0].mxu0
    %v1262 = vpop.f32.mrb[0].mxu0
    %v1263 = vadd.f32 %v1127, %v1262
    %v1264 = vpop.f32.mrb[0].mxu0
    %1265 = vmatprep.mubr.bf16.mxu0 0
    %1266 = vmatmul.mubr.bf16.gmra.mrb[0].mxu0 %v1114
    %v1267 = vpop.f32.mrb[0].mxu0
    %v1268 = vadd.f32 %v1127, %v1267
    %v1269 = vpop.f32.mrb[0].mxu0
    %v1270 = vpop.f32.mrb[0].mxu0
    %v1271 = vadd.f32 %v1127, %v1270
    %v1272 = vpop.f32.mrb[0].mxu0
    %1273 = vmatprep.mubr.bf16.mxu0 0
    %1274 = vmatmul.mubr.bf16.gmra.mrb[0].mxu0 %v1115
    %v1275 = vpop.f32.mrb[0].mxu0
    %v1276 = vadd.f32 %v1127, %v1275
    %v1277 = vpop.f32.mrb[0].mxu0
    %v1278 = vpop.f32.mrb[0].mxu0
    %v1279 = vadd.f32 %v1127, %v1278
    %v1280 = vpop.f32.mrb[0].mxu0
    %1281 = vmatprep.mubr.bf16.mxu0 0
    %1282 = vmatmul.mubr.bf16.gmra.mrb[0].mxu0 %v1116
    %v1283 = vpop.f32.mrb[0].mxu0
    %v1284 = vadd.f32 %v1127, %v1283
    %v1285 = vpop.f32.mrb[0].mxu0
    %v1286 = vpop.f32.mrb[0].mxu0
    %v1287 = vadd.f32 %v1127, %v1286
    %v1288 = vpop.f32.mrb[0].mxu0
    %1289 = vmatprep.mubr.bf16.mxu0 0
    %1290 = vmatmul.mubr.bf16.gmra.mrb[0].mxu0 %v1117
    %v1291 = vpop.f32.mrb[0].mxu0
    %v1292 = vadd.f32 %v1127, %v1291
    %v1293 = vpop.f32.mrb[0].mxu0
    %v1294 = vpop.f32.mrb[0].mxu0
    %v1295 = vadd.f32 %v1127, %v1294
    %v1296 = vpop.f32.mrb[0].mxu0
    %1297 = vmatprep.mubr.bf16.mxu0 0
    %1298 = vmatmul.mubr.bf16.gmra.mrb[0].mxu0 %v1118
    %v1299 = vpop.f32.mrb[0].mxu0
    %v1300 = vadd.f32 %v1127, %v1299
    %v1301 = vpop.f32.mrb[0].mxu0
    %v1302 = vpop.f32.mrb[0].mxu0
    %v1303 = vadd.f32 %v1127, %v1302
    %v1304 = vpop.f32.mrb[0].mxu0
    %1305 = vmatprep.mubr.bf16.mxu0 0
    %1306 = vmatmul.mubr.bf16.gmra.mrb[0].mxu0 %v1119
    %v1307 = vpop.f32.mrb[0].mxu0
    %v1308 = vadd.f32 %v1127, %v1307
    %v1309 = vpop.f32.mrb[0].mxu0
    %v1310 = vpop.f32.mrb[0].mxu0
    %v1311 = vadd.f32 %v1127, %v1310
    %v1312 = vpop.f32.mrb[0].mxu0
    %1313 = vmatprep.mubr.bf16.mxu0 0
    %1314 = vmatmul.mubr.bf16.gmra.mrb[0].mxu0 %v1120
    %v1315 = vpop.f32.mrb[0].mxu0
    %v1316 = vadd.f32 %v1127, %v1315
    %v1317 = vpop.f32.mrb[0].mxu0
    %v1318 = vpop.f32.mrb[0].mxu0
    %v1319 = vadd.f32 %v1127, %v1318
    %v1320 = vpop.f32.mrb[0].mxu0
    %1321 = vmatprep.mubr.bf16.mxu0 0
    %1322 = vmatmul.mubr.bf16.gmra.mrb[0].mxu0 %v1121
    %v1323 = vpop.f32.mrb[0].mxu0
    %v1324 = vadd.f32 %v1127, %v1323
    %v1325 = vpop.f32.mrb[0].mxu0
    %v1326 = vpop.f32.mrb[0].mxu0
    %v1327 = vadd.f32 %v1127, %v1326
    %v1328 = vpop.f32.mrb[0].mxu0
    %1329 = vmatprep.mubr.bf16.mxu0 0
    %1330 = vmatmul.mubr.bf16.gmra.mrb[0].mxu0 %v1122
    %v1331 = vpop.f32.mrb[0].mxu0
    %v1332 = vadd.f32 %v1127, %v1331
    %v1333 = vpop.f32.mrb[0].mxu0
    %v1334 = vpop.f32.mrb[0].mxu0
    %v1335 = vadd.f32 %v1127, %v1334
    %v1336 = vpop.f32.mrb[0].mxu0
    %1337 = vdwg.mxu0
    %v1338 = vtanh.pop %v1212
    %v1339 = vtanh.pop %v1215
    %v1340 = vtanh.pop %v1220
    %v1341 = vtanh.pop %v1223
    %v1342 = vtanh.pop %v1228
    %v1343 = vtanh.pop %v1231
    %v1344 = vtanh.pop %v1236
    %v1345 = vtanh.pop %v1239
    %v1346 = vtanh.pop %v1244
    %v1347 = vtanh.pop %v1247
    %v1348 = vtanh.pop %v1252
    %v1349 = vtanh.pop %v1255
    %v1350 = vtanh.pop %v1260
    %v1351 = vtanh.pop %v1263
    %v1352 = vtanh.pop %v1268
    %v1353 = vtanh.pop %v1271
    %v1354 = vtanh.pop %v1276
    %v1355 = vtanh.pop %v1279
    %v1356 = vtanh.pop %v1284
    %v1357 = vtanh.pop %v1287
    %v1358 = vtanh.pop %v1292
    %v1359 = vtanh.pop %v1295
    %v1360 = vtanh.pop %v1300
    %v1361 = vtanh.pop %v1303
    %v1362 = vtanh.pop %v1308
    %v1363 = vtanh.pop %v1311
    %v1364 = vtanh.pop %v1316
    %v1365 = vtanh.pop %v1319
    %v1366 = vtanh.pop %v1324
    %v1367 = vtanh.pop %v1327
    %v1368 = vtanh.pop %v1332
    %v1369 = vtanh.pop %v1335
    %v1370 = vpack.c.bf16 %v1339, %v1338
    %v1371 = vpack.c.bf16 %v1341, %v1340
    %v1372 = vpack.c.bf16 %v1343, %v1342
    %v1373 = vpack.c.bf16 %v1345, %v1344
    %v1374 = vpack.c.bf16 %v1347, %v1346
    %v1375 = vpack.c.bf16 %v1349, %v1348
    %v1376 = vpack.c.bf16 %v1351, %v1350
    %v1377 = vpack.c.bf16 %v1353, %v1352
    %v1378 = vpack.c.bf16 %v1355, %v1354
    %v1379 = vpack.c.bf16 %v1357, %v1356
    %v1380 = vpack.c.bf16 %v1359, %v1358
    %v1381 = vpack.c.bf16 %v1361, %v1360
    %v1382 = vpack.c.bf16 %v1363, %v1362
    %v1383 = vpack.c.bf16 %v1365, %v1364
    %v1384 = vpack.c.bf16 %v1367, %v1366
    %v1385 = vpack.c.bf16 %v1369, %v1368
    %v1387 = vlaneseq
    %v1388 = vshrl.u32 %v1387, 7
    %v1389 = vsub.s32 0, %v1388
    %v1390 = vrot.slane %v1106, %v1389
    %v1408 = vunpack.c.l.b16 %v1089
    %v1409 = vunpack.c.l.b16 %v1090
    %v1410 = vunpack.c.l.b16 %v1091
    %v1411 = vunpack.c.l.b16 %v1092
    %v1412 = vunpack.c.l.b16 %v1093
    %v1413 = vunpack.c.l.b16 %v1094
    %v1414 = vunpack.c.l.b16 %v1095
    %v1415 = vunpack.c.l.b16 %v1096
    %v1416 = vunpack.c.l.b16 %v1097
    %v1417 = vunpack.c.l.b16 %v1098
    %v1418 = vunpack.c.l.b16 %v1099
    %v1419 = vunpack.c.l.b16 %v1100
    %v1420 = vunpack.c.l.b16 %v1101
    %v1421 = vunpack.c.l.b16 %v1102
    %v1422 = vunpack.c.l.b16 %v1103
    %v1423 = vunpack.c.l.b16 %v1104
    %v1424 = vpack.c.b16 %v1409, %v1408
    %v1425 = vpack.c.b16 %v1411, %v1410
    %v1426 = vpack.c.b16 %v1413, %v1412
    %v1427 = vpack.c.b16 %v1415, %v1414
    %v1428 = vpack.c.b16 %v1417, %v1416
    %v1429 = vpack.c.b16 %v1419, %v1418
    %v1430 = vpack.c.b16 %v1421, %v1420
    %v1431 = vpack.c.b16 %v1423, %v1422
    %1440 = vmatprep.subr.bf16.mxu0 0
    %1441 = vmatpush1.bf16.msra.mxu0 %v1424
    %1442 = vmatprep.subr.bf16.mxu0 0
    %1443 = vmatpush1.bf16.msra.mxu0 %v1425
    %1444 = vmatprep.subr.bf16.mxu0 0
    %1445 = vmatpush1.bf16.msra.mxu0 %v1426
    %1446 = vmatprep.subr.bf16.mxu0 0
    %1447 = vmatpush1.bf16.msra.mxu0 %v1427
    %1448 = vmatprep.subr.bf16.mxu0 0
    %1449 = vmatpush1.bf16.msra.mxu0 %v1428
    %1450 = vmatprep.subr.bf16.mxu0 0
    %1451 = vmatpush1.bf16.msra.mxu0 %v1429
    %1452 = vmatprep.subr.bf16.mxu0 0
    %1453 = vmatpush1.bf16.msra.mxu0 %v1430
    %1454 = vmatprep.subr.bf16.mxu0 0
    %1455 = vmatpush1.bf16.msra.mxu0 %v1431
    %1456 = vmatprep.subr.bf16.mxu0 0
    %1457 = vmatpush1.bf16.msra.mxu0 0
    %1458 = vmatprep.subr.bf16.mxu0 0
    %1459 = vmatpush1.bf16.msra.mxu0 0
    %1460 = vmatprep.subr.bf16.mxu0 0
    %1461 = vmatpush1.bf16.msra.mxu0 0
    %1462 = vmatprep.subr.bf16.mxu0 0
    %1463 = vmatpush1.bf16.msra.mxu0 0
    %1464 = vmatprep.subr.bf16.mxu0 0
    %1465 = vmatpush1.bf16.msra.mxu0 0
    %1466 = vmatprep.subr.bf16.mxu0 0
    %1467 = vmatpush1.bf16.msra.mxu0 0
    %1468 = vmatprep.subr.bf16.mxu0 0
    %1469 = vmatpush1.bf16.msra.mxu0 0
    %1470 = vmatprep.subr.bf16.mxu0 0
    %1471 = vmatpush1.bf16.msra.mxu0 0
    %1472 = vmatprep.mubr.bf16.mxu0 0
    %1473 = vmatmul.mubr.bf16.gmra.mrb[0].mxu0 %v1370
    %v1474 = vpop.f32.mrb[0].mxu0
    %v1475 = vadd.f32 %v1390, %v1474
    %v1476 = vpop.f32.mrb[0].mxu0
    %v1477 = vpop.f32.mrb[0].mxu0
    %v1478 = vadd.f32 %v1390, %v1477
    %v1479 = vpop.f32.mrb[0].mxu0
    %1480 = vmatprep.mubr.bf16.mxu0 0
    %1481 = vmatmul.mubr.bf16.gmra.mrb[0].mxu0 %v1371
    %v1482 = vpop.f32.mrb[0].mxu0
    %v1483 = vadd.f32 %v1390, %v1482
    %v1484 = vpop.f32.mrb[0].mxu0
    %v1485 = vpop.f32.mrb[0].mxu0
    %v1486 = vadd.f32 %v1390, %v1485
    %v1487 = vpop.f32.mrb[0].mxu0
    %1488 = vmatprep.mubr.bf16.mxu0 0
    %1489 = vmatmul.mubr.bf16.gmra.mrb[0].mxu0 %v1372
    %v1490 = vpop.f32.mrb[0].mxu0
    %v1491 = vadd.f32 %v1390, %v1490
    %v1492 = vpop.f32.mrb[0].mxu0
    %v1493 = vpop.f32.mrb[0].mxu0
    %v1494 = vadd.f32 %v1390, %v1493
    %v1495 = vpop.f32.mrb[0].mxu0
    %1496 = vmatprep.mubr.bf16.mxu0 0
    %1497 = vmatmul.mubr.bf16.gmra.mrb[0].mxu0 %v1373
    %v1498 = vpop.f32.mrb[0].mxu0
    %v1499 = vadd.f32 %v1390, %v1498
    %v1500 = vpop.f32.mrb[0].mxu0
    %v1501 = vpop.f32.mrb[0].mxu0
    %v1502 = vadd.f32 %v1390, %v1501
    %v1503 = vpop.f32.mrb[0].mxu0
    %1504 = vmatprep.mubr.bf16.mxu0 0
    %1505 = vmatmul.mubr.bf16.gmra.mrb[0].mxu0 %v1374
    %v1506 = vpop.f32.mrb[0].mxu0
    %v1507 = vadd.f32 %v1390, %v1506
    %v1508 = vpop.f32.mrb[0].mxu0
    %v1509 = vpop.f32.mrb[0].mxu0
    %v1510 = vadd.f32 %v1390, %v1509
    %v1511 = vpop.f32.mrb[0].mxu0
    %1512 = vmatprep.mubr.bf16.mxu0 0
    %1513 = vmatmul.mubr.bf16.gmra.mrb[0].mxu0 %v1375
    %v1514 = vpop.f32.mrb[0].mxu0
    %v1515 = vadd.f32 %v1390, %v1514
    %v1516 = vpop.f32.mrb[0].mxu0
    %v1517 = vpop.f32.mrb[0].mxu0
    %v1518 = vadd.f32 %v1390, %v1517
    %v1519 = vpop.f32.mrb[0].mxu0
    %1520 = vmatprep.mubr.bf16.mxu0 0
    %1521 = vmatmul.mubr.bf16.gmra.mrb[0].mxu0 %v1376
    %v1522 = vpop.f32.mrb[0].mxu0
    %v1523 = vadd.f32 %v1390, %v1522
    %v1524 = vpop.f32.mrb[0].mxu0
    %v1525 = vpop.f32.mrb[0].mxu0
    %v1526 = vadd.f32 %v1390, %v1525
    %v1527 = vpop.f32.mrb[0].mxu0
    %1528 = vmatprep.mubr.bf16.mxu0 0
    %1529 = vmatmul.mubr.bf16.gmra.mrb[0].mxu0 %v1377
    %v1530 = vpop.f32.mrb[0].mxu0
    %v1531 = vadd.f32 %v1390, %v1530
    %v1532 = vpop.f32.mrb[0].mxu0
    %v1533 = vpop.f32.mrb[0].mxu0
    %v1534 = vadd.f32 %v1390, %v1533
    %v1535 = vpop.f32.mrb[0].mxu0
    %1536 = vmatprep.mubr.bf16.mxu0 0
    %1537 = vmatmul.mubr.bf16.gmra.mrb[0].mxu0 %v1378
    %v1538 = vpop.f32.mrb[0].mxu0
    %v1539 = vadd.f32 %v1390, %v1538
    %v1540 = vpop.f32.mrb[0].mxu0
    %v1541 = vpop.f32.mrb[0].mxu0
    %v1542 = vadd.f32 %v1390, %v1541
    %v1543 = vpop.f32.mrb[0].mxu0
    %1544 = vmatprep.mubr.bf16.mxu0 0
    %1545 = vmatmul.mubr.bf16.gmra.mrb[0].mxu0 %v1379
    %v1546 = vpop.f32.mrb[0].mxu0
    %v1547 = vadd.f32 %v1390, %v1546
    %v1548 = vpop.f32.mrb[0].mxu0
    %v1549 = vpop.f32.mrb[0].mxu0
    %v1550 = vadd.f32 %v1390, %v1549
    %v1551 = vpop.f32.mrb[0].mxu0
    %1552 = vmatprep.mubr.bf16.mxu0 0
    %1553 = vmatmul.mubr.bf16.gmra.mrb[0].mxu0 %v1380
    %v1554 = vpop.f32.mrb[0].mxu0
    %v1555 = vadd.f32 %v1390, %v1554
    %v1556 = vpop.f32.mrb[0].mxu0
    %v1557 = vpop.f32.mrb[0].mxu0
    %v1558 = vadd.f32 %v1390, %v1557
    %v1559 = vpop.f32.mrb[0].mxu0
    %1560 = vmatprep.mubr.bf16.mxu0 0
    %1561 = vmatmul.mubr.bf16.gmra.mrb[0].mxu0 %v1381
    %v1562 = vpop.f32.mrb[0].mxu0
    %v1563 = vadd.f32 %v1390, %v1562
    %v1564 = vpop.f32.mrb[0].mxu0
    %v1565 = vpop.f32.mrb[0].mxu0
    %v1566 = vadd.f32 %v1390, %v1565
    %v1567 = vpop.f32.mrb[0].mxu0
    %1568 = vmatprep.mubr.bf16.mxu0 0
    %1569 = vmatmul.mubr.bf16.gmra.mrb[0].mxu0 %v1382
    %v1570 = vpop.f32.mrb[0].mxu0
    %v1571 = vadd.f32 %v1390, %v1570
    %v1572 = vpop.f32.mrb[0].mxu0
    %v1573 = vpop.f32.mrb[0].mxu0
    %v1574 = vadd.f32 %v1390, %v1573
    %v1575 = vpop.f32.mrb[0].mxu0
    %1576 = vmatprep.mubr.bf16.mxu0 0
    %1577 = vmatmul.mubr.bf16.gmra.mrb[0].mxu0 %v1383
    %v1578 = vpop.f32.mrb[0].mxu0
    %v1579 = vadd.f32 %v1390, %v1578
    %v1580 = vpop.f32.mrb[0].mxu0
    %v1581 = vpop.f32.mrb[0].mxu0
    %v1582 = vadd.f32 %v1390, %v1581
    %v1583 = vpop.f32.mrb[0].mxu0
    %1584 = vmatprep.mubr.bf16.mxu0 0
    %1585 = vmatmul.mubr.bf16.gmra.mrb[0].mxu0 %v1384
    %v1586 = vpop.f32.mrb[0].mxu0
    %v1587 = vadd.f32 %v1390, %v1586
    %v1588 = vpop.f32.mrb[0].mxu0
    %v1589 = vpop.f32.mrb[0].mxu0
    %v1590 = vadd.f32 %v1390, %v1589
    %v1591 = vpop.f32.mrb[0].mxu0
    %1592 = vmatprep.mubr.bf16.mxu0 0
    %1593 = vmatmul.mubr.bf16.gmra.mrb[0].mxu0 %v1385
    %v1594 = vpop.f32.mrb[0].mxu0
    %v1595 = vadd.f32 %v1390, %v1594
    %v1596 = vpop.f32.mrb[0].mxu0
    %v1597 = vpop.f32.mrb[0].mxu0
    %v1598 = vadd.f32 %v1390, %v1597
    %v1599 = vpop.f32.mrb[0].mxu0
    %1600 = vdwg.mxu0
    %v1601 = vtanh.pop %v1475
    %v1602 = vtanh.pop %v1478
    %v1603 = vtanh.pop %v1483
    %v1604 = vtanh.pop %v1486
    %v1605 = vtanh.pop %v1491
    %v1606 = vtanh.pop %v1494
    %v1607 = vtanh.pop %v1499
    %v1608 = vtanh.pop %v1502
    %v1609 = vtanh.pop %v1507
    %v1610 = vtanh.pop %v1510
    %v1611 = vtanh.pop %v1515
    %v1612 = vtanh.pop %v1518
    %v1613 = vtanh.pop %v1523
    %v1614 = vtanh.pop %v1526
    %v1615 = vtanh.pop %v1531
    %v1616 = vtanh.pop %v1534
    %v1617 = vtanh.pop %v1539
    %v1618 = vtanh.pop %v1542
    %v1619 = vtanh.pop %v1547
    %v1620 = vtanh.pop %v1550
    %v1621 = vtanh.pop %v1555
    %v1622 = vtanh.pop %v1558
    %v1623 = vtanh.pop %v1563
    %v1624 = vtanh.pop %v1566
    %v1625 = vtanh.pop %v1571
    %v1626 = vtanh.pop %v1574
    %v1627 = vtanh.pop %v1579
    %v1628 = vtanh.pop %v1582
    %v1629 = vtanh.pop %v1587
    %v1630 = vtanh.pop %v1590
    %v1631 = vtanh.pop %v1595
    %v1632 = vtanh.pop %v1598
    %v1633 = vadd.f32 %v1037, %v1601
    %v1634 = vadd.f32 %v1038, %v1602
    %v1635 = vadd.f32 %v1039, %v1603
    %v1636 = vadd.f32 %v1040, %v1604
    %v1637 = vadd.f32 %v1041, %v1605
    %v1638 = vadd.f32 %v1042, %v1606
    %v1639 = vadd.f32 %v1043, %v1607
    %v1640 = vadd.f32 %v1044, %v1608
    %v1641 = vadd.f32 %v1045, %v1609
    %v1642 = vadd.f32 %v1046, %v1610
    %v1643 = vadd.f32 %v1047, %v1611
    %v1644 = vadd.f32 %v1048, %v1612
    %v1645 = vadd.f32 %v1049, %v1613
    %v1646 = vadd.f32 %v1050, %v1614
    %v1647 = vadd.f32 %v1051, %v1615
    %v1648 = vadd.f32 %v1052, %v1616
    %v1649 = vadd.f32 %v1053, %v1617
    %v1650 = vadd.f32 %v1054, %v1618
    %v1651 = vadd.f32 %v1055, %v1619
    %v1652 = vadd.f32 %v1056, %v1620
    %v1653 = vadd.f32 %v1057, %v1621
    %v1654 = vadd.f32 %v1058, %v1622
    %v1655 = vadd.f32 %v1059, %v1623
    %v1656 = vadd.f32 %v1060, %v1624
    %v1657 = vadd.f32 %v1061, %v1625
    %v1658 = vadd.f32 %v1062, %v1626
    %v1659 = vadd.f32 %v1063, %v1627
    %v1660 = vadd.f32 %v1064, %v1628
    %v1661 = vadd.f32 %v1065, %v1629
    %v1662 = vadd.f32 %v1066, %v1630
    %v1663 = vadd.f32 %v1067, %v1631
    %v1664 = vadd.f32 %v1068, %v1632
    %v1665 = vpack.c.bf16 %v1634, %v1633
    %v1666 = vpack.c.bf16 %v1636, %v1635
    %v1667 = vpack.c.bf16 %v1638, %v1637
    %v1668 = vpack.c.bf16 %v1640, %v1639
    %v1669 = vpack.c.bf16 %v1642, %v1641
    %v1670 = vpack.c.bf16 %v1644, %v1643
    %v1671 = vpack.c.bf16 %v1646, %v1645
    %v1672 = vpack.c.bf16 %v1648, %v1647
    %v1673 = vpack.c.bf16 %v1650, %v1649
    %v1674 = vpack.c.bf16 %v1652, %v1651
    %v1675 = vpack.c.bf16 %v1654, %v1653
    %v1676 = vpack.c.bf16 %v1656, %v1655
    %v1677 = vpack.c.bf16 %v1658, %v1657
    %v1678 = vpack.c.bf16 %v1660, %v1659
    %v1679 = vpack.c.bf16 %v1662, %v1661
    %v1680 = vpack.c.bf16 %v1664, %v1663
    %v1681 = vld [vmem:[#allocation8] sm:$0xf]
    %v1682 = vld [vmem:[#allocation8 + $0x4] sm:$0xf]
    %v1683 = vld [vmem:[#allocation8 + $0x8] sm:$0xf]
    %v1684 = vld [vmem:[#allocation8 + $0xc] sm:$0xf]
    %v1685 = vld [vmem:[#allocation8 + $0x10] sm:$0xf]
    %v1686 = vld [vmem:[#allocation8 + $0x14] sm:$0xf]
    %v1687 = vld [vmem:[#allocation8 + $0x18] sm:$0xf]
    %v1688 = vld [vmem:[#allocation8 + $0x1c] sm:$0xf]
    %v1689 = vld [vmem:[#allocation8 + $0x20] sm:$0xf]
    %v1690 = vld [vmem:[#allocation8 + $0x24] sm:$0xf]
    %v1691 = vld [vmem:[#allocation8 + $0x28] sm:$0xf]
    %v1692 = vld [vmem:[#allocation8 + $0x2c] sm:$0xf]
    %v1693 = vld [vmem:[#allocation8 + $0x30] sm:$0xf]
    %v1694 = vld [vmem:[#allocation8 + $0x34] sm:$0xf]
    %v1695 = vld [vmem:[#allocation8 + $0x38] sm:$0xf]
    %v1696 = vld [vmem:[#allocation8 + $0x3c] sm:$0xf]
    %v1697 = vld [vmem:[%s6] sm:$0x1]
    %v1699 = vlaneseq
    %v1700 = vshrl.u32 %v1699, 7
    %v1701 = vsub.s32 0, %v1700
    %v1702 = vrot.slane %v1697, %v1701
    %v1720 = vunpack.c.l.b16 %v1681
    %v1721 = vunpack.c.l.b16 %v1682
    %v1722 = vunpack.c.l.b16 %v1683
    %v1723 = vunpack.c.l.b16 %v1684
    %v1724 = vunpack.c.l.b16 %v1685
    %v1725 = vunpack.c.l.b16 %v1686
    %v1726 = vunpack.c.l.b16 %v1687
    %v1727 = vunpack.c.l.b16 %v1688
    %v1728 = vunpack.c.l.b16 %v1689
    %v1729 = vunpack.c.l.b16 %v1690
    %v1730 = vunpack.c.l.b16 %v1691
    %v1731 = vunpack.c.l.b16 %v1692
    %v1732 = vunpack.c.l.b16 %v1693
    %v1733 = vunpack.c.l.b16 %v1694
    %v1734 = vunpack.c.l.b16 %v1695
    %v1735 = vunpack.c.l.b16 %v1696
    %v1736 = vpack.c.b16 %v1721, %v1720
    %v1737 = vpack.c.b16 %v1723, %v1722
    %v1738 = vpack.c.b16 %v1725, %v1724
    %v1739 = vpack.c.b16 %v1727, %v1726
    %v1740 = vpack.c.b16 %v1729, %v1728
    %v1741 = vpack.c.b16 %v1731, %v1730
    %v1742 = vpack.c.b16 %v1733, %v1732
    %v1743 = vpack.c.b16 %v1735, %v1734
    %1752 = vmatprep.subr.bf16.mxu0 0
    %1753 = vmatpush1.bf16.msra.mxu0 %v1736
    %1754 = vmatprep.subr.bf16.mxu0 0
    %1755 = vmatpush1.bf16.msra.mxu0 %v1737
    %1756 = vmatprep.subr.bf16.mxu0 0
    %1757 = vmatpush1.bf16.msra.mxu0 %v1738
    %1758 = vmatprep.subr.bf16.mxu0 0
    %1759 = vmatpush1.bf16.msra.mxu0 %v1739
    %1760 = vmatprep.subr.bf16.mxu0 0
    %1761 = vmatpush1.bf16.msra.mxu0 %v1740
    %1762 = vmatprep.subr.bf16.mxu0 0
    %1763 = vmatpush1.bf16.msra.mxu0 %v1741
    %1764 = vmatprep.subr.bf16.mxu0 0
    %1765 = vmatpush1.bf16.msra.mxu0 %v1742
    %1766 = vmatprep.subr.bf16.mxu0 0
    %1767 = vmatpush1.bf16.msra.mxu0 %v1743
    %1768 = vmatprep.subr.bf16.mxu0 0
    %1769 = vmatpush1.bf16.msra.mxu0 0
    %1770 = vmatprep.subr.bf16.mxu0 0
    %1771 = vmatpush1.bf16.msra.mxu0 0
    %1772 = vmatprep.subr.bf16.mxu0 0
    %1773 = vmatpush1.bf16.msra.mxu0 0
    %1774 = vmatprep.subr.bf16.mxu0 0
    %1775 = vmatpush1.bf16.msra.mxu0 0
    %1776 = vmatprep.subr.bf16.mxu0 0
    %1777 = vmatpush1.bf16.msra.mxu0 0
    %1778 = vmatprep.subr.bf16.mxu0 0
    %1779 = vmatpush1.bf16.msra.mxu0 0
    %1780 = vmatprep.subr.bf16.mxu0 0
    %1781 = vmatpush1.bf16.msra.mxu0 0
    %1782 = vmatprep.subr.bf16.mxu0 0
    %1783 = vmatpush1.bf16.msra.mxu0 0
    %1784 = vmatprep.mubr.bf16.mxu0 0
    %1785 = vmatmul.mubr.bf16.gmra.mrb[0].mxu0 %v1665
    %v1786 = vpop.f32.mrb[0].mxu0
    %v1787 = vadd.f32 %v1702, %v1786
    %v1788 = vpop.f32.mrb[0].mxu0
    %v1789 = vpop.f32.mrb[0].mxu0
    %v1790 = vadd.f32 %v1702, %v1789
    %v1791 = vpop.f32.mrb[0].mxu0
    %1792 = vmatprep.mubr.bf16.mxu0 0
    %1793 = vmatmul.mubr.bf16.gmra.mrb[0].mxu0 %v1666
    %v1794 = vpop.f32.mrb[0].mxu0
    %v1795 = vadd.f32 %v1702, %v1794
    %v1796 = vpop.f32.mrb[0].mxu0
    %v1797 = vpop.f32.mrb[0].mxu0
    %v1798 = vadd.f32 %v1702, %v1797
    %v1799 = vpop.f32.mrb[0].mxu0
    %1800 = vmatprep.mubr.bf16.mxu0 0
    %1801 = vmatmul.mubr.bf16.gmra.mrb[0].mxu0 %v1667
    %v1802 = vpop.f32.mrb[0].mxu0
    %v1803 = vadd.f32 %v1702, %v1802
    %v1804 = vpop.f32.mrb[0].mxu0
    %v1805 = vpop.f32.mrb[0].mxu0
    %v1806 = vadd.f32 %v1702, %v1805
    %v1807 = vpop.f32.mrb[0].mxu0
    %1808 = vmatprep.mubr.bf16.mxu0 0
    %1809 = vmatmul.mubr.bf16.gmra.mrb[0].mxu0 %v1668
    %v1810 = vpop.f32.mrb[0].mxu0
    %v1811 = vadd.f32 %v1702, %v1810
    %v1812 = vpop.f32.mrb[0].mxu0
    %v1813 = vpop.f32.mrb[0].mxu0
    %v1814 = vadd.f32 %v1702, %v1813
    %v1815 = vpop.f32.mrb[0].mxu0
    %1816 = vmatprep.mubr.bf16.mxu0 0
    %1817 = vmatmul.mubr.bf16.gmra.mrb[0].mxu0 %v1669
    %v1818 = vpop.f32.mrb[0].mxu0
    %v1819 = vadd.f32 %v1702, %v1818
    %v1820 = vpop.f32.mrb[0].mxu0
    %v1821 = vpop.f32.mrb[0].mxu0
    %v1822 = vadd.f32 %v1702, %v1821
    %v1823 = vpop.f32.mrb[0].mxu0
    %1824 = vmatprep.mubr.bf16.mxu0 0
    %1825 = vmatmul.mubr.bf16.gmra.mrb[0].mxu0 %v1670
    %v1826 = vpop.f32.mrb[0].mxu0
    %v1827 = vadd.f32 %v1702, %v1826
    %v1828 = vpop.f32.mrb[0].mxu0
    %v1829 = vpop.f32.mrb[0].mxu0
    %v1830 = vadd.f32 %v1702, %v1829
    %v1831 = vpop.f32.mrb[0].mxu0
    %1832 = vmatprep.mubr.bf16.mxu0 0
    %1833 = vmatmul.mubr.bf16.gmra.mrb[0].mxu0 %v1671
    %v1834 = vpop.f32.mrb[0].mxu0
    %v1835 = vadd.f32 %v1702, %v1834
    %v1836 = vpop.f32.mrb[0].mxu0
    %v1837 = vpop.f32.mrb[0].mxu0
    %v1838 = vadd.f32 %v1702, %v1837
    %v1839 = vpop.f32.mrb[0].mxu0
    %1840 = vmatprep.mubr.bf16.mxu0 0
    %1841 = vmatmul.mubr.bf16.gmra.mrb[0].mxu0 %v1672
    %v1842 = vpop.f32.mrb[0].mxu0
    %v1843 = vadd.f32 %v1702, %v1842
    %v1844 = vpop.f32.mrb[0].mxu0
    %v1845 = vpop.f32.mrb[0].mxu0
    %v1846 = vadd.f32 %v1702, %v1845
    %v1847 = vpop.f32.mrb[0].mxu0
    %1848 = vmatprep.mubr.bf16.mxu0 0
    %1849 = vmatmul.mubr.bf16.gmra.mrb[0].mxu0 %v1673
    %v1850 = vpop.f32.mrb[0].mxu0
    %v1851 = vadd.f32 %v1702, %v1850
    %v1852 = vpop.f32.mrb[0].mxu0
    %v1853 = vpop.f32.mrb[0].mxu0
    %v1854 = vadd.f32 %v1702, %v1853
    %v1855 = vpop.f32.mrb[0].mxu0
    %1856 = vmatprep.mubr.bf16.mxu0 0
    %1857 = vmatmul.mubr.bf16.gmra.mrb[0].mxu0 %v1674
    %v1858 = vpop.f32.mrb[0].mxu0
    %v1859 = vadd.f32 %v1702, %v1858
    %v1860 = vpop.f32.mrb[0].mxu0
    %v1861 = vpop.f32.mrb[0].mxu0
    %v1862 = vadd.f32 %v1702, %v1861
    %v1863 = vpop.f32.mrb[0].mxu0
    %1864 = vmatprep.mubr.bf16.mxu0 0
    %1865 = vmatmul.mubr.bf16.gmra.mrb[0].mxu0 %v1675
    %v1866 = vpop.f32.mrb[0].mxu0
    %v1867 = vadd.f32 %v1702, %v1866
    %v1868 = vpop.f32.mrb[0].mxu0
    %v1869 = vpop.f32.mrb[0].mxu0
    %v1870 = vadd.f32 %v1702, %v1869
    %v1871 = vpop.f32.mrb[0].mxu0
    %1872 = vmatprep.mubr.bf16.mxu0 0
    %1873 = vmatmul.mubr.bf16.gmra.mrb[0].mxu0 %v1676
    %v1874 = vpop.f32.mrb[0].mxu0
    %v1875 = vadd.f32 %v1702, %v1874
    %v1876 = vpop.f32.mrb[0].mxu0
    %v1877 = vpop.f32.mrb[0].mxu0
    %v1878 = vadd.f32 %v1702, %v1877
    %v1879 = vpop.f32.mrb[0].mxu0
    %1880 = vmatprep.mubr.bf16.mxu0 0
    %1881 = vmatmul.mubr.bf16.gmra.mrb[0].mxu0 %v1677
    %v1882 = vpop.f32.mrb[0].mxu0
    %v1883 = vadd.f32 %v1702, %v1882
    %v1884 = vpop.f32.mrb[0].mxu0
    %v1885 = vpop.f32.mrb[0].mxu0
    %v1886 = vadd.f32 %v1702, %v1885
    %v1887 = vpop.f32.mrb[0].mxu0
    %1888 = vmatprep.mubr.bf16.mxu0 0
    %1889 = vmatmul.mubr.bf16.gmra.mrb[0].mxu0 %v1678
    %v1890 = vpop.f32.mrb[0].mxu0
    %v1891 = vadd.f32 %v1702, %v1890
    %v1892 = vpop.f32.mrb[0].mxu0
    %v1893 = vpop.f32.mrb[0].mxu0
    %v1894 = vadd.f32 %v1702, %v1893
    %v1895 = vpop.f32.mrb[0].mxu0
    %1896 = vmatprep.mubr.bf16.mxu0 0
    %1897 = vmatmul.mubr.bf16.gmra.mrb[0].mxu0 %v1679
    %v1898 = vpop.f32.mrb[0].mxu0
    %v1899 = vadd.f32 %v1702, %v1898
    %v1900 = vpop.f32.mrb[0].mxu0
    %v1901 = vpop.f32.mrb[0].mxu0
    %v1902 = vadd.f32 %v1702, %v1901
    %v1903 = vpop.f32.mrb[0].mxu0
    %1904 = vmatprep.mubr.bf16.mxu0 0
    %1905 = vmatmul.mubr.bf16.gmra.mrb[0].mxu0 %v1680
    %v1906 = vpop.f32.mrb[0].mxu0
    %v1907 = vadd.f32 %v1702, %v1906
    %v1908 = vpop.f32.mrb[0].mxu0
    %v1909 = vpop.f32.mrb[0].mxu0
    %v1910 = vadd.f32 %v1702, %v1909
    %v1911 = vpop.f32.mrb[0].mxu0
    %1912 = vdwg.mxu0
    %1913 = vmax.xlane.f32.xlu0 %v1787
    %v1914 = vpop.xlane.xlu0 %1913
    %1915 = vmax.xlane.f32.xlu0 %v1790
    %v1916 = vpop.xlane.xlu0 %1915
    %1917 = vmax.xlane.f32.xlu0 %v1795
    %v1918 = vpop.xlane.xlu0 %1917
    %1919 = vmax.xlane.f32.xlu0 %v1798
    %v1920 = vpop.xlane.xlu0 %1919
    %1921 = vmax.xlane.f32.xlu0 %v1803
    %v1922 = vpop.xlane.xlu0 %1921
    %1923 = vmax.xlane.f32.xlu0 %v1806
    %v1924 = vpop.xlane.xlu0 %1923
    %1925 = vmax.xlane.f32.xlu0 %v1811
    %v1926 = vpop.xlane.xlu0 %1925
    %1927 = vmax.xlane.f32.xlu0 %v1814
    %v1928 = vpop.xlane.xlu0 %1927
    %1929 = vmax.xlane.f32.xlu0 %v1819
    %v1930 = vpop.xlane.xlu0 %1929
    %1931 = vmax.xlane.f32.xlu0 %v1822
    %v1932 = vpop.xlane.xlu0 %1931
    %1933 = vmax.xlane.f32.xlu0 %v1827
    %v1934 = vpop.xlane.xlu0 %1933
    %1935 = vmax.xlane.f32.xlu0 %v1830
    %v1936 = vpop.xlane.xlu0 %1935
    %1937 = vmax.xlane.f32.xlu0 %v1835
    %v1938 = vpop.xlane.xlu0 %1937
    %1939 = vmax.xlane.f32.xlu0 %v1838
    %v1940 = vpop.xlane.xlu0 %1939
    %1941 = vmax.xlane.f32.xlu0 %v1843
    %v1942 = vpop.xlane.xlu0 %1941
    %1943 = vmax.xlane.f32.xlu0 %v1846
    %v1944 = vpop.xlane.xlu0 %1943
    %1945 = vmax.xlane.f32.xlu0 %v1851
    %v1946 = vpop.xlane.xlu0 %1945
    %1947 = vmax.xlane.f32.xlu0 %v1854
    %v1948 = vpop.xlane.xlu0 %1947
    %1949 = vmax.xlane.f32.xlu0 %v1859
    %v1950 = vpop.xlane.xlu0 %1949
    %1951 = vmax.xlane.f32.xlu0 %v1862
    %v1952 = vpop.xlane.xlu0 %1951
    %1953 = vmax.xlane.f32.xlu0 %v1867
    %v1954 = vpop.xlane.xlu0 %1953
    %1955 = vmax.xlane.f32.xlu0 %v1870
    %v1956 = vpop.xlane.xlu0 %1955
    %1957 = vmax.xlane.f32.xlu0 %v1875
    %v1958 = vpop.xlane.xlu0 %1957
    %1959 = vmax.xlane.f32.xlu0 %v1878
    %v1960 = vpop.xlane.xlu0 %1959
    %1961 = vmax.xlane.f32.xlu0 %v1883
    %v1962 = vpop.xlane.xlu0 %1961
    %1963 = vmax.xlane.f32.xlu0 %v1886
    %v1964 = vpop.xlane.xlu0 %1963
    %1965 = vmax.xlane.f32.xlu0 %v1891
    %v1966 = vpop.xlane.xlu0 %1965
    %1967 = vmax.xlane.f32.xlu0 %v1894
    %v1968 = vpop.xlane.xlu0 %1967
    %1969 = vmax.xlane.f32.xlu0 %v1899
    %v1970 = vpop.xlane.xlu0 %1969
    %1971 = vmax.xlane.f32.xlu0 %v1902
    %v1972 = vpop.xlane.xlu0 %1971
    %1973 = vmax.xlane.f32.xlu0 %v1907
    %v1974 = vpop.xlane.xlu0 %1973
    %1975 = vmax.xlane.f32.xlu0 %v1910
    %v1976 = vpop.xlane.xlu0 %1975
    %v1977 = vsub.f32 %v1787, %v1914
    %v1978 = vsub.f32 %v1790, %v1916
    %v1979 = vsub.f32 %v1795, %v1918
    %v1980 = vsub.f32 %v1798, %v1920
    %v1981 = vsub.f32 %v1803, %v1922
    %v1982 = vsub.f32 %v1806, %v1924
    %v1983 = vsub.f32 %v1811, %v1926
    %v1984 = vsub.f32 %v1814, %v1928
    %v1985 = vsub.f32 %v1819, %v1930
    %v1986 = vsub.f32 %v1822, %v1932
    %v1987 = vsub.f32 %v1827, %v1934
    %v1988 = vsub.f32 %v1830, %v1936
    %v1989 = vsub.f32 %v1835, %v1938
    %v1990 = vsub.f32 %v1838, %v1940
    %v1991 = vsub.f32 %v1843, %v1942
    %v1992 = vsub.f32 %v1846, %v1944
    %v1993 = vsub.f32 %v1851, %v1946
    %v1994 = vsub.f32 %v1854, %v1948
    %v1995 = vsub.f32 %v1859, %v1950
    %v1996 = vsub.f32 %v1862, %v1952
    %v1997 = vsub.f32 %v1867, %v1954
    %v1998 = vsub.f32 %v1870, %v1956
    %v1999 = vsub.f32 %v1875, %v1958
    %v2000 = vsub.f32 %v1878, %v1960
    %v2001 = vsub.f32 %v1883, %v1962
    %v2002 = vsub.f32 %v1886, %v1964
    %v2003 = vsub.f32 %v1891, %v1966
    %v2004 = vsub.f32 %v1894, %v1968
    %v2005 = vsub.f32 %v1899, %v1970
    %v2006 = vsub.f32 %v1902, %v1972
    %v2007 = vsub.f32 %v1907, %v1974
    %v2008 = vsub.f32 %v1910, %v1976
    %v2009 = vmul.f32 %v1977, 1.442695
    %v2010 = vpow.pop %v2009
    %v2011 = vmul.f32 %v1978, 1.442695
    %v2012 = vpow.pop %v2011
    %v2013 = vmul.f32 %v1979, 1.442695
    %v2014 = vpow.pop %v2013
    %v2015 = vmul.f32 %v1980, 1.442695
    %v2016 = vpow.pop %v2015
    %v2017 = vmul.f32 %v1981, 1.442695
    %v2018 = vpow.pop %v2017
    %v2019 = vmul.f32 %v1982, 1.442695
    %v2020 = vpow.pop %v2019
    %v2021 = vmul.f32 %v1983, 1.442695
    %v2022 = vpow.pop %v2021
    %v2023 = vmul.f32 %v1984, 1.442695
    %v2024 = vpow.pop %v2023
    %v2025 = vmul.f32 %v1985, 1.442695
    %v2026 = vpow.pop %v2025
    %v2027 = vmul.f32 %v1986, 1.442695
    %v2028 = vpow.pop %v2027
    %v2029 = vmul.f32 %v1987, 1.442695
    %v2030 = vpow.pop %v2029
    %v2031 = vmul.f32 %v1988, 1.442695
    %v2032 = vpow.pop %v2031
    %v2033 = vmul.f32 %v1989, 1.442695
    %v2034 = vpow.pop %v2033
    %v2035 = vmul.f32 %v1990, 1.442695
    %v2036 = vpow.pop %v2035
    %v2037 = vmul.f32 %v1991, 1.442695
    %v2038 = vpow.pop %v2037
    %v2039 = vmul.f32 %v1992, 1.442695
    %v2040 = vpow.pop %v2039
    %v2041 = vmul.f32 %v1993, 1.442695
    %v2042 = vpow.pop %v2041
    %v2043 = vmul.f32 %v1994, 1.442695
    %v2044 = vpow.pop %v2043
    %v2045 = vmul.f32 %v1995, 1.442695
    %v2046 = vpow.pop %v2045
    %v2047 = vmul.f32 %v1996, 1.442695
    %v2048 = vpow.pop %v2047
    %v2049 = vmul.f32 %v1997, 1.442695
    %v2050 = vpow.pop %v2049
    %v2051 = vmul.f32 %v1998, 1.442695
    %v2052 = vpow.pop %v2051
    %v2053 = vmul.f32 %v1999, 1.442695
    %v2054 = vpow.pop %v2053
    %v2055 = vmul.f32 %v2000, 1.442695
    %v2056 = vpow.pop %v2055
    %v2057 = vmul.f32 %v2001, 1.442695
    %v2058 = vpow.pop %v2057
    %v2059 = vmul.f32 %v2002, 1.442695
    %v2060 = vpow.pop %v2059
    %v2061 = vmul.f32 %v2003, 1.442695
    %v2062 = vpow.pop %v2061
    %v2063 = vmul.f32 %v2004, 1.442695
    %v2064 = vpow.pop %v2063
    %v2065 = vmul.f32 %v2005, 1.442695
    %v2066 = vpow.pop %v2065
    %v2067 = vmul.f32 %v2006, 1.442695
    %v2068 = vpow.pop %v2067
    %v2069 = vmul.f32 %v2007, 1.442695
    %v2070 = vpow.pop %v2069
    %v2071 = vmul.f32 %v2008, 1.442695
    %v2072 = vpow.pop %v2071
    %2073 = vadd.xlane.f32.xlu0 %v2010
    %v2074 = vpop.xlane.xlu0 %2073
    %2075 = vadd.xlane.f32.xlu0 %v2012
    %v2076 = vpop.xlane.xlu0 %2075
    %2077 = vadd.xlane.f32.xlu0 %v2014
    %v2078 = vpop.xlane.xlu0 %2077
    %2079 = vadd.xlane.f32.xlu0 %v2016
    %v2080 = vpop.xlane.xlu0 %2079
    %2081 = vadd.xlane.f32.xlu0 %v2018
    %v2082 = vpop.xlane.xlu0 %2081
    %2083 = vadd.xlane.f32.xlu0 %v2020
    %v2084 = vpop.xlane.xlu0 %2083
    %2085 = vadd.xlane.f32.xlu0 %v2022
    %v2086 = vpop.xlane.xlu0 %2085
    %2087 = vadd.xlane.f32.xlu0 %v2024
    %v2088 = vpop.xlane.xlu0 %2087
    %2089 = vadd.xlane.f32.xlu0 %v2026
    %v2090 = vpop.xlane.xlu0 %2089
    %2091 = vadd.xlane.f32.xlu0 %v2028
    %v2092 = vpop.xlane.xlu0 %2091
    %2093 = vadd.xlane.f32.xlu0 %v2030
    %v2094 = vpop.xlane.xlu0 %2093
    %2095 = vadd.xlane.f32.xlu0 %v2032
    %v2096 = vpop.xlane.xlu0 %2095
    %2097 = vadd.xlane.f32.xlu0 %v2034
    %v2098 = vpop.xlane.xlu0 %2097
    %2099 = vadd.xlane.f32.xlu0 %v2036
    %v2100 = vpop.xlane.xlu0 %2099
    %2101 = vadd.xlane.f32.xlu0 %v2038
    %v2102 = vpop.xlane.xlu0 %2101
    %2103 = vadd.xlane.f32.xlu0 %v2040
    %v2104 = vpop.xlane.xlu0 %2103
    %2105 = vadd.xlane.f32.xlu0 %v2042
    %v2106 = vpop.xlane.xlu0 %2105
    %2107 = vadd.xlane.f32.xlu0 %v2044
    %v2108 = vpop.xlane.xlu0 %2107
    %2109 = vadd.xlane.f32.xlu0 %v2046
    %v2110 = vpop.xlane.xlu0 %2109
    %2111 = vadd.xlane.f32.xlu0 %v2048
    %v2112 = vpop.xlane.xlu0 %2111
    %2113 = vadd.xlane.f32.xlu0 %v2050
    %v2114 = vpop.xlane.xlu0 %2113
    %2115 = vadd.xlane.f32.xlu0 %v2052
    %v2116 = vpop.xlane.xlu0 %2115
    %2117 = vadd.xlane.f32.xlu0 %v2054
    %v2118 = vpop.xlane.xlu0 %2117
    %2119 = vadd.xlane.f32.xlu0 %v2056
    %v2120 = vpop.xlane.xlu0 %2119
    %2121 = vadd.xlane.f32.xlu0 %v2058
    %v2122 = vpop.xlane.xlu0 %2121
    %2123 = vadd.xlane.f32.xlu0 %v2060
    %v2124 = vpop.xlane.xlu0 %2123
    %2125 = vadd.xlane.f32.xlu0 %v2062
    %v2126 = vpop.xlane.xlu0 %2125
    %2127 = vadd.xlane.f32.xlu0 %v2064
    %v2128 = vpop.xlane.xlu0 %2127
    %2129 = vadd.xlane.f32.xlu0 %v2066
    %v2130 = vpop.xlane.xlu0 %2129
    %2131 = vadd.xlane.f32.xlu0 %v2068
    %v2132 = vpop.xlane.xlu0 %2131
    %2133 = vadd.xlane.f32.xlu0 %v2070
    %v2134 = vpop.xlane.xlu0 %2133
    %2135 = vadd.xlane.f32.xlu0 %v2072
    %v2136 = vpop.xlane.xlu0 %2135
    %v2137 = vrcp.pop %v2074
    %v2138 = vrcp.pop %v2076
    %v2139 = vrcp.pop %v2078
    %v2140 = vrcp.pop %v2080
    %v2141 = vrcp.pop %v2082
    %v2142 = vrcp.pop %v2084
    %v2143 = vrcp.pop %v2086
    %v2144 = vrcp.pop %v2088
    %v2145 = vrcp.pop %v2090
    %v2146 = vrcp.pop %v2092
    %v2147 = vrcp.pop %v2094
    %v2148 = vrcp.pop %v2096
    %v2149 = vrcp.pop %v2098
    %v2150 = vrcp.pop %v2100
    %v2151 = vrcp.pop %v2102
    %v2152 = vrcp.pop %v2104
    %v2153 = vrcp.pop %v2106
    %v2154 = vrcp.pop %v2108
    %v2155 = vrcp.pop %v2110
    %v2156 = vrcp.pop %v2112
    %v2157 = vrcp.pop %v2114
    %v2158 = vrcp.pop %v2116
    %v2159 = vrcp.pop %v2118
    %v2160 = vrcp.pop %v2120
    %v2161 = vrcp.pop %v2122
    %v2162 = vrcp.pop %v2124
    %v2163 = vrcp.pop %v2126
    %v2164 = vrcp.pop %v2128
    %v2165 = vrcp.pop %v2130
    %v2166 = vrcp.pop %v2132
    %v2167 = vrcp.pop %v2134
    %v2168 = vrcp.pop %v2136
    %v2169 = vmul.f32 %v2074, %v2137
    %v2170 = vmul.f32 %v2076, %v2138
    %v2171 = vmul.f32 %v2078, %v2139
    %v2172 = vmul.f32 %v2080, %v2140
    %v2173 = vmul.f32 %v2082, %v2141
    %v2174 = vmul.f32 %v2084, %v2142
    %v2175 = vmul.f32 %v2086, %v2143
    %v2176 = vmul.f32 %v2088, %v2144
    %v2177 = vmul.f32 %v2090, %v2145
    %v2178 = vmul.f32 %v2092, %v2146
    %v2179 = vmul.f32 %v2094, %v2147
    %v2180 = vmul.f32 %v2096, %v2148
    %v2181 = vmul.f32 %v2098, %v2149
    %v2182 = vmul.f32 %v2100, %v2150
    %v2183 = vmul.f32 %v2102, %v2151
    %v2184 = vmul.f32 %v2104, %v2152
    %v2185 = vmul.f32 %v2106, %v2153
    %v2186 = vmul.f32 %v2108, %v2154
    %v2187 = vmul.f32 %v2110, %v2155
    %v2188 = vmul.f32 %v2112, %v2156
    %v2189 = vmul.f32 %v2114, %v2157
    %v2190 = vmul.f32 %v2116, %v2158
    %v2191 = vmul.f32 %v2118, %v2159
    %v2192 = vmul.f32 %v2120, %v2160
    %v2193 = vmul.f32 %v2122, %v2161
    %v2194 = vmul.f32 %v2124, %v2162
    %v2195 = vmul.f32 %v2126, %v2163
    %v2196 = vmul.f32 %v2128, %v2164
    %v2197 = vmul.f32 %v2130, %v2165
    %v2198 = vmul.f32 %v2132, %v2166
    %v2199 = vmul.f32 %v2134, %v2167
    %v2200 = vmul.f32 %v2136, %v2168
    %v2201 = vsub.f32 2.0, %v2169
    %v2202 = vsub.f32 2.0, %v2170
    %v2203 = vsub.f32 2.0, %v2171
    %v2204 = vsub.f32 2.0, %v2172
    %v2205 = vsub.f32 2.0, %v2173
    %v2206 = vsub.f32 2.0, %v2174
    %v2207 = vsub.f32 2.0, %v2175
    %v2208 = vsub.f32 2.0, %v2176
    %v2209 = vsub.f32 2.0, %v2177
    %v2210 = vsub.f32 2.0, %v2178
    %v2211 = vsub.f32 2.0, %v2179
    %v2212 = vsub.f32 2.0, %v2180
    %v2213 = vsub.f32 2.0, %v2181
    %v2214 = vsub.f32 2.0, %v2182
    %v2215 = vsub.f32 2.0, %v2183
    %v2216 = vsub.f32 2.0, %v2184
    %v2217 = vsub.f32 2.0, %v2185
    %v2218 = vsub.f32 2.0, %v2186
    %v2219 = vsub.f32 2.0, %v2187
    %v2220 = vsub.f32 2.0, %v2188
    %v2221 = vsub.f32 2.0, %v2189
    %v2222 = vsub.f32 2.0, %v2190
    %v2223 = vsub.f32 2.0, %v2191
    %v2224 = vsub.f32 2.0, %v2192
    %v2225 = vsub.f32 2.0, %v2193
    %v2226 = vsub.f32 2.0, %v2194
    %v2227 = vsub.f32 2.0, %v2195
    %v2228 = vsub.f32 2.0, %v2196
    %v2229 = vsub.f32 2.0, %v2197
    %v2230 = vsub.f32 2.0, %v2198
    %v2231 = vsub.f32 2.0, %v2199
    %v2232 = vsub.f32 2.0, %v2200
    %v2233 = vmul.f32 %v2137, %v2201
    %v2234 = vmul.f32 %v2138, %v2202
    %v2235 = vmul.f32 %v2139, %v2203
    %v2236 = vmul.f32 %v2140, %v2204
    %v2237 = vmul.f32 %v2141, %v2205
    %v2238 = vmul.f32 %v2142, %v2206
    %v2239 = vmul.f32 %v2143, %v2207
    %v2240 = vmul.f32 %v2144, %v2208
    %v2241 = vmul.f32 %v2145, %v2209
    %v2242 = vmul.f32 %v2146, %v2210
    %v2243 = vmul.f32 %v2147, %v2211
    %v2244 = vmul.f32 %v2148, %v2212
    %v2245 = vmul.f32 %v2149, %v2213
    %v2246 = vmul.f32 %v2150, %v2214
    %v2247 = vmul.f32 %v2151, %v2215
    %v2248 = vmul.f32 %v2152, %v2216
    %v2249 = vmul.f32 %v2153, %v2217
    %v2250 = vmul.f32 %v2154, %v2218
    %v2251 = vmul.f32 %v2155, %v2219
    %v2252 = vmul.f32 %v2156, %v2220
    %v2253 = vmul.f32 %v2157, %v2221
    %v2254 = vmul.f32 %v2158, %v2222
    %v2255 = vmul.f32 %v2159, %v2223
    %v2256 = vmul.f32 %v2160, %v2224
    %v2257 = vmul.f32 %v2161, %v2225
    %v2258 = vmul.f32 %v2162, %v2226
    %v2259 = vmul.f32 %v2163, %v2227
    %v2260 = vmul.f32 %v2164, %v2228
    %v2261 = vmul.f32 %v2165, %v2229
    %v2262 = vmul.f32 %v2166, %v2230
    %v2263 = vmul.f32 %v2167, %v2231
    %v2264 = vmul.f32 %v2168, %v2232
    %v2265 = vmul.f32 %v2010, %v2233
    %v2266 = vmul.f32 %v2012, %v2234
    %v2267 = vmul.f32 %v2014, %v2235
    %v2268 = vmul.f32 %v2016, %v2236
    %v2269 = vmul.f32 %v2018, %v2237
    %v2270 = vmul.f32 %v2020, %v2238
    %v2271 = vmul.f32 %v2022, %v2239
    %v2272 = vmul.f32 %v2024, %v2240
    %v2273 = vmul.f32 %v2026, %v2241
    %v2274 = vmul.f32 %v2028, %v2242
    %v2275 = vmul.f32 %v2030, %v2243
    %v2276 = vmul.f32 %v2032, %v2244
    %v2277 = vmul.f32 %v2034, %v2245
    %v2278 = vmul.f32 %v2036, %v2246
    %v2279 = vmul.f32 %v2038, %v2247
    %v2280 = vmul.f32 %v2040, %v2248
    %v2281 = vmul.f32 %v2042, %v2249
    %v2282 = vmul.f32 %v2044, %v2250
    %v2283 = vmul.f32 %v2046, %v2251
    %v2284 = vmul.f32 %v2048, %v2252
    %v2285 = vmul.f32 %v2050, %v2253
    %v2286 = vmul.f32 %v2052, %v2254
    %v2287 = vmul.f32 %v2054, %v2255
    %v2288 = vmul.f32 %v2056, %v2256
    %v2289 = vmul.f32 %v2058, %v2257
    %v2290 = vmul.f32 %v2060, %v2258
    %v2291 = vmul.f32 %v2062, %v2259
    %v2292 = vmul.f32 %v2064, %v2260
    %v2293 = vmul.f32 %v2066, %v2261
    %v2294 = vmul.f32 %v2068, %v2262
    %v2295 = vmul.f32 %v2070, %v2263
    %v2296 = vmul.f32 %v2072, %v2264
    %2297 = vst [vmem:[#allocation10] sm:$0xff] %v2265
    %2298 = vst [vmem:[#allocation10 + $0x8] sm:$0xff] %v2266
    %2299 = vst [vmem:[#allocation10 + $0x10] sm:$0xff] %v2267
    %2300 = vst [vmem:[#allocation10 + $0x18] sm:$0xff] %v2268
    %2301 = vst [vmem:[#allocation10 + $0x20] sm:$0xff] %v2269
    %2302 = vst [vmem:[#allocation10 + $0x28] sm:$0xff] %v2270
    %2303 = vst [vmem:[#allocation10 + $0x30] sm:$0xff] %v2271
    %2304 = vst [vmem:[#allocation10 + $0x38] sm:$0xff] %v2272
    %2305 = vst [vmem:[#allocation10 + $0x40] sm:$0xff] %v2273
    %2306 = vst [vmem:[#allocation10 + $0x48] sm:$0xff] %v2274
    %2307 = vst [vmem:[#allocation10 + $0x50] sm:$0xff] %v2275
    %2308 = vst [vmem:[#allocation10 + $0x58] sm:$0xff] %v2276
    %2309 = vst [vmem:[#allocation10 + $0x60] sm:$0xff] %v2277
    %2310 = vst [vmem:[#allocation10 + $0x68] sm:$0xff] %v2278
    %2311 = vst [vmem:[#allocation10 + $0x70] sm:$0xff] %v2279
    %2312 = vst [vmem:[#allocation10 + $0x78] sm:$0xff] %v2280
    %2313 = vst [vmem:[#allocation10 + $0x80] sm:$0xff] %v2281
    %2314 = vst [vmem:[#allocation10 + $0x88] sm:$0xff] %v2282
    %2315 = vst [vmem:[#allocation10 + $0x90] sm:$0xff] %v2283
    %2316 = vst [vmem:[#allocation10 + $0x98] sm:$0xff] %v2284
    %2317 = vst [vmem:[#allocation10 + $0xa0] sm:$0xff] %v2285
    %2318 = vst [vmem:[#allocation10 + $0xa8] sm:$0xff] %v2286
    %2319 = vst [vmem:[#allocation10 + $0xb0] sm:$0xff] %v2287
    %2320 = vst [vmem:[#allocation10 + $0xb8] sm:$0xff] %v2288
    %2321 = vst [vmem:[#allocation10 + $0xc0] sm:$0xff] %v2289
    %2322 = vst [vmem:[#allocation10 + $0xc8] sm:$0xff] %v2290
    %2323 = vst [vmem:[#allocation10 + $0xd0] sm:$0xff] %v2291
    %2324 = vst [vmem:[#allocation10 + $0xd8] sm:$0xff] %v2292
    %2325 = vst [vmem:[#allocation10 + $0xe0] sm:$0xff] %v2293
    %2326 = vst [vmem:[#allocation10 + $0xe8] sm:$0xff] %v2294
    %2327 = vst [vmem:[#allocation10 + $0xf0] sm:$0xff] %v2295
    %2328 = vst [vmem:[#allocation10 + $0xf8] sm:$0xff] %v2296
    // Predicated region
    $region46: #{tpu_custom_call.1} parent=1 // pred_check
      _
    $region47: #{tpu_custom_call.1} parent=1 // pred_check_branch
      %2330 = sbr.rel (0) target = $region49
    $region48: #{tpu_custom_call.1} parent=1 // pred_region
      %s2332 = ssub.s32 4096, 4096
      %2333 = vsyncadd [#allocation4], %s2332
      %s2334 = sshll.u32 [#allocation10], 4
      %s2335 = int_to_ptr.vmem [resolvable:$true] %s2334
      %2340 = dma.vmem_to_hbm [thread:$0]  %s2335, 4096, %s7, [#allocation4], 128, 128, 8
    $region49: #{tpu_custom_call.1} parent=1 // pred_fallthru
      _
    // Predicated region
    $region50: #{tpu_custom_call.1} parent=1 // pred_check
      _
    $region51: #{tpu_custom_call.1} parent=1 // pred_check_branch
      %2342 = sbr.rel (0) target = $region53
    $region52: #{tpu_custom_call.1} parent=1 // pred_region
      %2343 = dma.done [#allocation4], 4096
    $region53: #{tpu_custom_call.1} parent=1 // pred_fallthru
      _
    %2344 = vsyncpa [#allocation3], 1
    %2345 = vsyncpa [#allocation6], 1
    %2346 = vsyncpa [#allocation9], 1
    %2347 = vsyncpa [#allocation4], 1

</llo_original>
